<compile_context>
chip_gen: v5e
topology: v5e:2x2
jax: 0.10.0
libtpu: 0.0.40
codegen_flags: <defaults>
</compile_context>

<pallas_src>
import functools

import jax
import jax.numpy as jnp
from jax import lax
from jax.experimental import pallas as pl
from jax.experimental.pallas import tpu as pltpu

H_ENC, H_LAT, H_DEC = 64, 32, 64
B_PAD = 8      # sublane tile: pad batch rows to a full (8, 128) tile row-group
F_PAD = 128    # lane tile: pad the output-layer columns to a full lane register


# ----------------------------- Pallas kernel --------------------------------
def _gates_to_hc(gates, c, H):
    """PyTorch-semantics LSTM cell update from pre-activations (gate order i,f,g,o)."""
    sif = jax.nn.sigmoid(gates[:, :2 * H])          # i and f in one wide EUP call
    i = sif[:, :H]
    f = sif[:, H:]
    g = jnp.tanh(gates[:, 2 * H:3 * H])
    c_new = f * c + i * g
    o = jax.nn.sigmoid(gates[:, 3 * H:4 * H])       # o last: pipelines with tanh(c_new)
    h_new = o * jnp.tanh(c_new)
    return h_new, c_new


def _autoencoder_kernel(x_ref,                                   # (T*BP, F) time-major
                        wih_e_ref, whh_e_ref, b_e_ref,           # (F,4He) (He,4He) (1,4He)
                        wih_l_ref, whh_l_ref, b_l_ref,           # (He,4Hl) (Hl,4Hl) (1,4Hl)
                        wih_d_ref, whh_d_ref, b_d_ref,           # (Hl,4Hd) (Hd,4Hd) (1,4Hd)
                        w_out_ref, b_out_ref,                    # (Hd,F_PAD) (1,F_PAD)
                        y_ref,                                   # (T*BP, F_PAD)
                        xp_ref, hd_ref,                          # VMEM scratch
                        *, T):
    # ---- encoder input projection, batched over all T*B_PAD rows (one matmul) ----
    xp_ref[...] = (jnp.dot(x_ref[...], wih_e_ref[...],
                           preferred_element_type=jnp.float32) + b_e_ref[...])

    # ---- encoder recurrence: one serialized matmul per step ----------------------
    def enc_body(t, carry):
        h, c = carry
        row = pl.multiple_of(t * B_PAD, B_PAD)
        gates = (jnp.dot(h, whh_e_ref[...], preferred_element_type=jnp.float32)
                 + xp_ref[pl.ds(row, B_PAD), :])
        return _gates_to_hc(gates, c, H_ENC)

    h_enc, _ = lax.fori_loop(
        0, T, enc_body,
        (jnp.zeros((B_PAD, H_ENC), jnp.float32),
         jnp.zeros((B_PAD, H_ENC), jnp.float32)),
        unroll=True)

    # ---- latent input projection: h_enc is constant across the decode loop -------
    xl = (jnp.dot(h_enc, wih_l_ref[...], preferred_element_type=jnp.float32)
          + b_l_ref[...])                                        # (B_PAD, 4*H_LAT)

    # ---- decoder bias broadcast hoisted out of the unrolled loop -----------------
    b_d = jnp.broadcast_to(b_d_ref[...], (B_PAD, 4 * H_DEC))

    # ---- latent + decoder recurrence ----------------------------------------------
    def dec_body(t, carry):
        h_l, c_l, h_d, c_d = carry
        # decoder recurrent matmul depends only on last step's h_d: issue it first so
        # it overlaps the latent cell update on the EUP.
        g_rec = jnp.dot(h_d, whh_d_ref[...], preferred_element_type=jnp.float32)
        # latent LSTM step (input projection hoisted into xl)
        g_l = jnp.dot(h_l, whh_l_ref[...], preferred_element_type=jnp.float32) + xl
        h_l, c_l = _gates_to_hc(g_l, c_l, H_LAT)
        # decoder LSTM step: split (no concat) input projection + recurrent part
        g_d = (g_rec
               + jnp.dot(h_l, wih_d_ref[...], preferred_element_type=jnp.float32)
               + b_d)
        h_d, c_d = _gates_to_hc(g_d, c_d, H_DEC)
        row = pl.multiple_of(t * B_PAD, B_PAD)
        hd_ref[pl.ds(row, B_PAD), :] = h_d
        return h_l, c_l, h_d, c_d

    lax.fori_loop(
        0, T, dec_body,
        (jnp.zeros((B_PAD, H_LAT), jnp.float32), jnp.zeros((B_PAD, H_LAT), jnp.float32),
         jnp.zeros((B_PAD, H_DEC), jnp.float32), jnp.zeros((B_PAD, H_DEC), jnp.float32)),
        unroll=True)

    # ---- output Linear: one matmul + one lane-dense contiguous store --------------
    y_ref[...] = (jnp.dot(hd_ref[...], w_out_ref[...],
                          preferred_element_type=jnp.float32) + b_out_ref[...])


# ------------------------------- wrapper -------------------------------------
def lstm_autoencoder_forward(x, p):
    """x: (B, T, F) float32 -> (B, T, F) float32."""
    B, T, F = x.shape
    assert B <= B_PAD and F <= F_PAD

    # time-major, batch padded to a full sublane tile, flattened to (T*B_PAD, F)
    x_tm = jnp.transpose(x, (1, 0, 2))                                 # (T, B, F)
    x_pad = jnp.zeros((T, B_PAD, F), jnp.float32).at[:, :B, :].set(x_tm)
    x_flat = x_pad.reshape(T * B_PAD, F)

    # lane-dense output layer: zero-pad W_out / b_out to 128 columns
    w_out = jnp.zeros((H_DEC, F_PAD), jnp.float32).at[:, :F].set(p["W_out"].T)
    b_out = jnp.zeros((1, F_PAD), jnp.float32).at[0, :F].set(p["b_out"])

    args = (
        x_flat,
        p["W_ih_e"].T, p["W_hh_e"].T, (p["b_ih_e"] + p["b_hh_e"])[None, :],
        p["W_ih_l"].T, p["W_hh_l"].T, (p["b_ih_l"] + p["b_hh_l"])[None, :],
        p["W_ih_d"].T, p["W_hh_d"].T, (p["b_ih_d"] + p["b_hh_d"])[None, :],
        w_out, b_out,
    )
    vmem = pl.BlockSpec(memory_space=pltpu.MemorySpace.VMEM)
    y_flat = pl.pallas_call(
        functools.partial(_autoencoder_kernel, T=T),
        out_shape=jax.ShapeDtypeStruct((T * B_PAD, F_PAD), jnp.float32),
        in_specs=[vmem] * len(args),
        out_specs=vmem,
        scratch_shapes=[pltpu.VMEM((T * B_PAD, 4 * H_ENC), jnp.float32),   # enc x-proj
                        pltpu.VMEM((T * B_PAD, H_DEC), jnp.float32)],      # dec hiddens
    )(*args)
    # drop batch padding and lane padding, back to batch_first (B, T, F)
    y = y_flat.reshape(T, B_PAD, F_PAD)[:, :B, :F]
    return jnp.transpose(y, (1, 0, 2))


# --------------------------- pure-JAX reference -------------------------------
def _ref_lstm(x, wih, whh, b_ih, b_hh, H):
    B = x.shape[0]

    def step(carry, x_t):
        h, c = carry
        gates = x_t @ wih.T + h @ whh.T + b_ih + b_hh
        i = jax.nn.sigmoid(gates[:, :H])
        f = jax.nn.sigmoid(gates[:, H:2 * H])
        g = jnp.tanh(gates[:, 2 * H:3 * H])
        o = jax.nn.sigmoid(gates[:, 3 * H:])
        c = f * c + i * g
        h = o * jnp.tanh(c)
        return (h, c), h

    (_, _), ys = lax.scan(step, (jnp.zeros((B, H)), jnp.zeros((B, H))),
                          jnp.transpose(x, (1, 0, 2)))
    return jnp.transpose(ys, (1, 0, 2))


def ref_forward(x, p):
    B, T, F = x.shape
    enc = _ref_lstm(x, p["W_ih_e"], p["W_hh_e"], p["b_ih_e"], p["b_hh_e"], H_ENC)
    rep = jnp.repeat(enc[:, -1:, :], T, axis=1)
    lat = _ref_lstm(rep, p["W_ih_l"], p["W_hh_l"], p["b_ih_l"], p["b_hh_l"], H_LAT)
    dec = _ref_lstm(lat, p["W_ih_d"], p["W_hh_d"], p["b_ih_d"], p["b_hh_d"], H_DEC)
    return dec @ p["W_out"].T + p["b_out"]


# ------------------------------ params ---------------------------------------
def init_params(key, num_features):
    F = num_features
    shapes = {
        "W_ih_e": ((4 * H_ENC, F), H_ENC), "W_hh_e": ((4 * H_ENC, H_ENC), H_ENC),
        "b_ih_e": ((4 * H_ENC,), H_ENC),   "b_hh_e": ((4 * H_ENC,), H_ENC),
        "W_ih_l": ((4 * H_LAT, H_ENC), H_LAT), "W_hh_l": ((4 * H_LAT, H_LAT), H_LAT),
        "b_ih_l": ((4 * H_LAT,), H_LAT),       "b_hh_l": ((4 * H_LAT,), H_LAT),
        "W_ih_d": ((4 * H_DEC, H_LAT), H_DEC), "W_hh_d": ((4 * H_DEC, H_DEC), H_DEC),
        "b_ih_d": ((4 * H_DEC,), H_DEC),       "b_hh_d": ((4 * H_DEC,), H_DEC),
        "W_out": ((F, H_DEC), H_DEC),          "b_out": ((F,), H_DEC),
    }
    keys = jax.random.split(key, len(shapes))
    params = {}
    for k, (name, (shape, h)) in zip(keys, shapes.items()):
        bound = 1.0 / (h ** 0.5)
        params[name] = jax.random.uniform(k, shape, jnp.float32, -bound, bound)
    return params


# -------------------------------- main ----------------------------------------
if __name__ == "__main__":
    B, T, F = 2, 8, 4        # batch, sequence_length, num_features
    key = jax.random.PRNGKey(0)
    kx, kp = jax.random.split(key)
    x = jax.random.normal(kx, (B, T, F), jnp.float32)
    params = init_params(kp, F)

    y = jax.block_until_ready(lstm_autoencoder_forward(x, params))
    y_ref = jax.block_until_ready(ref_forward(x, params))

    assert y.shape == (B, T, F)
    assert jnp.allclose(y, y_ref, atol=1e-4, rtol=1e-4), (
        f"max abs err {jnp.max(jnp.abs(y - y_ref))}")
    print("KERNEL_OK")
</pallas_src>

<mosaic_0001>
module attributes {stable_mosaic.version = 11 : i64} {
  func.func @_autoencoder_kernel(%arg0: memref<64x4xf32, #tpu.memory_space<vmem>>, %arg1: memref<4x256xf32, #tpu.memory_space<vmem>>, %arg2: memref<64x256xf32, #tpu.memory_space<vmem>>, %arg3: memref<1x256xf32, #tpu.memory_space<vmem>>, %arg4: memref<64x128xf32, #tpu.memory_space<vmem>>, %arg5: memref<32x128xf32, #tpu.memory_space<vmem>>, %arg6: memref<1x128xf32, #tpu.memory_space<vmem>>, %arg7: memref<32x256xf32, #tpu.memory_space<vmem>>, %arg8: memref<64x256xf32, #tpu.memory_space<vmem>>, %arg9: memref<1x256xf32, #tpu.memory_space<vmem>>, %arg10: memref<64x128xf32, #tpu.memory_space<vmem>>, %arg11: memref<1x128xf32, #tpu.memory_space<vmem>>, %arg12: memref<64x128xf32, #tpu.memory_space<vmem>>, %arg13: memref<64x256xf32, #tpu.memory_space<vmem>>, %arg14: memref<64x64xf32, #tpu.memory_space<vmem>>) attributes {dimension_semantics = [], scalar_prefetch = 0 : i64, scratch_operands = 2 : i64, tpu.core_type = #tpu.core_type<tc>} {
    %c0 = arith.constant 0 : index
    %c0_0 = arith.constant 0 : index
    %0 = vector.load %arg0[%c0, %c0_0] : memref<64x4xf32, #tpu.memory_space<vmem>>, vector<64x4xf32>
    %c0_1 = arith.constant 0 : index
    %c0_2 = arith.constant 0 : index
    %1 = vector.load %arg1[%c0_1, %c0_2] : memref<4x256xf32, #tpu.memory_space<vmem>>, vector<4x256xf32>
    %cst = arith.constant dense<0.000000e+00> : vector<64x256xf32>
    %2 = tpu.matmul %0, %1, %cst {dimension_numbers = #tpu.dot_dimension_numbers<[1], [0], [0], [1], [0, 0, 1, 1], [], []>} : vector<64x4xf32>, vector<4x256xf32>, vector<64x256xf32> -> vector<64x256xf32>
    %c0_3 = arith.constant 0 : index
    %c0_4 = arith.constant 0 : index
    %3 = vector.load %arg3[%c0_3, %c0_4] : memref<1x256xf32, #tpu.memory_space<vmem>>, vector<1x256xf32>
    %4 = vector.broadcast %3 : vector<1x256xf32> to vector<64x256xf32>
    %5 = arith.addf %2, %4 : vector<64x256xf32>
    %c0_5 = arith.constant 0 : index
    %c0_6 = arith.constant 0 : index
    %6 = vector.load %arg13[%c0_5, %c0_6] : memref<64x256xf32, #tpu.memory_space<vmem>>, vector<64x256xf32>
    tpu.vector_store %arg13[%c0_5, %c0_6], %5 {strides = array<i32>} : memref<64x256xf32, #tpu.memory_space<vmem>>, vector<64x256xf32>,
    %cst_7 = arith.constant 0.000000e+00 : f32
    %7 = vector.broadcast %cst_7 : f32 to vector<8x64xf32>
    %cst_8 = arith.constant 0.000000e+00 : f32
    %8 = vector.broadcast %cst_8 : f32 to vector<8x64xf32>
    %c0_i32 = arith.constant 0 : i32
    %c8_i32 = arith.constant 8 : i32
    %9 = arith.muli %c0_i32, %c8_i32 : i32
    %10 = tpu.assume_multiple %9, 8 : i32
    %c0_9 = arith.constant 0 : index
    %c0_10 = arith.constant 0 : index
    %11 = vector.load %arg2[%c0_9, %c0_10] : memref<64x256xf32, #tpu.memory_space<vmem>>, vector<64x256xf32>
    %cst_11 = arith.constant dense<0.000000e+00> : vector<8x256xf32>
    %12 = tpu.matmul %7, %11, %cst_11 {dimension_numbers = #tpu.dot_dimension_numbers<[1], [0], [0], [1], [0, 0, 1, 1], [], []>} : vector<8x64xf32>, vector<64x256xf32>, vector<8x256xf32> -> vector<8x256xf32>
    %13 = arith.index_cast %10 : i32 to index
    %c0_12 = arith.constant 0 : index
    %14 = vector.load %arg13[%13, %c0_12] : memref<64x256xf32, #tpu.memory_space<vmem>>, vector<8x256xf32>
    %15 = arith.addf %12, %14 : vector<8x256xf32>
    %16 = vector.extract_strided_slice %15 {offsets = [0, 0], sizes = [8, 128], strides = [1, 1]} : vector<8x256xf32> to vector<8x128xf32>
    %17 = arith.negf %16 : vector<8x128xf32>
    %18 = math.exp %17 : vector<8x128xf32>
    %cst_13 = arith.constant 1.000000e+00 : f32
    %19 = vector.broadcast %cst_13 : f32 to vector<8x128xf32>
    %20 = arith.addf %19, %18 : vector<8x128xf32>
    %21 = arith.divf %19, %20 : vector<8x128xf32>
    %22 = vector.extract_strided_slice %21 {offsets = [0, 0], sizes = [8, 64], strides = [1, 1]} : vector<8x128xf32> to vector<8x64xf32>
    %23 = vector.extract_strided_slice %21 {offsets = [0, 64], sizes = [8, 64], strides = [1, 1]} : vector<8x128xf32> to vector<8x64xf32>
    %24 = vector.extract_strided_slice %15 {offsets = [0, 128], sizes = [8, 64], strides = [1, 1]} : vector<8x256xf32> to vector<8x64xf32>
    %25 = math.tanh %24 : vector<8x64xf32>
    %26 = arith.mulf %23, %8 : vector<8x64xf32>
    %27 = arith.mulf %22, %25 : vector<8x64xf32>
    %28 = arith.addf %26, %27 : vector<8x64xf32>
    %29 = vector.extract_strided_slice %15 {offsets = [0, 192], sizes = [8, 64], strides = [1, 1]} : vector<8x256xf32> to vector<8x64xf32>
    %30 = arith.negf %29 : vector<8x64xf32>
    %31 = math.exp %30 : vector<8x64xf32>
    %cst_14 = arith.constant 1.000000e+00 : f32
    %32 = vector.broadcast %cst_14 : f32 to vector<8x64xf32>
    %33 = arith.addf %32, %31 : vector<8x64xf32>
    %34 = arith.divf %32, %33 : vector<8x64xf32>
    %35 = math.tanh %28 : vector<8x64xf32>
    %36 = arith.mulf %34, %35 : vector<8x64xf32>
    %c1_i32 = arith.constant 1 : i32
    %c8_i32_15 = arith.constant 8 : i32
    %37 = arith.muli %c1_i32, %c8_i32_15 : i32
    %38 = tpu.assume_multiple %37, 8 : i32
    %c0_16 = arith.constant 0 : index
    %c0_17 = arith.constant 0 : index
    %39 = vector.load %arg2[%c0_16, %c0_17] : memref<64x256xf32, #tpu.memory_space<vmem>>, vector<64x256xf32>
    %cst_18 = arith.constant dense<0.000000e+00> : vector<8x256xf32>
    %40 = tpu.matmul %36, %39, %cst_18 {dimension_numbers = #tpu.dot_dimension_numbers<[1], [0], [0], [1], [0, 0, 1, 1], [], []>} : vector<8x64xf32>, vector<64x256xf32>, vector<8x256xf32> -> vector<8x256xf32>
    %41 = arith.index_cast %38 : i32 to index
    %c0_19 = arith.constant 0 : index
    %42 = vector.load %arg13[%41, %c0_19] : memref<64x256xf32, #tpu.memory_space<vmem>>, vector<8x256xf32>
    %43 = arith.addf %40, %42 : vector<8x256xf32>
    %44 = vector.extract_strided_slice %43 {offsets = [0, 0], sizes = [8, 128], strides = [1, 1]} : vector<8x256xf32> to vector<8x128xf32>
    %45 = arith.negf %44 : vector<8x128xf32>
    %46 = math.exp %45 : vector<8x128xf32>
    %cst_20 = arith.constant 1.000000e+00 : f32
    %47 = vector.broadcast %cst_20 : f32 to vector<8x128xf32>
    %48 = arith.addf %47, %46 : vector<8x128xf32>
    %49 = arith.divf %47, %48 : vector<8x128xf32>
    %50 = vector.extract_strided_slice %49 {offsets = [0, 0], sizes = [8, 64], strides = [1, 1]} : vector<8x128xf32> to vector<8x64xf32>
    %51 = vector.extract_strided_slice %49 {offsets = [0, 64], sizes = [8, 64], strides = [1, 1]} : vector<8x128xf32> to vector<8x64xf32>
    %52 = vector.extract_strided_slice %43 {offsets = [0, 128], sizes = [8, 64], strides = [1, 1]} : vector<8x256xf32> to vector<8x64xf32>
    %53 = math.tanh %52 : vector<8x64xf32>
    %54 = arith.mulf %51, %28 : vector<8x64xf32>
    %55 = arith.mulf %50, %53 : vector<8x64xf32>
    %56 = arith.addf %54, %55 : vector<8x64xf32>
    %57 = vector.extract_strided_slice %43 {offsets = [0, 192], sizes = [8, 64], strides = [1, 1]} : vector<8x256xf32> to vector<8x64xf32>
    %58 = arith.negf %57 : vector<8x64xf32>
    %59 = math.exp %58 : vector<8x64xf32>
    %cst_21 = arith.constant 1.000000e+00 : f32
    %60 = vector.broadcast %cst_21 : f32 to vector<8x64xf32>
    %61 = arith.addf %60, %59 : vector<8x64xf32>
    %62 = arith.divf %60, %61 : vector<8x64xf32>
    %63 = math.tanh %56 : vector<8x64xf32>
    %64 = arith.mulf %62, %63 : vector<8x64xf32>
    %c2_i32 = arith.constant 2 : i32
    %c8_i32_22 = arith.constant 8 : i32
    %65 = arith.muli %c2_i32, %c8_i32_22 : i32
    %66 = tpu.assume_multiple %65, 8 : i32
    %c0_23 = arith.constant 0 : index
    %c0_24 = arith.constant 0 : index
    %67 = vector.load %arg2[%c0_23, %c0_24] : memref<64x256xf32, #tpu.memory_space<vmem>>, vector<64x256xf32>
    %cst_25 = arith.constant dense<0.000000e+00> : vector<8x256xf32>
    %68 = tpu.matmul %64, %67, %cst_25 {dimension_numbers = #tpu.dot_dimension_numbers<[1], [0], [0], [1], [0, 0, 1, 1], [], []>} : vector<8x64xf32>, vector<64x256xf32>, vector<8x256xf32> -> vector<8x256xf32>
    %69 = arith.index_cast %66 : i32 to index
    %c0_26 = arith.constant 0 : index
    %70 = vector.load %arg13[%69, %c0_26] : memref<64x256xf32, #tpu.memory_space<vmem>>, vector<8x256xf32>
    %71 = arith.addf %68, %70 : vector<8x256xf32>
    %72 = vector.extract_strided_slice %71 {offsets = [0, 0], sizes = [8, 128], strides = [1, 1]} : vector<8x256xf32> to vector<8x128xf32>
    %73 = arith.negf %72 : vector<8x128xf32>
    %74 = math.exp %73 : vector<8x128xf32>
    %cst_27 = arith.constant 1.000000e+00 : f32
    %75 = vector.broadcast %cst_27 : f32 to vector<8x128xf32>
    %76 = arith.addf %75, %74 : vector<8x128xf32>
    %77 = arith.divf %75, %76 : vector<8x128xf32>
    %78 = vector.extract_strided_slice %77 {offsets = [0, 0], sizes = [8, 64], strides = [1, 1]} : vector<8x128xf32> to vector<8x64xf32>
    %79 = vector.extract_strided_slice %77 {offsets = [0, 64], sizes = [8, 64], strides = [1, 1]} : vector<8x128xf32> to vector<8x64xf32>
    %80 = vector.extract_strided_slice %71 {offsets = [0, 128], sizes = [8, 64], strides = [1, 1]} : vector<8x256xf32> to vector<8x64xf32>
    %81 = math.tanh %80 : vector<8x64xf32>
    %82 = arith.mulf %79, %56 : vector<8x64xf32>
    %83 = arith.mulf %78, %81 : vector<8x64xf32>
    %84 = arith.addf %82, %83 : vector<8x64xf32>
    %85 = vector.extract_strided_slice %71 {offsets = [0, 192], sizes = [8, 64], strides = [1, 1]} : vector<8x256xf32> to vector<8x64xf32>
    %86 = arith.negf %85 : vector<8x64xf32>
    %87 = math.exp %86 : vector<8x64xf32>
    %cst_28 = arith.constant 1.000000e+00 : f32
    %88 = vector.broadcast %cst_28 : f32 to vector<8x64xf32>
    %89 = arith.addf %88, %87 : vector<8x64xf32>
    %90 = arith.divf %88, %89 : vector<8x64xf32>
    %91 = math.tanh %84 : vector<8x64xf32>
    %92 = arith.mulf %90, %91 : vector<8x64xf32>
    %c3_i32 = arith.constant 3 : i32
    %c8_i32_29 = arith.constant 8 : i32
    %93 = arith.muli %c3_i32, %c8_i32_29 : i32
    %94 = tpu.assume_multiple %93, 8 : i32
    %c0_30 = arith.constant 0 : index
    %c0_31 = arith.constant 0 : index
    %95 = vector.load %arg2[%c0_30, %c0_31] : memref<64x256xf32, #tpu.memory_space<vmem>>, vector<64x256xf32>
    %cst_32 = arith.constant dense<0.000000e+00> : vector<8x256xf32>
    %96 = tpu.matmul %92, %95, %cst_32 {dimension_numbers = #tpu.dot_dimension_numbers<[1], [0], [0], [1], [0, 0, 1, 1], [], []>} : vector<8x64xf32>, vector<64x256xf32>, vector<8x256xf32> -> vector<8x256xf32>
    %97 = arith.index_cast %94 : i32 to index
    %c0_33 = arith.constant 0 : index
    %98 = vector.load %arg13[%97, %c0_33] : memref<64x256xf32, #tpu.memory_space<vmem>>, vector<8x256xf32>
    %99 = arith.addf %96, %98 : vector<8x256xf32>
    %100 = vector.extract_strided_slice %99 {offsets = [0, 0], sizes = [8, 128], strides = [1, 1]} : vector<8x256xf32> to vector<8x128xf32>
    %101 = arith.negf %100 : vector<8x128xf32>
    %102 = math.exp %101 : vector<8x128xf32>
    %cst_34 = arith.constant 1.000000e+00 : f32
    %103 = vector.broadcast %cst_34 : f32 to vector<8x128xf32>
    %104 = arith.addf %103, %102 : vector<8x128xf32>
    %105 = arith.divf %103, %104 : vector<8x128xf32>
    %106 = vector.extract_strided_slice %105 {offsets = [0, 0], sizes = [8, 64], strides = [1, 1]} : vector<8x128xf32> to vector<8x64xf32>
    %107 = vector.extract_strided_slice %105 {offsets = [0, 64], sizes = [8, 64], strides = [1, 1]} : vector<8x128xf32> to vector<8x64xf32>
    %108 = vector.extract_strided_slice %99 {offsets = [0, 128], sizes = [8, 64], strides = [1, 1]} : vector<8x256xf32> to vector<8x64xf32>
    %109 = math.tanh %108 : vector<8x64xf32>
    %110 = arith.mulf %107, %84 : vector<8x64xf32>
    %111 = arith.mulf %106, %109 : vector<8x64xf32>
    %112 = arith.addf %110, %111 : vector<8x64xf32>
    %113 = vector.extract_strided_slice %99 {offsets = [0, 192], sizes = [8, 64], strides = [1, 1]} : vector<8x256xf32> to vector<8x64xf32>
    %114 = arith.negf %113 : vector<8x64xf32>
    %115 = math.exp %114 : vector<8x64xf32>
    %cst_35 = arith.constant 1.000000e+00 : f32
    %116 = vector.broadcast %cst_35 : f32 to vector<8x64xf32>
    %117 = arith.addf %116, %115 : vector<8x64xf32>
    %118 = arith.divf %116, %117 : vector<8x64xf32>
    %119 = math.tanh %112 : vector<8x64xf32>
    %120 = arith.mulf %118, %119 : vector<8x64xf32>
    %c4_i32 = arith.constant 4 : i32
    %c8_i32_36 = arith.constant 8 : i32
    %121 = arith.muli %c4_i32, %c8_i32_36 : i32
    %122 = tpu.assume_multiple %121, 8 : i32
    %c0_37 = arith.constant 0 : index
    %c0_38 = arith.constant 0 : index
    %123 = vector.load %arg2[%c0_37, %c0_38] : memref<64x256xf32, #tpu.memory_space<vmem>>, vector<64x256xf32>
    %cst_39 = arith.constant dense<0.000000e+00> : vector<8x256xf32>
    %124 = tpu.matmul %120, %123, %cst_39 {dimension_numbers = #tpu.dot_dimension_numbers<[1], [0], [0], [1], [0, 0, 1, 1], [], []>} : vector<8x64xf32>, vector<64x256xf32>, vector<8x256xf32> -> vector<8x256xf32>
    %125 = arith.index_cast %122 : i32 to index
    %c0_40 = arith.constant 0 : index
    %126 = vector.load %arg13[%125, %c0_40] : memref<64x256xf32, #tpu.memory_space<vmem>>, vector<8x256xf32>
    %127 = arith.addf %124, %126 : vector<8x256xf32>
    %128 = vector.extract_strided_slice %127 {offsets = [0, 0], sizes = [8, 128], strides = [1, 1]} : vector<8x256xf32> to vector<8x128xf32>
    %129 = arith.negf %128 : vector<8x128xf32>
    %130 = math.exp %129 : vector<8x128xf32>
    %cst_41 = arith.constant 1.000000e+00 : f32
    %131 = vector.broadcast %cst_41 : f32 to vector<8x128xf32>
    %132 = arith.addf %131, %130 : vector<8x128xf32>
    %133 = arith.divf %131, %132 : vector<8x128xf32>
    %134 = vector.extract_strided_slice %133 {offsets = [0, 0], sizes = [8, 64], strides = [1, 1]} : vector<8x128xf32> to vector<8x64xf32>
    %135 = vector.extract_strided_slice %133 {offsets = [0, 64], sizes = [8, 64], strides = [1, 1]} : vector<8x128xf32> to vector<8x64xf32>
    %136 = vector.extract_strided_slice %127 {offsets = [0, 128], sizes = [8, 64], strides = [1, 1]} : vector<8x256xf32> to vector<8x64xf32>
    %137 = math.tanh %136 : vector<8x64xf32>
    %138 = arith.mulf %135, %112 : vector<8x64xf32>
    %139 = arith.mulf %134, %137 : vector<8x64xf32>
    %140 = arith.addf %138, %139 : vector<8x64xf32>
    %141 = vector.extract_strided_slice %127 {offsets = [0, 192], sizes = [8, 64], strides = [1, 1]} : vector<8x256xf32> to vector<8x64xf32>
    %142 = arith.negf %141 : vector<8x64xf32>
    %143 = math.exp %142 : vector<8x64xf32>
    %cst_42 = arith.constant 1.000000e+00 : f32
    %144 = vector.broadcast %cst_42 : f32 to vector<8x64xf32>
    %145 = arith.addf %144, %143 : vector<8x64xf32>
    %146 = arith.divf %144, %145 : vector<8x64xf32>
    %147 = math.tanh %140 : vector<8x64xf32>
    %148 = arith.mulf %146, %147 : vector<8x64xf32>
    %c5_i32 = arith.constant 5 : i32
    %c8_i32_43 = arith.constant 8 : i32
    %149 = arith.muli %c5_i32, %c8_i32_43 : i32
    %150 = tpu.assume_multiple %149, 8 : i32
    %c0_44 = arith.constant 0 : index
    %c0_45 = arith.constant 0 : index
    %151 = vector.load %arg2[%c0_44, %c0_45] : memref<64x256xf32, #tpu.memory_space<vmem>>, vector<64x256xf32>
    %cst_46 = arith.constant dense<0.000000e+00> : vector<8x256xf32>
    %152 = tpu.matmul %148, %151, %cst_46 {dimension_numbers = #tpu.dot_dimension_numbers<[1], [0], [0], [1], [0, 0, 1, 1], [], []>} : vector<8x64xf32>, vector<64x256xf32>, vector<8x256xf32> -> vector<8x256xf32>
    %153 = arith.index_cast %150 : i32 to index
    %c0_47 = arith.constant 0 : index
    %154 = vector.load %arg13[%153, %c0_47] : memref<64x256xf32, #tpu.memory_space<vmem>>, vector<8x256xf32>
    %155 = arith.addf %152, %154 : vector<8x256xf32>
    %156 = vector.extract_strided_slice %155 {offsets = [0, 0], sizes = [8, 128], strides = [1, 1]} : vector<8x256xf32> to vector<8x128xf32>
    %157 = arith.negf %156 : vector<8x128xf32>
    %158 = math.exp %157 : vector<8x128xf32>
    %cst_48 = arith.constant 1.000000e+00 : f32
    %159 = vector.broadcast %cst_48 : f32 to vector<8x128xf32>
    %160 = arith.addf %159, %158 : vector<8x128xf32>
    %161 = arith.divf %159, %160 : vector<8x128xf32>
    %162 = vector.extract_strided_slice %161 {offsets = [0, 0], sizes = [8, 64], strides = [1, 1]} : vector<8x128xf32> to vector<8x64xf32>
    %163 = vector.extract_strided_slice %161 {offsets = [0, 64], sizes = [8, 64], strides = [1, 1]} : vector<8x128xf32> to vector<8x64xf32>
    %164 = vector.extract_strided_slice %155 {offsets = [0, 128], sizes = [8, 64], strides = [1, 1]} : vector<8x256xf32> to vector<8x64xf32>
    %165 = math.tanh %164 : vector<8x64xf32>
    %166 = arith.mulf %163, %140 : vector<8x64xf32>
    %167 = arith.mulf %162, %165 : vector<8x64xf32>
    %168 = arith.addf %166, %167 : vector<8x64xf32>
    %169 = vector.extract_strided_slice %155 {offsets = [0, 192], sizes = [8, 64], strides = [1, 1]} : vector<8x256xf32> to vector<8x64xf32>
    %170 = arith.negf %169 : vector<8x64xf32>
    %171 = math.exp %170 : vector<8x64xf32>
    %cst_49 = arith.constant 1.000000e+00 : f32
    %172 = vector.broadcast %cst_49 : f32 to vector<8x64xf32>
    %173 = arith.addf %172, %171 : vector<8x64xf32>
    %174 = arith.divf %172, %173 : vector<8x64xf32>
    %175 = math.tanh %168 : vector<8x64xf32>
    %176 = arith.mulf %174, %175 : vector<8x64xf32>
    %c6_i32 = arith.constant 6 : i32
    %c8_i32_50 = arith.constant 8 : i32
    %177 = arith.muli %c6_i32, %c8_i32_50 : i32
    %178 = tpu.assume_multiple %177, 8 : i32
    %c0_51 = arith.constant 0 : index
    %c0_52 = arith.constant 0 : index
    %179 = vector.load %arg2[%c0_51, %c0_52] : memref<64x256xf32, #tpu.memory_space<vmem>>, vector<64x256xf32>
    %cst_53 = arith.constant dense<0.000000e+00> : vector<8x256xf32>
    %180 = tpu.matmul %176, %179, %cst_53 {dimension_numbers = #tpu.dot_dimension_numbers<[1], [0], [0], [1], [0, 0, 1, 1], [], []>} : vector<8x64xf32>, vector<64x256xf32>, vector<8x256xf32> -> vector<8x256xf32>
    %181 = arith.index_cast %178 : i32 to index
    %c0_54 = arith.constant 0 : index
    %182 = vector.load %arg13[%181, %c0_54] : memref<64x256xf32, #tpu.memory_space<vmem>>, vector<8x256xf32>
    %183 = arith.addf %180, %182 : vector<8x256xf32>
    %184 = vector.extract_strided_slice %183 {offsets = [0, 0], sizes = [8, 128], strides = [1, 1]} : vector<8x256xf32> to vector<8x128xf32>
    %185 = arith.negf %184 : vector<8x128xf32>
    %186 = math.exp %185 : vector<8x128xf32>
    %cst_55 = arith.constant 1.000000e+00 : f32
    %187 = vector.broadcast %cst_55 : f32 to vector<8x128xf32>
    %188 = arith.addf %187, %186 : vector<8x128xf32>
    %189 = arith.divf %187, %188 : vector<8x128xf32>
    %190 = vector.extract_strided_slice %189 {offsets = [0, 0], sizes = [8, 64], strides = [1, 1]} : vector<8x128xf32> to vector<8x64xf32>
    %191 = vector.extract_strided_slice %189 {offsets = [0, 64], sizes = [8, 64], strides = [1, 1]} : vector<8x128xf32> to vector<8x64xf32>
    %192 = vector.extract_strided_slice %183 {offsets = [0, 128], sizes = [8, 64], strides = [1, 1]} : vector<8x256xf32> to vector<8x64xf32>
    %193 = math.tanh %192 : vector<8x64xf32>
    %194 = arith.mulf %191, %168 : vector<8x64xf32>
    %195 = arith.mulf %190, %193 : vector<8x64xf32>
    %196 = arith.addf %194, %195 : vector<8x64xf32>
    %197 = vector.extract_strided_slice %183 {offsets = [0, 192], sizes = [8, 64], strides = [1, 1]} : vector<8x256xf32> to vector<8x64xf32>
    %198 = arith.negf %197 : vector<8x64xf32>
    %199 = math.exp %198 : vector<8x64xf32>
    %cst_56 = arith.constant 1.000000e+00 : f32
    %200 = vector.broadcast %cst_56 : f32 to vector<8x64xf32>
    %201 = arith.addf %200, %199 : vector<8x64xf32>
    %202 = arith.divf %200, %201 : vector<8x64xf32>
    %203 = math.tanh %196 : vector<8x64xf32>
    %204 = arith.mulf %202, %203 : vector<8x64xf32>
    %c7_i32 = arith.constant 7 : i32
    %c8_i32_57 = arith.constant 8 : i32
    %205 = arith.muli %c7_i32, %c8_i32_57 : i32
    %206 = tpu.assume_multiple %205, 8 : i32
    %c0_58 = arith.constant 0 : index
    %c0_59 = arith.constant 0 : index
    %207 = vector.load %arg2[%c0_58, %c0_59] : memref<64x256xf32, #tpu.memory_space<vmem>>, vector<64x256xf32>
    %cst_60 = arith.constant dense<0.000000e+00> : vector<8x256xf32>
    %208 = tpu.matmul %204, %207, %cst_60 {dimension_numbers = #tpu.dot_dimension_numbers<[1], [0], [0], [1], [0, 0, 1, 1], [], []>} : vector<8x64xf32>, vector<64x256xf32>, vector<8x256xf32> -> vector<8x256xf32>
    %209 = arith.index_cast %206 : i32 to index
    %c0_61 = arith.constant 0 : index
    %210 = vector.load %arg13[%209, %c0_61] : memref<64x256xf32, #tpu.memory_space<vmem>>, vector<8x256xf32>
    %211 = arith.addf %208, %210 : vector<8x256xf32>
    %212 = vector.extract_strided_slice %211 {offsets = [0, 0], sizes = [8, 128], strides = [1, 1]} : vector<8x256xf32> to vector<8x128xf32>
    %213 = arith.negf %212 : vector<8x128xf32>
    %214 = math.exp %213 : vector<8x128xf32>
    %cst_62 = arith.constant 1.000000e+00 : f32
    %215 = vector.broadcast %cst_62 : f32 to vector<8x128xf32>
    %216 = arith.addf %215, %214 : vector<8x128xf32>
    %217 = arith.divf %215, %216 : vector<8x128xf32>
    %218 = vector.extract_strided_slice %217 {offsets = [0, 0], sizes = [8, 64], strides = [1, 1]} : vector<8x128xf32> to vector<8x64xf32>
    %219 = vector.extract_strided_slice %217 {offsets = [0, 64], sizes = [8, 64], strides = [1, 1]} : vector<8x128xf32> to vector<8x64xf32>
    %220 = vector.extract_strided_slice %211 {offsets = [0, 128], sizes = [8, 64], strides = [1, 1]} : vector<8x256xf32> to vector<8x64xf32>
    %221 = math.tanh %220 : vector<8x64xf32>
    %222 = arith.mulf %219, %196 : vector<8x64xf32>
    %223 = arith.mulf %218, %221 : vector<8x64xf32>
    %224 = arith.addf %222, %223 : vector<8x64xf32>
    %225 = vector.extract_strided_slice %211 {offsets = [0, 192], sizes = [8, 64], strides = [1, 1]} : vector<8x256xf32> to vector<8x64xf32>
    %226 = arith.negf %225 : vector<8x64xf32>
    %227 = math.exp %226 : vector<8x64xf32>
    %cst_63 = arith.constant 1.000000e+00 : f32
    %228 = vector.broadcast %cst_63 : f32 to vector<8x64xf32>
    %229 = arith.addf %228, %227 : vector<8x64xf32>
    %230 = arith.divf %228, %229 : vector<8x64xf32>
    %231 = math.tanh %224 : vector<8x64xf32>
    %232 = arith.mulf %230, %231 : vector<8x64xf32>
    %c8_i32_64 = arith.constant 8 : i32
    %c0_65 = arith.constant 0 : index
    %c0_66 = arith.constant 0 : index
    %233 = vector.load %arg4[%c0_65, %c0_66] : memref<64x128xf32, #tpu.memory_space<vmem>>, vector<64x128xf32>
    %cst_67 = arith.constant dense<0.000000e+00> : vector<8x128xf32>
    %234 = tpu.matmul %232, %233, %cst_67 {dimension_numbers = #tpu.dot_dimension_numbers<[1], [0], [0], [1], [0, 0, 1, 1], [], []>} : vector<8x64xf32>, vector<64x128xf32>, vector<8x128xf32> -> vector<8x128xf32>
    %c0_68 = arith.constant 0 : index
    %c0_69 = arith.constant 0 : index
    %235 = vector.load %arg6[%c0_68, %c0_69] : memref<1x128xf32, #tpu.memory_space<vmem>>, vector<1x128xf32>
    %236 = vector.broadcast %235 : vector<1x128xf32> to vector<8x128xf32>
    %237 = arith.addf %234, %236 : vector<8x128xf32>
    %c0_70 = arith.constant 0 : index
    %c0_71 = arith.constant 0 : index
    %238 = vector.load %arg9[%c0_70, %c0_71] : memref<1x256xf32, #tpu.memory_space<vmem>>, vector<1x256xf32>
    %239 = vector.shape_cast %238 : vector<1x256xf32> to vector<1x256xf32>
    %240 = vector.broadcast %239 : vector<1x256xf32> to vector<8x256xf32>
    %cst_72 = arith.constant 0.000000e+00 : f32
    %241 = vector.broadcast %cst_72 : f32 to vector<8x32xf32>
    %cst_73 = arith.constant 0.000000e+00 : f32
    %242 = vector.broadcast %cst_73 : f32 to vector<8x32xf32>
    %cst_74 = arith.constant 0.000000e+00 : f32
    %243 = vector.broadcast %cst_74 : f32 to vector<8x64xf32>
    %cst_75 = arith.constant 0.000000e+00 : f32
    %244 = vector.broadcast %cst_75 : f32 to vector<8x64xf32>
    %c0_i32_76 = arith.constant 0 : i32
    %c0_77 = arith.constant 0 : index
    %c0_78 = arith.constant 0 : index
    %245 = vector.load %arg8[%c0_77, %c0_78] : memref<64x256xf32, #tpu.memory_space<vmem>>, vector<64x256xf32>
    %cst_79 = arith.constant dense<0.000000e+00> : vector<8x256xf32>
    %246 = tpu.matmul %243, %245, %cst_79 {dimension_numbers = #tpu.dot_dimension_numbers<[1], [0], [0], [1], [0, 0, 1, 1], [], []>} : vector<8x64xf32>, vector<64x256xf32>, vector<8x256xf32> -> vector<8x256xf32>
    %c0_80 = arith.constant 0 : index
    %c0_81 = arith.constant 0 : index
    %247 = vector.load %arg5[%c0_80, %c0_81] : memref<32x128xf32, #tpu.memory_space<vmem>>, vector<32x128xf32>
    %cst_82 = arith.constant dense<0.000000e+00> : vector<8x128xf32>
    %248 = tpu.matmul %241, %247, %cst_82 {dimension_numbers = #tpu.dot_dimension_numbers<[1], [0], [0], [1], [0, 0, 1, 1], [], []>} : vector<8x32xf32>, vector<32x128xf32>, vector<8x128xf32> -> vector<8x128xf32>
    %249 = arith.addf %248, %237 : vector<8x128xf32>
    %250 = vector.extract_strided_slice %249 {offsets = [0, 0], sizes = [8, 64], strides = [1, 1]} : vector<8x128xf32> to vector<8x64xf32>
    %251 = arith.negf %250 : vector<8x64xf32>
    %252 = math.exp %251 : vector<8x64xf32>
    %cst_83 = arith.constant 1.000000e+00 : f32
    %253 = vector.broadcast %cst_83 : f32 to vector<8x64xf32>
    %254 = arith.addf %253, %252 : vector<8x64xf32>
    %255 = arith.divf %253, %254 : vector<8x64xf32>
    %256 = vector.extract_strided_slice %255 {offsets = [0, 0], sizes = [8, 32], strides = [1, 1]} : vector<8x64xf32> to vector<8x32xf32>
    %257 = vector.extract_strided_slice %255 {offsets = [0, 32], sizes = [8, 32], strides = [1, 1]} : vector<8x64xf32> to vector<8x32xf32>
    %258 = vector.extract_strided_slice %249 {offsets = [0, 64], sizes = [8, 32], strides = [1, 1]} : vector<8x128xf32> to vector<8x32xf32>
    %259 = math.tanh %258 : vector<8x32xf32>
    %260 = arith.mulf %257, %242 : vector<8x32xf32>
    %261 = arith.mulf %256, %259 : vector<8x32xf32>
    %262 = arith.addf %260, %261 : vector<8x32xf32>
    %263 = vector.extract_strided_slice %249 {offsets = [0, 96], sizes = [8, 32], strides = [1, 1]} : vector<8x128xf32> to vector<8x32xf32>
    %264 = arith.negf %263 : vector<8x32xf32>
    %265 = math.exp %264 : vector<8x32xf32>
    %cst_84 = arith.constant 1.000000e+00 : f32
    %266 = vector.broadcast %cst_84 : f32 to vector<8x32xf32>
    %267 = arith.addf %266, %265 : vector<8x32xf32>
    %268 = arith.divf %266, %267 : vector<8x32xf32>
    %269 = math.tanh %262 : vector<8x32xf32>
    %270 = arith.mulf %268, %269 : vector<8x32xf32>
    %c0_85 = arith.constant 0 : index
    %c0_86 = arith.constant 0 : index
    %271 = vector.load %arg7[%c0_85, %c0_86] : memref<32x256xf32, #tpu.memory_space<vmem>>, vector<32x256xf32>
    %cst_87 = arith.constant dense<0.000000e+00> : vector<8x256xf32>
    %272 = tpu.matmul %270, %271, %cst_87 {dimension_numbers = #tpu.dot_dimension_numbers<[1], [0], [0], [1], [0, 0, 1, 1], [], []>} : vector<8x32xf32>, vector<32x256xf32>, vector<8x256xf32> -> vector<8x256xf32>
    %273 = arith.addf %246, %272 : vector<8x256xf32>
    %274 = arith.addf %273, %240 : vector<8x256xf32>
    %275 = vector.extract_strided_slice %274 {offsets = [0, 0], sizes = [8, 128], strides = [1, 1]} : vector<8x256xf32> to vector<8x128xf32>
    %276 = arith.negf %275 : vector<8x128xf32>
    %277 = math.exp %276 : vector<8x128xf32>
    %cst_88 = arith.constant 1.000000e+00 : f32
    %278 = vector.broadcast %cst_88 : f32 to vector<8x128xf32>
    %279 = arith.addf %278, %277 : vector<8x128xf32>
    %280 = arith.divf %278, %279 : vector<8x128xf32>
    %281 = vector.extract_strided_slice %280 {offsets = [0, 0], sizes = [8, 64], strides = [1, 1]} : vector<8x128xf32> to vector<8x64xf32>
    %282 = vector.extract_strided_slice %280 {offsets = [0, 64], sizes = [8, 64], strides = [1, 1]} : vector<8x128xf32> to vector<8x64xf32>
    %283 = vector.extract_strided_slice %274 {offsets = [0, 128], sizes = [8, 64], strides = [1, 1]} : vector<8x256xf32> to vector<8x64xf32>
    %284 = math.tanh %283 : vector<8x64xf32>
    %285 = arith.mulf %282, %244 : vector<8x64xf32>
    %286 = arith.mulf %281, %284 : vector<8x64xf32>
    %287 = arith.addf %285, %286 : vector<8x64xf32>
    %288 = vector.extract_strided_slice %274 {offsets = [0, 192], sizes = [8, 64], strides = [1, 1]} : vector<8x256xf32> to vector<8x64xf32>
    %289 = arith.negf %288 : vector<8x64xf32>
    %290 = math.exp %289 : vector<8x64xf32>
    %cst_89 = arith.constant 1.000000e+00 : f32
    %291 = vector.broadcast %cst_89 : f32 to vector<8x64xf32>
    %292 = arith.addf %291, %290 : vector<8x64xf32>
    %293 = arith.divf %291, %292 : vector<8x64xf32>
    %294 = math.tanh %287 : vector<8x64xf32>
    %295 = arith.mulf %293, %294 : vector<8x64xf32>
    %c8_i32_90 = arith.constant 8 : i32
    %296 = arith.muli %c0_i32_76, %c8_i32_90 : i32
    %297 = tpu.assume_multiple %296, 8 : i32
    %298 = arith.index_cast %297 : i32 to index
    %c0_91 = arith.constant 0 : index
    %299 = vector.load %arg14[%298, %c0_91] : memref<64x64xf32, #tpu.memory_space<vmem>>, vector<8x64xf32>
    tpu.vector_store %arg14[%298, %c0_91], %295 {strides = array<i32>} : memref<64x64xf32, #tpu.memory_space<vmem>>, vector<8x64xf32>,
    %c1_i32_92 = arith.constant 1 : i32
    %c0_93 = arith.constant 0 : index
    %c0_94 = arith.constant 0 : index
    %300 = vector.load %arg8[%c0_93, %c0_94] : memref<64x256xf32, #tpu.memory_space<vmem>>, vector<64x256xf32>
    %cst_95 = arith.constant dense<0.000000e+00> : vector<8x256xf32>
    %301 = tpu.matmul %295, %300, %cst_95 {dimension_numbers = #tpu.dot_dimension_numbers<[1], [0], [0], [1], [0, 0, 1, 1], [], []>} : vector<8x64xf32>, vector<64x256xf32>, vector<8x256xf32> -> vector<8x256xf32>
    %c0_96 = arith.constant 0 : index
    %c0_97 = arith.constant 0 : index
    %302 = vector.load %arg5[%c0_96, %c0_97] : memref<32x128xf32, #tpu.memory_space<vmem>>, vector<32x128xf32>
    %cst_98 = arith.constant dense<0.000000e+00> : vector<8x128xf32>
    %303 = tpu.matmul %270, %302, %cst_98 {dimension_numbers = #tpu.dot_dimension_numbers<[1], [0], [0], [1], [0, 0, 1, 1], [], []>} : vector<8x32xf32>, vector<32x128xf32>, vector<8x128xf32> -> vector<8x128xf32>
    %304 = arith.addf %303, %237 : vector<8x128xf32>
    %305 = vector.extract_strided_slice %304 {offsets = [0, 0], sizes = [8, 64], strides = [1, 1]} : vector<8x128xf32> to vector<8x64xf32>
    %306 = arith.negf %305 : vector<8x64xf32>
    %307 = math.exp %306 : vector<8x64xf32>
    %cst_99 = arith.constant 1.000000e+00 : f32
    %308 = vector.broadcast %cst_99 : f32 to vector<8x64xf32>
    %309 = arith.addf %308, %307 : vector<8x64xf32>
    %310 = arith.divf %308, %309 : vector<8x64xf32>
    %311 = vector.extract_strided_slice %310 {offsets = [0, 0], sizes = [8, 32], strides = [1, 1]} : vector<8x64xf32> to vector<8x32xf32>
    %312 = vector.extract_strided_slice %310 {offsets = [0, 32], sizes = [8, 32], strides = [1, 1]} : vector<8x64xf32> to vector<8x32xf32>
    %313 = vector.extract_strided_slice %304 {offsets = [0, 64], sizes = [8, 32], strides = [1, 1]} : vector<8x128xf32> to vector<8x32xf32>
    %314 = math.tanh %313 : vector<8x32xf32>
    %315 = arith.mulf %312, %262 : vector<8x32xf32>
    %316 = arith.mulf %311, %314 : vector<8x32xf32>
    %317 = arith.addf %315, %316 : vector<8x32xf32>
    %318 = vector.extract_strided_slice %304 {offsets = [0, 96], sizes = [8, 32], strides = [1, 1]} : vector<8x128xf32> to vector<8x32xf32>
    %319 = arith.negf %318 : vector<8x32xf32>
    %320 = math.exp %319 : vector<8x32xf32>
    %cst_100 = arith.constant 1.000000e+00 : f32
    %321 = vector.broadcast %cst_100 : f32 to vector<8x32xf32>
    %322 = arith.addf %321, %320 : vector<8x32xf32>
    %323 = arith.divf %321, %322 : vector<8x32xf32>
    %324 = math.tanh %317 : vector<8x32xf32>
    %325 = arith.mulf %323, %324 : vector<8x32xf32>
    %c0_101 = arith.constant 0 : index
    %c0_102 = arith.constant 0 : index
    %326 = vector.load %arg7[%c0_101, %c0_102] : memref<32x256xf32, #tpu.memory_space<vmem>>, vector<32x256xf32>
    %cst_103 = arith.constant dense<0.000000e+00> : vector<8x256xf32>
    %327 = tpu.matmul %325, %326, %cst_103 {dimension_numbers = #tpu.dot_dimension_numbers<[1], [0], [0], [1], [0, 0, 1, 1], [], []>} : vector<8x32xf32>, vector<32x256xf32>, vector<8x256xf32> -> vector<8x256xf32>
    %328 = arith.addf %301, %327 : vector<8x256xf32>
    %329 = arith.addf %328, %240 : vector<8x256xf32>
    %330 = vector.extract_strided_slice %329 {offsets = [0, 0], sizes = [8, 128], strides = [1, 1]} : vector<8x256xf32> to vector<8x128xf32>
    %331 = arith.negf %330 : vector<8x128xf32>
    %332 = math.exp %331 : vector<8x128xf32>
    %cst_104 = arith.constant 1.000000e+00 : f32
    %333 = vector.broadcast %cst_104 : f32 to vector<8x128xf32>
    %334 = arith.addf %333, %332 : vector<8x128xf32>
    %335 = arith.divf %333, %334 : vector<8x128xf32>
    %336 = vector.extract_strided_slice %335 {offsets = [0, 0], sizes = [8, 64], strides = [1, 1]} : vector<8x128xf32> to vector<8x64xf32>
    %337 = vector.extract_strided_slice %335 {offsets = [0, 64], sizes = [8, 64], strides = [1, 1]} : vector<8x128xf32> to vector<8x64xf32>
    %338 = vector.extract_strided_slice %329 {offsets = [0, 128], sizes = [8, 64], strides = [1, 1]} : vector<8x256xf32> to vector<8x64xf32>
    %339 = math.tanh %338 : vector<8x64xf32>
    %340 = arith.mulf %337, %287 : vector<8x64xf32>
    %341 = arith.mulf %336, %339 : vector<8x64xf32>
    %342 = arith.addf %340, %341 : vector<8x64xf32>
    %343 = vector.extract_strided_slice %329 {offsets = [0, 192], sizes = [8, 64], strides = [1, 1]} : vector<8x256xf32> to vector<8x64xf32>
    %344 = arith.negf %343 : vector<8x64xf32>
    %345 = math.exp %344 : vector<8x64xf32>
    %cst_105 = arith.constant 1.000000e+00 : f32
    %346 = vector.broadcast %cst_105 : f32 to vector<8x64xf32>
    %347 = arith.addf %346, %345 : vector<8x64xf32>
    %348 = arith.divf %346, %347 : vector<8x64xf32>
    %349 = math.tanh %342 : vector<8x64xf32>
    %350 = arith.mulf %348, %349 : vector<8x64xf32>
    %c8_i32_106 = arith.constant 8 : i32
    %351 = arith.muli %c1_i32_92, %c8_i32_106 : i32
    %352 = tpu.assume_multiple %351, 8 : i32
    %353 = arith.index_cast %352 : i32 to index
    %c0_107 = arith.constant 0 : index
    %354 = vector.load %arg14[%353, %c0_107] : memref<64x64xf32, #tpu.memory_space<vmem>>, vector<8x64xf32>
    tpu.vector_store %arg14[%353, %c0_107], %350 {strides = array<i32>} : memref<64x64xf32, #tpu.memory_space<vmem>>, vector<8x64xf32>,
    %c2_i32_108 = arith.constant 2 : i32
    %c0_109 = arith.constant 0 : index
    %c0_110 = arith.constant 0 : index
    %355 = vector.load %arg8[%c0_109, %c0_110] : memref<64x256xf32, #tpu.memory_space<vmem>>, vector<64x256xf32>
    %cst_111 = arith.constant dense<0.000000e+00> : vector<8x256xf32>
    %356 = tpu.matmul %350, %355, %cst_111 {dimension_numbers = #tpu.dot_dimension_numbers<[1], [0], [0], [1], [0, 0, 1, 1], [], []>} : vector<8x64xf32>, vector<64x256xf32>, vector<8x256xf32> -> vector<8x256xf32>
    %c0_112 = arith.constant 0 : index
    %c0_113 = arith.constant 0 : index
    %357 = vector.load %arg5[%c0_112, %c0_113] : memref<32x128xf32, #tpu.memory_space<vmem>>, vector<32x128xf32>
    %cst_114 = arith.constant dense<0.000000e+00> : vector<8x128xf32>
    %358 = tpu.matmul %325, %357, %cst_114 {dimension_numbers = #tpu.dot_dimension_numbers<[1], [0], [0], [1], [0, 0, 1, 1], [], []>} : vector<8x32xf32>, vector<32x128xf32>, vector<8x128xf32> -> vector<8x128xf32>
    %359 = arith.addf %358, %237 : vector<8x128xf32>
    %360 = vector.extract_strided_slice %359 {offsets = [0, 0], sizes = [8, 64], strides = [1, 1]} : vector<8x128xf32> to vector<8x64xf32>
    %361 = arith.negf %360 : vector<8x64xf32>
    %362 = math.exp %361 : vector<8x64xf32>
    %cst_115 = arith.constant 1.000000e+00 : f32
    %363 = vector.broadcast %cst_115 : f32 to vector<8x64xf32>
    %364 = arith.addf %363, %362 : vector<8x64xf32>
    %365 = arith.divf %363, %364 : vector<8x64xf32>
    %366 = vector.extract_strided_slice %365 {offsets = [0, 0], sizes = [8, 32], strides = [1, 1]} : vector<8x64xf32> to vector<8x32xf32>
    %367 = vector.extract_strided_slice %365 {offsets = [0, 32], sizes = [8, 32], strides = [1, 1]} : vector<8x64xf32> to vector<8x32xf32>
    %368 = vector.extract_strided_slice %359 {offsets = [0, 64], sizes = [8, 32], strides = [1, 1]} : vector<8x128xf32> to vector<8x32xf32>
    %369 = math.tanh %368 : vector<8x32xf32>
    %370 = arith.mulf %367, %317 : vector<8x32xf32>
    %371 = arith.mulf %366, %369 : vector<8x32xf32>
    %372 = arith.addf %370, %371 : vector<8x32xf32>
    %373 = vector.extract_strided_slice %359 {offsets = [0, 96], sizes = [8, 32], strides = [1, 1]} : vector<8x128xf32> to vector<8x32xf32>
    %374 = arith.negf %373 : vector<8x32xf32>
    %375 = math.exp %374 : vector<8x32xf32>
    %cst_116 = arith.constant 1.000000e+00 : f32
    %376 = vector.broadcast %cst_116 : f32 to vector<8x32xf32>
    %377 = arith.addf %376, %375 : vector<8x32xf32>
    %378 = arith.divf %376, %377 : vector<8x32xf32>
    %379 = math.tanh %372 : vector<8x32xf32>
    %380 = arith.mulf %378, %379 : vector<8x32xf32>
    %c0_117 = arith.constant 0 : index
    %c0_118 = arith.constant 0 : index
    %381 = vector.load %arg7[%c0_117, %c0_118] : memref<32x256xf32, #tpu.memory_space<vmem>>, vector<32x256xf32>
    %cst_119 = arith.constant dense<0.000000e+00> : vector<8x256xf32>
    %382 = tpu.matmul %380, %381, %cst_119 {dimension_numbers = #tpu.dot_dimension_numbers<[1], [0], [0], [1], [0, 0, 1, 1], [], []>} : vector<8x32xf32>, vector<32x256xf32>, vector<8x256xf32> -> vector<8x256xf32>
    %383 = arith.addf %356, %382 : vector<8x256xf32>
    %384 = arith.addf %383, %240 : vector<8x256xf32>
    %385 = vector.extract_strided_slice %384 {offsets = [0, 0], sizes = [8, 128], strides = [1, 1]} : vector<8x256xf32> to vector<8x128xf32>
    %386 = arith.negf %385 : vector<8x128xf32>
    %387 = math.exp %386 : vector<8x128xf32>
    %cst_120 = arith.constant 1.000000e+00 : f32
    %388 = vector.broadcast %cst_120 : f32 to vector<8x128xf32>
    %389 = arith.addf %388, %387 : vector<8x128xf32>
    %390 = arith.divf %388, %389 : vector<8x128xf32>
    %391 = vector.extract_strided_slice %390 {offsets = [0, 0], sizes = [8, 64], strides = [1, 1]} : vector<8x128xf32> to vector<8x64xf32>
    %392 = vector.extract_strided_slice %390 {offsets = [0, 64], sizes = [8, 64], strides = [1, 1]} : vector<8x128xf32> to vector<8x64xf32>
    %393 = vector.extract_strided_slice %384 {offsets = [0, 128], sizes = [8, 64], strides = [1, 1]} : vector<8x256xf32> to vector<8x64xf32>
    %394 = math.tanh %393 : vector<8x64xf32>
    %395 = arith.mulf %392, %342 : vector<8x64xf32>
    %396 = arith.mulf %391, %394 : vector<8x64xf32>
    %397 = arith.addf %395, %396 : vector<8x64xf32>
    %398 = vector.extract_strided_slice %384 {offsets = [0, 192], sizes = [8, 64], strides = [1, 1]} : vector<8x256xf32> to vector<8x64xf32>
    %399 = arith.negf %398 : vector<8x64xf32>
    %400 = math.exp %399 : vector<8x64xf32>
    %cst_121 = arith.constant 1.000000e+00 : f32
    %401 = vector.broadcast %cst_121 : f32 to vector<8x64xf32>
    %402 = arith.addf %401, %400 : vector<8x64xf32>
    %403 = arith.divf %401, %402 : vector<8x64xf32>
    %404 = math.tanh %397 : vector<8x64xf32>
    %405 = arith.mulf %403, %404 : vector<8x64xf32>
    %c8_i32_122 = arith.constant 8 : i32
    %406 = arith.muli %c2_i32_108, %c8_i32_122 : i32
    %407 = tpu.assume_multiple %406, 8 : i32
    %408 = arith.index_cast %407 : i32 to index
    %c0_123 = arith.constant 0 : index
    %409 = vector.load %arg14[%408, %c0_123] : memref<64x64xf32, #tpu.memory_space<vmem>>, vector<8x64xf32>
    tpu.vector_store %arg14[%408, %c0_123], %405 {strides = array<i32>} : memref<64x64xf32, #tpu.memory_space<vmem>>, vector<8x64xf32>,
    %c3_i32_124 = arith.constant 3 : i32
    %c0_125 = arith.constant 0 : index
    %c0_126 = arith.constant 0 : index
    %410 = vector.load %arg8[%c0_125, %c0_126] : memref<64x256xf32, #tpu.memory_space<vmem>>, vector<64x256xf32>
    %cst_127 = arith.constant dense<0.000000e+00> : vector<8x256xf32>
    %411 = tpu.matmul %405, %410, %cst_127 {dimension_numbers = #tpu.dot_dimension_numbers<[1], [0], [0], [1], [0, 0, 1, 1], [], []>} : vector<8x64xf32>, vector<64x256xf32>, vector<8x256xf32> -> vector<8x256xf32>
    %c0_128 = arith.constant 0 : index
    %c0_129 = arith.constant 0 : index
    %412 = vector.load %arg5[%c0_128, %c0_129] : memref<32x128xf32, #tpu.memory_space<vmem>>, vector<32x128xf32>
    %cst_130 = arith.constant dense<0.000000e+00> : vector<8x128xf32>
    %413 = tpu.matmul %380, %412, %cst_130 {dimension_numbers = #tpu.dot_dimension_numbers<[1], [0], [0], [1], [0, 0, 1, 1], [], []>} : vector<8x32xf32>, vector<32x128xf32>, vector<8x128xf32> -> vector<8x128xf32>
    %414 = arith.addf %413, %237 : vector<8x128xf32>
    %415 = vector.extract_strided_slice %414 {offsets = [0, 0], sizes = [8, 64], strides = [1, 1]} : vector<8x128xf32> to vector<8x64xf32>
    %416 = arith.negf %415 : vector<8x64xf32>
    %417 = math.exp %416 : vector<8x64xf32>
    %cst_131 = arith.constant 1.000000e+00 : f32
    %418 = vector.broadcast %cst_131 : f32 to vector<8x64xf32>
    %419 = arith.addf %418, %417 : vector<8x64xf32>
    %420 = arith.divf %418, %419 : vector<8x64xf32>
    %421 = vector.extract_strided_slice %420 {offsets = [0, 0], sizes = [8, 32], strides = [1, 1]} : vector<8x64xf32> to vector<8x32xf32>
    %422 = vector.extract_strided_slice %420 {offsets = [0, 32], sizes = [8, 32], strides = [1, 1]} : vector<8x64xf32> to vector<8x32xf32>
    %423 = vector.extract_strided_slice %414 {offsets = [0, 64], sizes = [8, 32], strides = [1, 1]} : vector<8x128xf32> to vector<8x32xf32>
    %424 = math.tanh %423 : vector<8x32xf32>
    %425 = arith.mulf %422, %372 : vector<8x32xf32>
    %426 = arith.mulf %421, %424 : vector<8x32xf32>
    %427 = arith.addf %425, %426 : vector<8x32xf32>
    %428 = vector.extract_strided_slice %414 {offsets = [0, 96], sizes = [8, 32], strides = [1, 1]} : vector<8x128xf32> to vector<8x32xf32>
    %429 = arith.negf %428 : vector<8x32xf32>
    %430 = math.exp %429 : vector<8x32xf32>
    %cst_132 = arith.constant 1.000000e+00 : f32
    %431 = vector.broadcast %cst_132 : f32 to vector<8x32xf32>
    %432 = arith.addf %431, %430 : vector<8x32xf32>
    %433 = arith.divf %431, %432 : vector<8x32xf32>
    %434 = math.tanh %427 : vector<8x32xf32>
    %435 = arith.mulf %433, %434 : vector<8x32xf32>
    %c0_133 = arith.constant 0 : index
    %c0_134 = arith.constant 0 : index
    %436 = vector.load %arg7[%c0_133, %c0_134] : memref<32x256xf32, #tpu.memory_space<vmem>>, vector<32x256xf32>
    %cst_135 = arith.constant dense<0.000000e+00> : vector<8x256xf32>
    %437 = tpu.matmul %435, %436, %cst_135 {dimension_numbers = #tpu.dot_dimension_numbers<[1], [0], [0], [1], [0, 0, 1, 1], [], []>} : vector<8x32xf32>, vector<32x256xf32>, vector<8x256xf32> -> vector<8x256xf32>
    %438 = arith.addf %411, %437 : vector<8x256xf32>
    %439 = arith.addf %438, %240 : vector<8x256xf32>
    %440 = vector.extract_strided_slice %439 {offsets = [0, 0], sizes = [8, 128], strides = [1, 1]} : vector<8x256xf32> to vector<8x128xf32>
    %441 = arith.negf %440 : vector<8x128xf32>
    %442 = math.exp %441 : vector<8x128xf32>
    %cst_136 = arith.constant 1.000000e+00 : f32
    %443 = vector.broadcast %cst_136 : f32 to vector<8x128xf32>
    %444 = arith.addf %443, %442 : vector<8x128xf32>
    %445 = arith.divf %443, %444 : vector<8x128xf32>
    %446 = vector.extract_strided_slice %445 {offsets = [0, 0], sizes = [8, 64], strides = [1, 1]} : vector<8x128xf32> to vector<8x64xf32>
    %447 = vector.extract_strided_slice %445 {offsets = [0, 64], sizes = [8, 64], strides = [1, 1]} : vector<8x128xf32> to vector<8x64xf32>
    %448 = vector.extract_strided_slice %439 {offsets = [0, 128], sizes = [8, 64], strides = [1, 1]} : vector<8x256xf32> to vector<8x64xf32>
    %449 = math.tanh %448 : vector<8x64xf32>
    %450 = arith.mulf %447, %397 : vector<8x64xf32>
    %451 = arith.mulf %446, %449 : vector<8x64xf32>
    %452 = arith.addf %450, %451 : vector<8x64xf32>
    %453 = vector.extract_strided_slice %439 {offsets = [0, 192], sizes = [8, 64], strides = [1, 1]} : vector<8x256xf32> to vector<8x64xf32>
    %454 = arith.negf %453 : vector<8x64xf32>
    %455 = math.exp %454 : vector<8x64xf32>
    %cst_137 = arith.constant 1.000000e+00 : f32
    %456 = vector.broadcast %cst_137 : f32 to vector<8x64xf32>
    %457 = arith.addf %456, %455 : vector<8x64xf32>
    %458 = arith.divf %456, %457 : vector<8x64xf32>
    %459 = math.tanh %452 : vector<8x64xf32>
    %460 = arith.mulf %458, %459 : vector<8x64xf32>
    %c8_i32_138 = arith.constant 8 : i32
    %461 = arith.muli %c3_i32_124, %c8_i32_138 : i32
    %462 = tpu.assume_multiple %461, 8 : i32
    %463 = arith.index_cast %462 : i32 to index
    %c0_139 = arith.constant 0 : index
    %464 = vector.load %arg14[%463, %c0_139] : memref<64x64xf32, #tpu.memory_space<vmem>>, vector<8x64xf32>
    tpu.vector_store %arg14[%463, %c0_139], %460 {strides = array<i32>} : memref<64x64xf32, #tpu.memory_space<vmem>>, vector<8x64xf32>,
    %c4_i32_140 = arith.constant 4 : i32
    %c0_141 = arith.constant 0 : index
    %c0_142 = arith.constant 0 : index
    %465 = vector.load %arg8[%c0_141, %c0_142] : memref<64x256xf32, #tpu.memory_space<vmem>>, vector<64x256xf32>
    %cst_143 = arith.constant dense<0.000000e+00> : vector<8x256xf32>
    %466 = tpu.matmul %460, %465, %cst_143 {dimension_numbers = #tpu.dot_dimension_numbers<[1], [0], [0], [1], [0, 0, 1, 1], [], []>} : vector<8x64xf32>, vector<64x256xf32>, vector<8x256xf32> -> vector<8x256xf32>
    %c0_144 = arith.constant 0 : index
    %c0_145 = arith.constant 0 : index
    %467 = vector.load %arg5[%c0_144, %c0_145] : memref<32x128xf32, #tpu.memory_space<vmem>>, vector<32x128xf32>
    %cst_146 = arith.constant dense<0.000000e+00> : vector<8x128xf32>
    %468 = tpu.matmul %435, %467, %cst_146 {dimension_numbers = #tpu.dot_dimension_numbers<[1], [0], [0], [1], [0, 0, 1, 1], [], []>} : vector<8x32xf32>, vector<32x128xf32>, vector<8x128xf32> -> vector<8x128xf32>
    %469 = arith.addf %468, %237 : vector<8x128xf32>
    %470 = vector.extract_strided_slice %469 {offsets = [0, 0], sizes = [8, 64], strides = [1, 1]} : vector<8x128xf32> to vector<8x64xf32>
    %471 = arith.negf %470 : vector<8x64xf32>
    %472 = math.exp %471 : vector<8x64xf32>
    %cst_147 = arith.constant 1.000000e+00 : f32
    %473 = vector.broadcast %cst_147 : f32 to vector<8x64xf32>
    %474 = arith.addf %473, %472 : vector<8x64xf32>
    %475 = arith.divf %473, %474 : vector<8x64xf32>
    %476 = vector.extract_strided_slice %475 {offsets = [0, 0], sizes = [8, 32], strides = [1, 1]} : vector<8x64xf32> to vector<8x32xf32>
    %477 = vector.extract_strided_slice %475 {offsets = [0, 32], sizes = [8, 32], strides = [1, 1]} : vector<8x64xf32> to vector<8x32xf32>
    %478 = vector.extract_strided_slice %469 {offsets = [0, 64], sizes = [8, 32], strides = [1, 1]} : vector<8x128xf32> to vector<8x32xf32>
    %479 = math.tanh %478 : vector<8x32xf32>
    %480 = arith.mulf %477, %427 : vector<8x32xf32>
    %481 = arith.mulf %476, %479 : vector<8x32xf32>
    %482 = arith.addf %480, %481 : vector<8x32xf32>
    %483 = vector.extract_strided_slice %469 {offsets = [0, 96], sizes = [8, 32], strides = [1, 1]} : vector<8x128xf32> to vector<8x32xf32>
    %484 = arith.negf %483 : vector<8x32xf32>
    %485 = math.exp %484 : vector<8x32xf32>
    %cst_148 = arith.constant 1.000000e+00 : f32
    %486 = vector.broadcast %cst_148 : f32 to vector<8x32xf32>
    %487 = arith.addf %486, %485 : vector<8x32xf32>
    %488 = arith.divf %486, %487 : vector<8x32xf32>
    %489 = math.tanh %482 : vector<8x32xf32>
    %490 = arith.mulf %488, %489 : vector<8x32xf32>
    %c0_149 = arith.constant 0 : index
    %c0_150 = arith.constant 0 : index
    %491 = vector.load %arg7[%c0_149, %c0_150] : memref<32x256xf32, #tpu.memory_space<vmem>>, vector<32x256xf32>
    %cst_151 = arith.constant dense<0.000000e+00> : vector<8x256xf32>
    %492 = tpu.matmul %490, %491, %cst_151 {dimension_numbers = #tpu.dot_dimension_numbers<[1], [0], [0], [1], [0, 0, 1, 1], [], []>} : vector<8x32xf32>, vector<32x256xf32>, vector<8x256xf32> -> vector<8x256xf32>
    %493 = arith.addf %466, %492 : vector<8x256xf32>
    %494 = arith.addf %493, %240 : vector<8x256xf32>
    %495 = vector.extract_strided_slice %494 {offsets = [0, 0], sizes = [8, 128], strides = [1, 1]} : vector<8x256xf32> to vector<8x128xf32>
    %496 = arith.negf %495 : vector<8x128xf32>
    %497 = math.exp %496 : vector<8x128xf32>
    %cst_152 = arith.constant 1.000000e+00 : f32
    %498 = vector.broadcast %cst_152 : f32 to vector<8x128xf32>
    %499 = arith.addf %498, %497 : vector<8x128xf32>
    %500 = arith.divf %498, %499 : vector<8x128xf32>
    %501 = vector.extract_strided_slice %500 {offsets = [0, 0], sizes = [8, 64], strides = [1, 1]} : vector<8x128xf32> to vector<8x64xf32>
    %502 = vector.extract_strided_slice %500 {offsets = [0, 64], sizes = [8, 64], strides = [1, 1]} : vector<8x128xf32> to vector<8x64xf32>
    %503 = vector.extract_strided_slice %494 {offsets = [0, 128], sizes = [8, 64], strides = [1, 1]} : vector<8x256xf32> to vector<8x64xf32>
    %504 = math.tanh %503 : vector<8x64xf32>
    %505 = arith.mulf %502, %452 : vector<8x64xf32>
    %506 = arith.mulf %501, %504 : vector<8x64xf32>
    %507 = arith.addf %505, %506 : vector<8x64xf32>
    %508 = vector.extract_strided_slice %494 {offsets = [0, 192], sizes = [8, 64], strides = [1, 1]} : vector<8x256xf32> to vector<8x64xf32>
    %509 = arith.negf %508 : vector<8x64xf32>
    %510 = math.exp %509 : vector<8x64xf32>
    %cst_153 = arith.constant 1.000000e+00 : f32
    %511 = vector.broadcast %cst_153 : f32 to vector<8x64xf32>
    %512 = arith.addf %511, %510 : vector<8x64xf32>
    %513 = arith.divf %511, %512 : vector<8x64xf32>
    %514 = math.tanh %507 : vector<8x64xf32>
    %515 = arith.mulf %513, %514 : vector<8x64xf32>
    %c8_i32_154 = arith.constant 8 : i32
    %516 = arith.muli %c4_i32_140, %c8_i32_154 : i32
    %517 = tpu.assume_multiple %516, 8 : i32
    %518 = arith.index_cast %517 : i32 to index
    %c0_155 = arith.constant 0 : index
    %519 = vector.load %arg14[%518, %c0_155] : memref<64x64xf32, #tpu.memory_space<vmem>>, vector<8x64xf32>
    tpu.vector_store %arg14[%518, %c0_155], %515 {strides = array<i32>} : memref<64x64xf32, #tpu.memory_space<vmem>>, vector<8x64xf32>,
    %c5_i32_156 = arith.constant 5 : i32
    %c0_157 = arith.constant 0 : index
    %c0_158 = arith.constant 0 : index
    %520 = vector.load %arg8[%c0_157, %c0_158] : memref<64x256xf32, #tpu.memory_space<vmem>>, vector<64x256xf32>
    %cst_159 = arith.constant dense<0.000000e+00> : vector<8x256xf32>
    %521 = tpu.matmul %515, %520, %cst_159 {dimension_numbers = #tpu.dot_dimension_numbers<[1], [0], [0], [1], [0, 0, 1, 1], [], []>} : vector<8x64xf32>, vector<64x256xf32>, vector<8x256xf32> -> vector<8x256xf32>
    %c0_160 = arith.constant 0 : index
    %c0_161 = arith.constant 0 : index
    %522 = vector.load %arg5[%c0_160, %c0_161] : memref<32x128xf32, #tpu.memory_space<vmem>>, vector<32x128xf32>
    %cst_162 = arith.constant dense<0.000000e+00> : vector<8x128xf32>
    %523 = tpu.matmul %490, %522, %cst_162 {dimension_numbers = #tpu.dot_dimension_numbers<[1], [0], [0], [1], [0, 0, 1, 1], [], []>} : vector<8x32xf32>, vector<32x128xf32>, vector<8x128xf32> -> vector<8x128xf32>
    %524 = arith.addf %523, %237 : vector<8x128xf32>
    %525 = vector.extract_strided_slice %524 {offsets = [0, 0], sizes = [8, 64], strides = [1, 1]} : vector<8x128xf32> to vector<8x64xf32>
    %526 = arith.negf %525 : vector<8x64xf32>
    %527 = math.exp %526 : vector<8x64xf32>
    %cst_163 = arith.constant 1.000000e+00 : f32
    %528 = vector.broadcast %cst_163 : f32 to vector<8x64xf32>
    %529 = arith.addf %528, %527 : vector<8x64xf32>
    %530 = arith.divf %528, %529 : vector<8x64xf32>
    %531 = vector.extract_strided_slice %530 {offsets = [0, 0], sizes = [8, 32], strides = [1, 1]} : vector<8x64xf32> to vector<8x32xf32>
    %532 = vector.extract_strided_slice %530 {offsets = [0, 32], sizes = [8, 32], strides = [1, 1]} : vector<8x64xf32> to vector<8x32xf32>
    %533 = vector.extract_strided_slice %524 {offsets = [0, 64], sizes = [8, 32], strides = [1, 1]} : vector<8x128xf32> to vector<8x32xf32>
    %534 = math.tanh %533 : vector<8x32xf32>
    %535 = arith.mulf %532, %482 : vector<8x32xf32>
    %536 = arith.mulf %531, %534 : vector<8x32xf32>
    %537 = arith.addf %535, %536 : vector<8x32xf32>
    %538 = vector.extract_strided_slice %524 {offsets = [0, 96], sizes = [8, 32], strides = [1, 1]} : vector<8x128xf32> to vector<8x32xf32>
    %539 = arith.negf %538 : vector<8x32xf32>
    %540 = math.exp %539 : vector<8x32xf32>
    %cst_164 = arith.constant 1.000000e+00 : f32
    %541 = vector.broadcast %cst_164 : f32 to vector<8x32xf32>
    %542 = arith.addf %541, %540 : vector<8x32xf32>
    %543 = arith.divf %541, %542 : vector<8x32xf32>
    %544 = math.tanh %537 : vector<8x32xf32>
    %545 = arith.mulf %543, %544 : vector<8x32xf32>
    %c0_165 = arith.constant 0 : index
    %c0_166 = arith.constant 0 : index
    %546 = vector.load %arg7[%c0_165, %c0_166] : memref<32x256xf32, #tpu.memory_space<vmem>>, vector<32x256xf32>
    %cst_167 = arith.constant dense<0.000000e+00> : vector<8x256xf32>
    %547 = tpu.matmul %545, %546, %cst_167 {dimension_numbers = #tpu.dot_dimension_numbers<[1], [0], [0], [1], [0, 0, 1, 1], [], []>} : vector<8x32xf32>, vector<32x256xf32>, vector<8x256xf32> -> vector<8x256xf32>
    %548 = arith.addf %521, %547 : vector<8x256xf32>
    %549 = arith.addf %548, %240 : vector<8x256xf32>
    %550 = vector.extract_strided_slice %549 {offsets = [0, 0], sizes = [8, 128], strides = [1, 1]} : vector<8x256xf32> to vector<8x128xf32>
    %551 = arith.negf %550 : vector<8x128xf32>
    %552 = math.exp %551 : vector<8x128xf32>
    %cst_168 = arith.constant 1.000000e+00 : f32
    %553 = vector.broadcast %cst_168 : f32 to vector<8x128xf32>
    %554 = arith.addf %553, %552 : vector<8x128xf32>
    %555 = arith.divf %553, %554 : vector<8x128xf32>
    %556 = vector.extract_strided_slice %555 {offsets = [0, 0], sizes = [8, 64], strides = [1, 1]} : vector<8x128xf32> to vector<8x64xf32>
    %557 = vector.extract_strided_slice %555 {offsets = [0, 64], sizes = [8, 64], strides = [1, 1]} : vector<8x128xf32> to vector<8x64xf32>
    %558 = vector.extract_strided_slice %549 {offsets = [0, 128], sizes = [8, 64], strides = [1, 1]} : vector<8x256xf32> to vector<8x64xf32>
    %559 = math.tanh %558 : vector<8x64xf32>
    %560 = arith.mulf %557, %507 : vector<8x64xf32>
    %561 = arith.mulf %556, %559 : vector<8x64xf32>
    %562 = arith.addf %560, %561 : vector<8x64xf32>
    %563 = vector.extract_strided_slice %549 {offsets = [0, 192], sizes = [8, 64], strides = [1, 1]} : vector<8x256xf32> to vector<8x64xf32>
    %564 = arith.negf %563 : vector<8x64xf32>
    %565 = math.exp %564 : vector<8x64xf32>
    %cst_169 = arith.constant 1.000000e+00 : f32
    %566 = vector.broadcast %cst_169 : f32 to vector<8x64xf32>
    %567 = arith.addf %566, %565 : vector<8x64xf32>
    %568 = arith.divf %566, %567 : vector<8x64xf32>
    %569 = math.tanh %562 : vector<8x64xf32>
    %570 = arith.mulf %568, %569 : vector<8x64xf32>
    %c8_i32_170 = arith.constant 8 : i32
    %571 = arith.muli %c5_i32_156, %c8_i32_170 : i32
    %572 = tpu.assume_multiple %571, 8 : i32
    %573 = arith.index_cast %572 : i32 to index
    %c0_171 = arith.constant 0 : index
    %574 = vector.load %arg14[%573, %c0_171] : memref<64x64xf32, #tpu.memory_space<vmem>>, vector<8x64xf32>
    tpu.vector_store %arg14[%573, %c0_171], %570 {strides = array<i32>} : memref<64x64xf32, #tpu.memory_space<vmem>>, vector<8x64xf32>,
    %c6_i32_172 = arith.constant 6 : i32
    %c0_173 = arith.constant 0 : index
    %c0_174 = arith.constant 0 : index
    %575 = vector.load %arg8[%c0_173, %c0_174] : memref<64x256xf32, #tpu.memory_space<vmem>>, vector<64x256xf32>
    %cst_175 = arith.constant dense<0.000000e+00> : vector<8x256xf32>
    %576 = tpu.matmul %570, %575, %cst_175 {dimension_numbers = #tpu.dot_dimension_numbers<[1], [0], [0], [1], [0, 0, 1, 1], [], []>} : vector<8x64xf32>, vector<64x256xf32>, vector<8x256xf32> -> vector<8x256xf32>
    %c0_176 = arith.constant 0 : index
    %c0_177 = arith.constant 0 : index
    %577 = vector.load %arg5[%c0_176, %c0_177] : memref<32x128xf32, #tpu.memory_space<vmem>>, vector<32x128xf32>
    %cst_178 = arith.constant dense<0.000000e+00> : vector<8x128xf32>
    %578 = tpu.matmul %545, %577, %cst_178 {dimension_numbers = #tpu.dot_dimension_numbers<[1], [0], [0], [1], [0, 0, 1, 1], [], []>} : vector<8x32xf32>, vector<32x128xf32>, vector<8x128xf32> -> vector<8x128xf32>
    %579 = arith.addf %578, %237 : vector<8x128xf32>
    %580 = vector.extract_strided_slice %579 {offsets = [0, 0], sizes = [8, 64], strides = [1, 1]} : vector<8x128xf32> to vector<8x64xf32>
    %581 = arith.negf %580 : vector<8x64xf32>
    %582 = math.exp %581 : vector<8x64xf32>
    %cst_179 = arith.constant 1.000000e+00 : f32
    %583 = vector.broadcast %cst_179 : f32 to vector<8x64xf32>
    %584 = arith.addf %583, %582 : vector<8x64xf32>
    %585 = arith.divf %583, %584 : vector<8x64xf32>
    %586 = vector.extract_strided_slice %585 {offsets = [0, 0], sizes = [8, 32], strides = [1, 1]} : vector<8x64xf32> to vector<8x32xf32>
    %587 = vector.extract_strided_slice %585 {offsets = [0, 32], sizes = [8, 32], strides = [1, 1]} : vector<8x64xf32> to vector<8x32xf32>
    %588 = vector.extract_strided_slice %579 {offsets = [0, 64], sizes = [8, 32], strides = [1, 1]} : vector<8x128xf32> to vector<8x32xf32>
    %589 = math.tanh %588 : vector<8x32xf32>
    %590 = arith.mulf %587, %537 : vector<8x32xf32>
    %591 = arith.mulf %586, %589 : vector<8x32xf32>
    %592 = arith.addf %590, %591 : vector<8x32xf32>
    %593 = vector.extract_strided_slice %579 {offsets = [0, 96], sizes = [8, 32], strides = [1, 1]} : vector<8x128xf32> to vector<8x32xf32>
    %594 = arith.negf %593 : vector<8x32xf32>
    %595 = math.exp %594 : vector<8x32xf32>
    %cst_180 = arith.constant 1.000000e+00 : f32
    %596 = vector.broadcast %cst_180 : f32 to vector<8x32xf32>
    %597 = arith.addf %596, %595 : vector<8x32xf32>
    %598 = arith.divf %596, %597 : vector<8x32xf32>
    %599 = math.tanh %592 : vector<8x32xf32>
    %600 = arith.mulf %598, %599 : vector<8x32xf32>
    %c0_181 = arith.constant 0 : index
    %c0_182 = arith.constant 0 : index
    %601 = vector.load %arg7[%c0_181, %c0_182] : memref<32x256xf32, #tpu.memory_space<vmem>>, vector<32x256xf32>
    %cst_183 = arith.constant dense<0.000000e+00> : vector<8x256xf32>
    %602 = tpu.matmul %600, %601, %cst_183 {dimension_numbers = #tpu.dot_dimension_numbers<[1], [0], [0], [1], [0, 0, 1, 1], [], []>} : vector<8x32xf32>, vector<32x256xf32>, vector<8x256xf32> -> vector<8x256xf32>
    %603 = arith.addf %576, %602 : vector<8x256xf32>
    %604 = arith.addf %603, %240 : vector<8x256xf32>
    %605 = vector.extract_strided_slice %604 {offsets = [0, 0], sizes = [8, 128], strides = [1, 1]} : vector<8x256xf32> to vector<8x128xf32>
    %606 = arith.negf %605 : vector<8x128xf32>
    %607 = math.exp %606 : vector<8x128xf32>
    %cst_184 = arith.constant 1.000000e+00 : f32
    %608 = vector.broadcast %cst_184 : f32 to vector<8x128xf32>
    %609 = arith.addf %608, %607 : vector<8x128xf32>
    %610 = arith.divf %608, %609 : vector<8x128xf32>
    %611 = vector.extract_strided_slice %610 {offsets = [0, 0], sizes = [8, 64], strides = [1, 1]} : vector<8x128xf32> to vector<8x64xf32>
    %612 = vector.extract_strided_slice %610 {offsets = [0, 64], sizes = [8, 64], strides = [1, 1]} : vector<8x128xf32> to vector<8x64xf32>
    %613 = vector.extract_strided_slice %604 {offsets = [0, 128], sizes = [8, 64], strides = [1, 1]} : vector<8x256xf32> to vector<8x64xf32>
    %614 = math.tanh %613 : vector<8x64xf32>
    %615 = arith.mulf %612, %562 : vector<8x64xf32>
    %616 = arith.mulf %611, %614 : vector<8x64xf32>
    %617 = arith.addf %615, %616 : vector<8x64xf32>
    %618 = vector.extract_strided_slice %604 {offsets = [0, 192], sizes = [8, 64], strides = [1, 1]} : vector<8x256xf32> to vector<8x64xf32>
    %619 = arith.negf %618 : vector<8x64xf32>
    %620 = math.exp %619 : vector<8x64xf32>
    %cst_185 = arith.constant 1.000000e+00 : f32
    %621 = vector.broadcast %cst_185 : f32 to vector<8x64xf32>
    %622 = arith.addf %621, %620 : vector<8x64xf32>
    %623 = arith.divf %621, %622 : vector<8x64xf32>
    %624 = math.tanh %617 : vector<8x64xf32>
    %625 = arith.mulf %623, %624 : vector<8x64xf32>
    %c8_i32_186 = arith.constant 8 : i32
    %626 = arith.muli %c6_i32_172, %c8_i32_186 : i32
    %627 = tpu.assume_multiple %626, 8 : i32
    %628 = arith.index_cast %627 : i32 to index
    %c0_187 = arith.constant 0 : index
    %629 = vector.load %arg14[%628, %c0_187] : memref<64x64xf32, #tpu.memory_space<vmem>>, vector<8x64xf32>
    tpu.vector_store %arg14[%628, %c0_187], %625 {strides = array<i32>} : memref<64x64xf32, #tpu.memory_space<vmem>>, vector<8x64xf32>,
    %c7_i32_188 = arith.constant 7 : i32
    %c0_189 = arith.constant 0 : index
    %c0_190 = arith.constant 0 : index
    %630 = vector.load %arg8[%c0_189, %c0_190] : memref<64x256xf32, #tpu.memory_space<vmem>>, vector<64x256xf32>
    %cst_191 = arith.constant dense<0.000000e+00> : vector<8x256xf32>
    %631 = tpu.matmul %625, %630, %cst_191 {dimension_numbers = #tpu.dot_dimension_numbers<[1], [0], [0], [1], [0, 0, 1, 1], [], []>} : vector<8x64xf32>, vector<64x256xf32>, vector<8x256xf32> -> vector<8x256xf32>
    %c0_192 = arith.constant 0 : index
    %c0_193 = arith.constant 0 : index
    %632 = vector.load %arg5[%c0_192, %c0_193] : memref<32x128xf32, #tpu.memory_space<vmem>>, vector<32x128xf32>
    %cst_194 = arith.constant dense<0.000000e+00> : vector<8x128xf32>
    %633 = tpu.matmul %600, %632, %cst_194 {dimension_numbers = #tpu.dot_dimension_numbers<[1], [0], [0], [1], [0, 0, 1, 1], [], []>} : vector<8x32xf32>, vector<32x128xf32>, vector<8x128xf32> -> vector<8x128xf32>
    %634 = arith.addf %633, %237 : vector<8x128xf32>
    %635 = vector.extract_strided_slice %634 {offsets = [0, 0], sizes = [8, 64], strides = [1, 1]} : vector<8x128xf32> to vector<8x64xf32>
    %636 = arith.negf %635 : vector<8x64xf32>
    %637 = math.exp %636 : vector<8x64xf32>
    %cst_195 = arith.constant 1.000000e+00 : f32
    %638 = vector.broadcast %cst_195 : f32 to vector<8x64xf32>
    %639 = arith.addf %638, %637 : vector<8x64xf32>
    %640 = arith.divf %638, %639 : vector<8x64xf32>
    %641 = vector.extract_strided_slice %640 {offsets = [0, 0], sizes = [8, 32], strides = [1, 1]} : vector<8x64xf32> to vector<8x32xf32>
    %642 = vector.extract_strided_slice %640 {offsets = [0, 32], sizes = [8, 32], strides = [1, 1]} : vector<8x64xf32> to vector<8x32xf32>
    %643 = vector.extract_strided_slice %634 {offsets = [0, 64], sizes = [8, 32], strides = [1, 1]} : vector<8x128xf32> to vector<8x32xf32>
    %644 = math.tanh %643 : vector<8x32xf32>
    %645 = arith.mulf %642, %592 : vector<8x32xf32>
    %646 = arith.mulf %641, %644 : vector<8x32xf32>
    %647 = arith.addf %645, %646 : vector<8x32xf32>
    %648 = vector.extract_strided_slice %634 {offsets = [0, 96], sizes = [8, 32], strides = [1, 1]} : vector<8x128xf32> to vector<8x32xf32>
    %649 = arith.negf %648 : vector<8x32xf32>
    %650 = math.exp %649 : vector<8x32xf32>
    %cst_196 = arith.constant 1.000000e+00 : f32
    %651 = vector.broadcast %cst_196 : f32 to vector<8x32xf32>
    %652 = arith.addf %651, %650 : vector<8x32xf32>
    %653 = arith.divf %651, %652 : vector<8x32xf32>
    %654 = math.tanh %647 : vector<8x32xf32>
    %655 = arith.mulf %653, %654 : vector<8x32xf32>
    %c0_197 = arith.constant 0 : index
    %c0_198 = arith.constant 0 : index
    %656 = vector.load %arg7[%c0_197, %c0_198] : memref<32x256xf32, #tpu.memory_space<vmem>>, vector<32x256xf32>
    %cst_199 = arith.constant dense<0.000000e+00> : vector<8x256xf32>
    %657 = tpu.matmul %655, %656, %cst_199 {dimension_numbers = #tpu.dot_dimension_numbers<[1], [0], [0], [1], [0, 0, 1, 1], [], []>} : vector<8x32xf32>, vector<32x256xf32>, vector<8x256xf32> -> vector<8x256xf32>
    %658 = arith.addf %631, %657 : vector<8x256xf32>
    %659 = arith.addf %658, %240 : vector<8x256xf32>
    %660 = vector.extract_strided_slice %659 {offsets = [0, 0], sizes = [8, 128], strides = [1, 1]} : vector<8x256xf32> to vector<8x128xf32>
    %661 = arith.negf %660 : vector<8x128xf32>
    %662 = math.exp %661 : vector<8x128xf32>
    %cst_200 = arith.constant 1.000000e+00 : f32
    %663 = vector.broadcast %cst_200 : f32 to vector<8x128xf32>
    %664 = arith.addf %663, %662 : vector<8x128xf32>
    %665 = arith.divf %663, %664 : vector<8x128xf32>
    %666 = vector.extract_strided_slice %665 {offsets = [0, 0], sizes = [8, 64], strides = [1, 1]} : vector<8x128xf32> to vector<8x64xf32>
    %667 = vector.extract_strided_slice %665 {offsets = [0, 64], sizes = [8, 64], strides = [1, 1]} : vector<8x128xf32> to vector<8x64xf32>
    %668 = vector.extract_strided_slice %659 {offsets = [0, 128], sizes = [8, 64], strides = [1, 1]} : vector<8x256xf32> to vector<8x64xf32>
    %669 = math.tanh %668 : vector<8x64xf32>
    %670 = arith.mulf %667, %617 : vector<8x64xf32>
    %671 = arith.mulf %666, %669 : vector<8x64xf32>
    %672 = arith.addf %670, %671 : vector<8x64xf32>
    %673 = vector.extract_strided_slice %659 {offsets = [0, 192], sizes = [8, 64], strides = [1, 1]} : vector<8x256xf32> to vector<8x64xf32>
    %674 = arith.negf %673 : vector<8x64xf32>
    %675 = math.exp %674 : vector<8x64xf32>
    %cst_201 = arith.constant 1.000000e+00 : f32
    %676 = vector.broadcast %cst_201 : f32 to vector<8x64xf32>
    %677 = arith.addf %676, %675 : vector<8x64xf32>
    %678 = arith.divf %676, %677 : vector<8x64xf32>
    %679 = math.tanh %672 : vector<8x64xf32>
    %680 = arith.mulf %678, %679 : vector<8x64xf32>
    %c8_i32_202 = arith.constant 8 : i32
    %681 = arith.muli %c7_i32_188, %c8_i32_202 : i32
    %682 = tpu.assume_multiple %681, 8 : i32
    %683 = arith.index_cast %682 : i32 to index
    %c0_203 = arith.constant 0 : index
    %684 = vector.load %arg14[%683, %c0_203] : memref<64x64xf32, #tpu.memory_space<vmem>>, vector<8x64xf32>
    tpu.vector_store %arg14[%683, %c0_203], %680 {strides = array<i32>} : memref<64x64xf32, #tpu.memory_space<vmem>>, vector<8x64xf32>,
    %c8_i32_204 = arith.constant 8 : i32
    %c0_205 = arith.constant 0 : index
    %c0_206 = arith.constant 0 : index
    %685 = vector.load %arg14[%c0_205, %c0_206] : memref<64x64xf32, #tpu.memory_space<vmem>>, vector<64x64xf32>
    %c0_207 = arith.constant 0 : index
    %c0_208 = arith.constant 0 : index
    %686 = vector.load %arg10[%c0_207, %c0_208] : memref<64x128xf32, #tpu.memory_space<vmem>>, vector<64x128xf32>
    %cst_209 = arith.constant dense<0.000000e+00> : vector<64x128xf32>
    %687 = tpu.matmul %685, %686, %cst_209 {dimension_numbers = #tpu.dot_dimension_numbers<[1], [0], [0], [1], [0, 0, 1, 1], [], []>} : vector<64x64xf32>, vector<64x128xf32>, vector<64x128xf32> -> vector<64x128xf32>
    %c0_210 = arith.constant 0 : index
    %c0_211 = arith.constant 0 : index
    %688 = vector.load %arg11[%c0_210, %c0_211] : memref<1x128xf32, #tpu.memory_space<vmem>>, vector<1x128xf32>
    %689 = vector.broadcast %688 : vector<1x128xf32> to vector<64x128xf32>
    %690 = arith.addf %687, %689 : vector<64x128xf32>
    %c0_212 = arith.constant 0 : index
    %c0_213 = arith.constant 0 : index
    %691 = vector.load %arg12[%c0_212, %c0_213] : memref<64x128xf32, #tpu.memory_space<vmem>>, vector<64x128xf32>
    tpu.vector_store %arg12[%c0_212, %c0_213], %690 {strides = array<i32>} : memref<64x128xf32, #tpu.memory_space<vmem>>, vector<64x128xf32>,
    return
  }
}

</mosaic_0001>

<llo_original>
// kernel: tpu_custom_call.1
$region0: #{tpu_custom_call.1}
  #allocation0 [shape = 'u32[]', space=smem, size = 0x4, offset = 0x4, fixed_abs, tag = 'smem constant byte address 0x4 - core index']
  #allocation1 [shape = 'u32[72,128]{1,0:T(1,128)}', space=vmem, size = 0x9000, scoped, tag = 'internal scratch']
  #allocation2 [shape = 'f32[64,256]{1,0:T(8,128)}', space=vmem, size = 0x10000, scoped, tag = 'scratch operand']
  #allocation3 [shape = 'f32[64,64]{1,0:T(8,128)}', space=vmem, size = 0x8000, scoped, tag = 'scratch operand']
  %s0 = inlined_call_operand.vmem [shape: f32[64,4], index: 0, kind: input, shape index: {}]
  %s1 = inlined_call_operand.hbm [shape: f32[4,256], index: 1, kind: input, shape index: {}]
  %s2 = inlined_call_operand.hbm [shape: f32[64,256], index: 2, kind: input, shape index: {}]
  %s3 = inlined_call_operand.vmem [shape: f32[1,256], index: 3, kind: input, shape index: {}]
  %s4 = inlined_call_operand.vmem [shape: f32[64,128], index: 4, kind: input, shape index: {}]
  %s5 = inlined_call_operand.hbm [shape: f32[32,128], index: 5, kind: input, shape index: {}]
  %s6 = inlined_call_operand.vmem [shape: f32[1,128], index: 6, kind: input, shape index: {}]
  %s7 = inlined_call_operand.hbm [shape: f32[32,256], index: 7, kind: input, shape index: {}]
  %s8 = inlined_call_operand.hbm [shape: f32[64,256], index: 8, kind: input, shape index: {}]
  %s9 = inlined_call_operand.vmem [shape: f32[1,256], index: 9, kind: input, shape index: {}]
  %s10 = inlined_call_operand.hbm [shape: f32[64,128], index: 10, kind: input, shape index: {}]
  %s11 = inlined_call_operand.vmem [shape: f32[1,128], index: 11, kind: input, shape index: {}]
  %s12 = inlined_call_operand.hbm [shape: f32[64,128], index: 12, kind: output, shape index: {}]
  %s13 = sld [smem:[#allocation0]]
  $region82: #{tpu_custom_call.1} parent=0
    _
  %s15 = ssub.s32 1, %s13
  %s16 = scalar_select 0, %s15, %s13
  $region1: #{tpu_custom_call.1} parent=0
    #allocation4 [shape = 'u8[4096]{0}', space=vmem, size = 0x1000, scoped, tag = 'input window, operand 1, single buffered']
    #allocation5 [shape = 's32[1]{0}', space=sflag, size = 0x4, scoped, tag = 'scoped memory for tpu_custom_call.1']
    #allocation6 [shape = 's32[1]{0}', space=sflag, size = 0x4, scoped, tag = 'scoped memory for tpu_custom_call.1']
    #allocation7 [shape = 'u8[65536]{0}', space=vmem, size = 0x10000, scoped, tag = 'input window, operand 2, single buffered']
    #allocation8 [shape = 's32[1]{0}', space=sflag, size = 0x4, scoped, tag = 'scoped memory for tpu_custom_call.1']
    #allocation9 [shape = 'u8[16384]{0}', space=vmem, size = 0x4000, scoped, tag = 'input window, operand 5, single buffered']
    #allocation10 [shape = 'u8[32768]{0}', space=vmem, size = 0x8000, scoped, tag = 'input window, operand 7, single buffered']
    #allocation11 [shape = 's32[1]{0}', space=sflag, size = 0x4, scoped, tag = 'scoped memory for tpu_custom_call.1']
    #allocation12 [shape = 'u8[65536]{0}', space=vmem, size = 0x10000, scoped, tag = 'input window, operand 8, single buffered']
    #allocation13 [shape = 'u8[32768]{0}', space=vmem, size = 0x8000, scoped, tag = 'input window, operand 10, single buffered']
    #allocation14 [shape = 's32[1]{0}', space=sflag, size = 0x4, scoped, tag = 'scoped memory for tpu_custom_call.1']
    #allocation15 [shape = 'u8[32768]{0}', space=vmem, size = 0x8000, scoped, tag = 'output window, operand 0, single buffered']
    %17 = vsyncpa [#allocation5], 0
    %18 = vsyncpa [#allocation8], 0
    %19 = vsyncpa [#allocation11], 0
    %20 = vsyncpa [#allocation14], 0
    %21 = vsyncpa [#allocation6], 0
    // Predicated region
    $region2: #{tpu_custom_call.1} parent=1 // pred_check
      _
    $region3: #{tpu_custom_call.1} parent=1 // pred_check_branch
      %23 = sbr.rel (0) target = $region5
    $region4: #{tpu_custom_call.1} parent=1 // pred_region
      _
    $region5: #{tpu_custom_call.1} parent=1 // pred_fallthru
      _
    // Predicated region
    $region6: #{tpu_custom_call.1} parent=1 // pred_check
      _
    $region7: #{tpu_custom_call.1} parent=1 // pred_check_branch
      %25 = sbr.rel (0) target = $region9
    $region8: #{tpu_custom_call.1} parent=1 // pred_region
      %27 = vsyncadd [#allocation5], 0
      %s29 = sshll.u32 %s1, 4
      %s30 = int_to_ptr.hbm [resolvable:$true] %s29
      %s31 = sshll.u32 [#allocation4], 4
      %s32 = int_to_ptr.vmem [resolvable:$true] %s31
      %34 = dma.hbm_to_vmem [thread:$0]  %s30, 128, %s32, [#allocation5]
    $region9: #{tpu_custom_call.1} parent=1 // pred_fallthru
      _
    // Predicated region
    $region10: #{tpu_custom_call.1} parent=1 // pred_check
      _
    $region11: #{tpu_custom_call.1} parent=1 // pred_check_branch
      %36 = sbr.rel (0) target = $region13
    $region12: #{tpu_custom_call.1} parent=1 // pred_region
      %38 = vsyncadd [#allocation8], 0
      %s39 = sshll.u32 %s2, 4
      %s40 = int_to_ptr.hbm [resolvable:$true] %s39
      %s41 = sshll.u32 [#allocation7], 4
      %s42 = int_to_ptr.vmem [resolvable:$true] %s41
      %47 = dma.hbm_to_vmem [thread:$0]  %s40, 2048, %s42, [#allocation8], 256, 256, 16
    $region13: #{tpu_custom_call.1} parent=1 // pred_fallthru
      _
    // Predicated region
    $region14: #{tpu_custom_call.1} parent=1 // pred_check
      _
    $region15: #{tpu_custom_call.1} parent=1 // pred_check_branch
      %49 = sbr.rel (0) target = $region17
    $region16: #{tpu_custom_call.1} parent=1 // pred_region
      _
    $region17: #{tpu_custom_call.1} parent=1 // pred_fallthru
      _
    // Predicated region
    $region18: #{tpu_custom_call.1} parent=1 // pred_check
      _
    $region19: #{tpu_custom_call.1} parent=1 // pred_check_branch
      %51 = sbr.rel (0) target = $region21
    $region20: #{tpu_custom_call.1} parent=1 // pred_region
      _
    $region21: #{tpu_custom_call.1} parent=1 // pred_fallthru
      _
    // Predicated region
    $region22: #{tpu_custom_call.1} parent=1 // pred_check
      _
    $region23: #{tpu_custom_call.1} parent=1 // pred_check_branch
      %53 = sbr.rel (0) target = $region25
    $region24: #{tpu_custom_call.1} parent=1 // pred_region
      %55 = vsyncadd [#allocation8], 0
      %s56 = sshll.u32 %s5, 4
      %s57 = int_to_ptr.hbm [resolvable:$true] %s56
      %s58 = sshll.u32 [#allocation9], 4
      %s59 = int_to_ptr.vmem [resolvable:$true] %s58
      %64 = dma.hbm_to_vmem [thread:$0]  %s57, 512, %s59, [#allocation8], 128, 128, 8
    $region25: #{tpu_custom_call.1} parent=1 // pred_fallthru
      _
    // Predicated region
    $region26: #{tpu_custom_call.1} parent=1 // pred_check
      _
    $region27: #{tpu_custom_call.1} parent=1 // pred_check_branch
      %66 = sbr.rel (0) target = $region29
    $region28: #{tpu_custom_call.1} parent=1 // pred_region
      _
    $region29: #{tpu_custom_call.1} parent=1 // pred_fallthru
      _
    // Predicated region
    $region30: #{tpu_custom_call.1} parent=1 // pred_check
      _
    $region31: #{tpu_custom_call.1} parent=1 // pred_check_branch
      %68 = sbr.rel (0) target = $region33
    $region32: #{tpu_custom_call.1} parent=1 // pred_region
      %70 = vsyncadd [#allocation11], 0
      %s71 = sshll.u32 %s7, 4
      %s72 = int_to_ptr.hbm [resolvable:$true] %s71
      %s73 = sshll.u32 [#allocation10], 4
      %s74 = int_to_ptr.vmem [resolvable:$true] %s73
      %79 = dma.hbm_to_vmem [thread:$0]  %s72, 1024, %s74, [#allocation11], 256, 256, 16
    $region33: #{tpu_custom_call.1} parent=1 // pred_fallthru
      _
    // Predicated region
    $region34: #{tpu_custom_call.1} parent=1 // pred_check
      _
    $region35: #{tpu_custom_call.1} parent=1 // pred_check_branch
      %81 = sbr.rel (0) target = $region37
    $region36: #{tpu_custom_call.1} parent=1 // pred_region
      %83 = vsyncadd [#allocation11], 0
      %s84 = sshll.u32 %s8, 4
      %s85 = int_to_ptr.hbm [resolvable:$true] %s84
      %s86 = sshll.u32 [#allocation12], 4
      %s87 = int_to_ptr.vmem [resolvable:$true] %s86
      %92 = dma.hbm_to_vmem [thread:$0]  %s85, 2048, %s87, [#allocation11], 256, 256, 16
    $region37: #{tpu_custom_call.1} parent=1 // pred_fallthru
      _
    // Predicated region
    $region38: #{tpu_custom_call.1} parent=1 // pred_check
      _
    $region39: #{tpu_custom_call.1} parent=1 // pred_check_branch
      %94 = sbr.rel (0) target = $region41
    $region40: #{tpu_custom_call.1} parent=1 // pred_region
      _
    $region41: #{tpu_custom_call.1} parent=1 // pred_fallthru
      _
    // Predicated region
    $region42: #{tpu_custom_call.1} parent=1 // pred_check
      _
    $region43: #{tpu_custom_call.1} parent=1 // pred_check_branch
      %96 = sbr.rel (0) target = $region45
    $region44: #{tpu_custom_call.1} parent=1 // pred_region
      %98 = vsyncadd [#allocation14], 0
      %s99 = sshll.u32 %s10, 4
      %s100 = int_to_ptr.hbm [resolvable:$true] %s99
      %s101 = sshll.u32 [#allocation13], 4
      %s102 = int_to_ptr.vmem [resolvable:$true] %s101
      %107 = dma.hbm_to_vmem [thread:$0]  %s100, 1024, %s102, [#allocation14], 128, 128, 8
    $region45: #{tpu_custom_call.1} parent=1 // pred_fallthru
      _
    // Predicated region
    $region46: #{tpu_custom_call.1} parent=1 // pred_check
      _
    $region47: #{tpu_custom_call.1} parent=1 // pred_check_branch
      %109 = sbr.rel (0) target = $region49
    $region48: #{tpu_custom_call.1} parent=1 // pred_region
      _
    $region49: #{tpu_custom_call.1} parent=1 // pred_fallthru
      _
    // Predicated region
    $region50: #{tpu_custom_call.1} parent=1 // pred_check
      _
    $region51: #{tpu_custom_call.1} parent=1 // pred_check_branch
      %111 = sbr.rel (0) target = $region53
    $region52: #{tpu_custom_call.1} parent=1 // pred_region
      %113 = dma.done [#allocation5], 128
    $region53: #{tpu_custom_call.1} parent=1 // pred_fallthru
      _
    // Predicated region
    $region54: #{tpu_custom_call.1} parent=1 // pred_check
      _
    $region55: #{tpu_custom_call.1} parent=1 // pred_check_branch
      %115 = sbr.rel (0) target = $region57
    $region56: #{tpu_custom_call.1} parent=1 // pred_region
      %117 = dma.done [#allocation8], 2048
    $region57: #{tpu_custom_call.1} parent=1 // pred_fallthru
      _
    // Predicated region
    $region58: #{tpu_custom_call.1} parent=1 // pred_check
      _
    $region59: #{tpu_custom_call.1} parent=1 // pred_check_branch
      %119 = sbr.rel (0) target = $region61
    $region60: #{tpu_custom_call.1} parent=1 // pred_region
      %121 = dma.done [#allocation8], 512
    $region61: #{tpu_custom_call.1} parent=1 // pred_fallthru
      _
    // Predicated region
    $region62: #{tpu_custom_call.1} parent=1 // pred_check
      _
    $region63: #{tpu_custom_call.1} parent=1 // pred_check_branch
      %123 = sbr.rel (0) target = $region65
    $region64: #{tpu_custom_call.1} parent=1 // pred_region
      %125 = dma.done [#allocation11], 1024
    $region65: #{tpu_custom_call.1} parent=1 // pred_fallthru
      _
    // Predicated region
    $region66: #{tpu_custom_call.1} parent=1 // pred_check
      _
    $region67: #{tpu_custom_call.1} parent=1 // pred_check_branch
      %127 = sbr.rel (0) target = $region69
    $region68: #{tpu_custom_call.1} parent=1 // pred_region
      %129 = dma.done [#allocation11], 2048
    $region69: #{tpu_custom_call.1} parent=1 // pred_fallthru
      _
    // Predicated region
    $region70: #{tpu_custom_call.1} parent=1 // pred_check
      _
    $region71: #{tpu_custom_call.1} parent=1 // pred_check_branch
      %131 = sbr.rel (0) target = $region73
    $region72: #{tpu_custom_call.1} parent=1 // pred_region
      %133 = dma.done [#allocation14], 1024
    $region73: #{tpu_custom_call.1} parent=1 // pred_fallthru
      _
    %v134 = vld [vmem:[%s0] sm:$0xff]
    %v135 = vld [vmem:[%s0 + $0x8] sm:$0xff]
    %v136 = vld [vmem:[%s0 + $0x10] sm:$0xff]
    %v137 = vld [vmem:[%s0 + $0x18] sm:$0xff]
    %v138 = vld [vmem:[%s0 + $0x20] sm:$0xff]
    %v139 = vld [vmem:[%s0 + $0x28] sm:$0xff]
    %v140 = vld [vmem:[%s0 + $0x30] sm:$0xff]
    %v141 = vld [vmem:[%s0 + $0x38] sm:$0xff]
    %v142 = vld [vmem:[#allocation4] sm:$0xff]
    %v143 = vld [vmem:[%s3] sm:$0x3]
    %v145 = vperm.slane %v143, 0
    %v146 = vperm.slane %v143, 1
    %150 = vst [vmem:[#allocation1] ss:$2 sm:$0xff] %v142
    %v151 = vld.sshfl [vmem:[#allocation1] sm:$0xff pattern:$0x75316420]
    %v152 = vld.sshfl [vmem:[#allocation1 + $0x8] sm:$0xff pattern:$0x75316420]
    %vm153 = vcmask 31744
    %v155 = vsel %vm153, %v134, 0
    %v158 = vsel %vm153, %v135, 0
    %v161 = vsel %vm153, %v136, 0
    %v164 = vsel %vm153, %v137, 0
    %v167 = vsel %vm153, %v138, 0
    %v170 = vsel %vm153, %v139, 0
    %v173 = vsel %vm153, %v140, 0
    %v176 = vsel %vm153, %v141, 0
    %vm178 = vcmask 1043456
    %v179 = vsel %vm178, %v151, 0
    %v181 = vsel %vm178, %v152, 0
    %183 = vmatpush.msra.mxu0 0.0
    %184 = vmatpush.msra.mxu0 0.0
    %185 = vmatpush.msra.mxu0 0.0
    %186 = vmatpush.msra.mxu0 0.0
    %187 = vmatpush.msra.mxu0 0.0
    %188 = vmatpush.msra.mxu0 0.0
    %189 = vmatpush.msra.mxu0 0.0
    %190 = vmatpush.msra.mxu0 0.0
    %191 = vmatpush.msra.mxu0 0.0
    %192 = vmatpush.msra.mxu0 0.0
    %193 = vmatpush.msra.mxu0 0.0
    %194 = vmatpush.msra.mxu0 0.0
    %195 = vmatpush.msra.mxu0 0.0
    %196 = vmatpush.msra.mxu0 0.0
    %197 = vmatpush.msra.mxu0 0.0
    %198 = vmatpush.msra.mxu0 %v179
    %199 = vmatmul.f32.gmra.mxu0 %v155
    %v200 = vpop.f32.mrf.mxu0
    %v201 = vadd.f32 %v145, %v200
    %202 = vmatmul.f32.gmra.mxu0 %v158
    %v203 = vpop.f32.mrf.mxu0
    %v204 = vadd.f32 %v145, %v203
    %205 = vmatmul.f32.gmra.mxu0 %v161
    %v206 = vpop.f32.mrf.mxu0
    %v207 = vadd.f32 %v145, %v206
    %208 = vmatmul.f32.gmra.mxu0 %v164
    %v209 = vpop.f32.mrf.mxu0
    %v210 = vadd.f32 %v145, %v209
    %211 = vmatmul.f32.gmra.mxu0 %v167
    %v212 = vpop.f32.mrf.mxu0
    %v213 = vadd.f32 %v145, %v212
    %214 = vmatmul.f32.gmra.mxu0 %v170
    %v215 = vpop.f32.mrf.mxu0
    %v216 = vadd.f32 %v145, %v215
    %217 = vmatmul.f32.gmra.mxu0 %v173
    %v218 = vpop.f32.mrf.mxu0
    %v219 = vadd.f32 %v145, %v218
    %220 = vmatmul.f32.gmra.mxu0 %v176
    %v221 = vpop.f32.mrf.mxu0
    %v222 = vadd.f32 %v145, %v221
    %223 = vdwg.mxu0
    %224 = vmatpush.msra.mxu0 0.0
    %225 = vmatpush.msra.mxu0 0.0
    %226 = vmatpush.msra.mxu0 0.0
    %227 = vmatpush.msra.mxu0 0.0
    %228 = vmatpush.msra.mxu0 0.0
    %229 = vmatpush.msra.mxu0 0.0
    %230 = vmatpush.msra.mxu0 0.0
    %231 = vmatpush.msra.mxu0 0.0
    %232 = vmatpush.msra.mxu0 0.0
    %233 = vmatpush.msra.mxu0 0.0
    %234 = vmatpush.msra.mxu0 0.0
    %235 = vmatpush.msra.mxu0 0.0
    %236 = vmatpush.msra.mxu0 0.0
    %237 = vmatpush.msra.mxu0 0.0
    %238 = vmatpush.msra.mxu0 0.0
    %239 = vmatpush.msra.mxu0 %v181
    %240 = vmatmul.f32.gmra.mxu0 %v155
    %v241 = vpop.f32.mrf.mxu0
    %v242 = vadd.f32 %v146, %v241
    %243 = vmatmul.f32.gmra.mxu0 %v158
    %v244 = vpop.f32.mrf.mxu0
    %v245 = vadd.f32 %v146, %v244
    %246 = vmatmul.f32.gmra.mxu0 %v161
    %v247 = vpop.f32.mrf.mxu0
    %v248 = vadd.f32 %v146, %v247
    %249 = vmatmul.f32.gmra.mxu0 %v164
    %v250 = vpop.f32.mrf.mxu0
    %v251 = vadd.f32 %v146, %v250
    %252 = vmatmul.f32.gmra.mxu0 %v167
    %v253 = vpop.f32.mrf.mxu0
    %v254 = vadd.f32 %v146, %v253
    %255 = vmatmul.f32.gmra.mxu0 %v170
    %v256 = vpop.f32.mrf.mxu0
    %v257 = vadd.f32 %v146, %v256
    %258 = vmatmul.f32.gmra.mxu0 %v173
    %v259 = vpop.f32.mrf.mxu0
    %v260 = vadd.f32 %v146, %v259
    %261 = vmatmul.f32.gmra.mxu0 %v176
    %v262 = vpop.f32.mrf.mxu0
    %v263 = vadd.f32 %v146, %v262
    %264 = vdwg.mxu0
    %265 = vst [vmem:[#allocation2] sm:$0xff] %v201
    %266 = vst [vmem:[#allocation2 + $0x8] sm:$0xff] %v242
    %267 = vst [vmem:[#allocation2 + $0x10] sm:$0xff] %v204
    %268 = vst [vmem:[#allocation2 + $0x18] sm:$0xff] %v245
    %269 = vst [vmem:[#allocation2 + $0x20] sm:$0xff] %v207
    %270 = vst [vmem:[#allocation2 + $0x28] sm:$0xff] %v248
    %271 = vst [vmem:[#allocation2 + $0x30] sm:$0xff] %v210
    %272 = vst [vmem:[#allocation2 + $0x38] sm:$0xff] %v251
    %273 = vst [vmem:[#allocation2 + $0x40] sm:$0xff] %v213
    %274 = vst [vmem:[#allocation2 + $0x48] sm:$0xff] %v254
    %275 = vst [vmem:[#allocation2 + $0x50] sm:$0xff] %v216
    %276 = vst [vmem:[#allocation2 + $0x58] sm:$0xff] %v257
    %277 = vst [vmem:[#allocation2 + $0x60] sm:$0xff] %v219
    %278 = vst [vmem:[#allocation2 + $0x68] sm:$0xff] %v260
    %279 = vst [vmem:[#allocation2 + $0x70] sm:$0xff] %v222
    %280 = vst [vmem:[#allocation2 + $0x78] sm:$0xff] %v263
    %v281 = vld [vmem:[#allocation7] sm:$0xff]
    %v282 = vld [vmem:[#allocation7 + $0x8] sm:$0xff]
    %v283 = vld [vmem:[#allocation7 + $0x10] sm:$0xff]
    %v284 = vld [vmem:[#allocation7 + $0x18] sm:$0xff]
    %v285 = vld [vmem:[#allocation7 + $0x20] sm:$0xff]
    %v286 = vld [vmem:[#allocation7 + $0x28] sm:$0xff]
    %v287 = vld [vmem:[#allocation7 + $0x30] sm:$0xff]
    %v288 = vld [vmem:[#allocation7 + $0x38] sm:$0xff]
    %v289 = vld [vmem:[#allocation7 + $0x40] sm:$0xff]
    %v290 = vld [vmem:[#allocation7 + $0x48] sm:$0xff]
    %v291 = vld [vmem:[#allocation7 + $0x50] sm:$0xff]
    %v292 = vld [vmem:[#allocation7 + $0x58] sm:$0xff]
    %v293 = vld [vmem:[#allocation7 + $0x60] sm:$0xff]
    %v294 = vld [vmem:[#allocation7 + $0x68] sm:$0xff]
    %v295 = vld [vmem:[#allocation7 + $0x70] sm:$0xff]
    %v296 = vld [vmem:[#allocation7 + $0x78] sm:$0xff]
    %s297 = smul.u32 0, 2
    %s298 = smul.addr %s297, 8
    %s299 = scalar_lea.vmem [#allocation2], %s298
    %v300 = vld [vmem:[%s299] sm:$0xff]
    %v301 = vld [vmem:[%s299 + $0x8] sm:$0xff]
    %vm302 = vcmask 523264
    %v304 = vsel %vm302, 0.0, 0
    %306 = vmatpush.msra.mxu0 0.0
    %307 = vmatpush.msra.mxu0 0.0
    %308 = vmatpush.msra.mxu0 0.0
    %309 = vmatpush.msra.mxu0 0.0
    %310 = vmatpush.msra.mxu0 0.0
    %311 = vmatpush.msra.mxu0 0.0
    %312 = vmatpush.msra.mxu0 0.0
    %313 = vmatpush.msra.mxu0 0.0
    %314 = vmatpush.msra.mxu0 %v295
    %315 = vmatpush.msra.mxu0 %v293
    %316 = vmatpush.msra.mxu0 %v291
    %317 = vmatpush.msra.mxu0 %v289
    %318 = vmatpush.msra.mxu0 %v287
    %319 = vmatpush.msra.mxu0 %v285
    %320 = vmatpush.msra.mxu0 %v283
    %321 = vmatpush.msra.mxu0 %v281
    %322 = vmatmul.f32.gmra.mxu0 %v304
    %v323 = vpop.f32.mrf.mxu0
    %v324 = vadd.f32 %v300, %v323
    %325 = vdwg.mxu0
    %326 = vmatpush.msra.mxu0 0.0
    %327 = vmatpush.msra.mxu0 0.0
    %328 = vmatpush.msra.mxu0 0.0
    %329 = vmatpush.msra.mxu0 0.0
    %330 = vmatpush.msra.mxu0 0.0
    %331 = vmatpush.msra.mxu0 0.0
    %332 = vmatpush.msra.mxu0 0.0
    %333 = vmatpush.msra.mxu0 0.0
    %334 = vmatpush.msra.mxu0 %v296
    %335 = vmatpush.msra.mxu0 %v294
    %336 = vmatpush.msra.mxu0 %v292
    %337 = vmatpush.msra.mxu0 %v290
    %338 = vmatpush.msra.mxu0 %v288
    %339 = vmatpush.msra.mxu0 %v286
    %340 = vmatpush.msra.mxu0 %v284
    %341 = vmatpush.msra.mxu0 %v282
    %342 = vmatmul.f32.gmra.mxu0 %v304
    %v343 = vpop.f32.mrf.mxu0
    %v344 = vadd.f32 %v301, %v343
    %345 = vdwg.mxu0
    %v346 = vxor.u32 %v324, 2147483648
    %v347 = vmul.f32 %v346, 1.442695
    %v348 = vpow.pop %v347
    %v349 = vadd.f32 %v348, 1.0
    %v350 = vrcp.pop %v349
    %v351 = vmul.f32 %v349, %v350
    %v352 = vsub.f32 1.0, %v351
    %v353 = vmul.f32 %v350, %v352
    %v354 = vadd.f32 %v350, %v353
    %vm355 = vweird.f32 %v349
    %vm356 = vweird.f32 %v350
    %vm357 = vmor %vm355, %vm356
    %v358 = vsel %vm357, %v350, %v354
    %v359 = vand.u32 2147483647, %v349
    %vm360 = vcmp.eq.f32.partialorder %v359, 8.507059e+37
    %v361 = vand.u32 %v349, 2147483648
    %v362 = vor.u32 1.1754944e-38, %v361
    %v363 = vsel %vm360, %v362, %v358
    %v364 = vmul.f32 1.0, %v363
    %v365 = vtanh.pop %v344
    %v366 = vmul.f32 %v364, 0.0
    %v367 = vmul.f32 %v364, %v365
    %369 = vrot.lane.b32.xlu0 %v367, 64
    %v370 = vpop.permute.xlu0 %369
    %v372 = vadd.f32 %v366, %v370
    %v373 = vxor.u32 %v344, 2147483648
    %v374 = vmul.f32 %v373, 1.442695
    %v375 = vpow.pop %v374
    %v376 = vadd.f32 %v375, 1.0
    %v377 = vrcp.pop %v376
    %v378 = vmul.f32 %v376, %v377
    %v379 = vsub.f32 1.0, %v378
    %v380 = vmul.f32 %v377, %v379
    %v381 = vadd.f32 %v377, %v380
    %vm382 = vweird.f32 %v376
    %vm383 = vweird.f32 %v377
    %vm384 = vmor %vm382, %vm383
    %v385 = vsel %vm384, %v377, %v381
    %v386 = vand.u32 2147483647, %v376
    %vm387 = vcmp.eq.f32.partialorder %v386, 8.507059e+37
    %v388 = vand.u32 %v376, 2147483648
    %v389 = vor.u32 1.1754944e-38, %v388
    %v390 = vsel %vm387, %v389, %v385
    %v391 = vmul.f32 1.0, %v390
    %v392 = vtanh.pop %v372
    %v393 = vmul.f32 %v391, %v392
    %s394 = smul.u32 1, 2
    %s395 = smul.addr %s394, 8
    %s396 = scalar_lea.vmem [#allocation2], %s395
    %v397 = vld [vmem:[%s396] sm:$0xff]
    %v398 = vld [vmem:[%s396 + $0x8] sm:$0xff]
    %400 = vrot.lane.b32.xlu0 %v393, 64
    %v401 = vpop.permute.xlu0 %400
    %v402 = vsel %vm302, %v401, 0
    %404 = vmatpush.msra.mxu0 0.0
    %405 = vmatpush.msra.mxu0 0.0
    %406 = vmatpush.msra.mxu0 0.0
    %407 = vmatpush.msra.mxu0 0.0
    %408 = vmatpush.msra.mxu0 0.0
    %409 = vmatpush.msra.mxu0 0.0
    %410 = vmatpush.msra.mxu0 0.0
    %411 = vmatpush.msra.mxu0 0.0
    %412 = vmatpush.msra.mxu0 %v295
    %413 = vmatpush.msra.mxu0 %v293
    %414 = vmatpush.msra.mxu0 %v291
    %415 = vmatpush.msra.mxu0 %v289
    %416 = vmatpush.msra.mxu0 %v287
    %417 = vmatpush.msra.mxu0 %v285
    %418 = vmatpush.msra.mxu0 %v283
    %419 = vmatpush.msra.mxu0 %v281
    %420 = vmatmul.f32.gmra.mxu0 %v402
    %v421 = vpop.f32.mrf.mxu0
    %v422 = vadd.f32 %v397, %v421
    %423 = vdwg.mxu0
    %424 = vmatpush.msra.mxu0 0.0
    %425 = vmatpush.msra.mxu0 0.0
    %426 = vmatpush.msra.mxu0 0.0
    %427 = vmatpush.msra.mxu0 0.0
    %428 = vmatpush.msra.mxu0 0.0
    %429 = vmatpush.msra.mxu0 0.0
    %430 = vmatpush.msra.mxu0 0.0
    %431 = vmatpush.msra.mxu0 0.0
    %432 = vmatpush.msra.mxu0 %v296
    %433 = vmatpush.msra.mxu0 %v294
    %434 = vmatpush.msra.mxu0 %v292
    %435 = vmatpush.msra.mxu0 %v290
    %436 = vmatpush.msra.mxu0 %v288
    %437 = vmatpush.msra.mxu0 %v286
    %438 = vmatpush.msra.mxu0 %v284
    %439 = vmatpush.msra.mxu0 %v282
    %440 = vmatmul.f32.gmra.mxu0 %v402
    %v441 = vpop.f32.mrf.mxu0
    %v442 = vadd.f32 %v398, %v441
    %443 = vdwg.mxu0
    %v444 = vxor.u32 %v422, 2147483648
    %v445 = vmul.f32 %v444, 1.442695
    %v446 = vpow.pop %v445
    %v447 = vadd.f32 %v446, 1.0
    %v448 = vrcp.pop %v447
    %v449 = vmul.f32 %v447, %v448
    %v450 = vsub.f32 1.0, %v449
    %v451 = vmul.f32 %v448, %v450
    %v452 = vadd.f32 %v448, %v451
    %vm453 = vweird.f32 %v447
    %vm454 = vweird.f32 %v448
    %vm455 = vmor %vm453, %vm454
    %v456 = vsel %vm455, %v448, %v452
    %v457 = vand.u32 2147483647, %v447
    %vm458 = vcmp.eq.f32.partialorder %v457, 8.507059e+37
    %v459 = vand.u32 %v447, 2147483648
    %v460 = vor.u32 1.1754944e-38, %v459
    %v461 = vsel %vm458, %v460, %v456
    %v462 = vmul.f32 1.0, %v461
    %v463 = vtanh.pop %v442
    %v464 = vmul.f32 %v462, %v372
    %v465 = vmul.f32 %v462, %v463
    %467 = vrot.lane.b32.xlu0 %v465, 64
    %v468 = vpop.permute.xlu0 %467
    %v470 = vadd.f32 %v464, %v468
    %v471 = vxor.u32 %v442, 2147483648
    %v472 = vmul.f32 %v471, 1.442695
    %v473 = vpow.pop %v472
    %v474 = vadd.f32 %v473, 1.0
    %v475 = vrcp.pop %v474
    %v476 = vmul.f32 %v474, %v475
    %v477 = vsub.f32 1.0, %v476
    %v478 = vmul.f32 %v475, %v477
    %v479 = vadd.f32 %v475, %v478
    %vm480 = vweird.f32 %v474
    %vm481 = vweird.f32 %v475
    %vm482 = vmor %vm480, %vm481
    %v483 = vsel %vm482, %v475, %v479
    %v484 = vand.u32 2147483647, %v474
    %vm485 = vcmp.eq.f32.partialorder %v484, 8.507059e+37
    %v486 = vand.u32 %v474, 2147483648
    %v487 = vor.u32 1.1754944e-38, %v486
    %v488 = vsel %vm485, %v487, %v483
    %v489 = vmul.f32 1.0, %v488
    %v490 = vtanh.pop %v470
    %v491 = vmul.f32 %v489, %v490
    %s492 = smul.u32 2, 2
    %s493 = smul.addr %s492, 8
    %s494 = scalar_lea.vmem [#allocation2], %s493
    %v495 = vld [vmem:[%s494] sm:$0xff]
    %v496 = vld [vmem:[%s494 + $0x8] sm:$0xff]
    %498 = vrot.lane.b32.xlu0 %v491, 64
    %v499 = vpop.permute.xlu0 %498
    %v500 = vsel %vm302, %v499, 0
    %502 = vmatpush.msra.mxu0 0.0
    %503 = vmatpush.msra.mxu0 0.0
    %504 = vmatpush.msra.mxu0 0.0
    %505 = vmatpush.msra.mxu0 0.0
    %506 = vmatpush.msra.mxu0 0.0
    %507 = vmatpush.msra.mxu0 0.0
    %508 = vmatpush.msra.mxu0 0.0
    %509 = vmatpush.msra.mxu0 0.0
    %510 = vmatpush.msra.mxu0 %v295
    %511 = vmatpush.msra.mxu0 %v293
    %512 = vmatpush.msra.mxu0 %v291
    %513 = vmatpush.msra.mxu0 %v289
    %514 = vmatpush.msra.mxu0 %v287
    %515 = vmatpush.msra.mxu0 %v285
    %516 = vmatpush.msra.mxu0 %v283
    %517 = vmatpush.msra.mxu0 %v281
    %518 = vmatmul.f32.gmra.mxu0 %v500
    %v519 = vpop.f32.mrf.mxu0
    %v520 = vadd.f32 %v495, %v519
    %521 = vdwg.mxu0
    %522 = vmatpush.msra.mxu0 0.0
    %523 = vmatpush.msra.mxu0 0.0
    %524 = vmatpush.msra.mxu0 0.0
    %525 = vmatpush.msra.mxu0 0.0
    %526 = vmatpush.msra.mxu0 0.0
    %527 = vmatpush.msra.mxu0 0.0
    %528 = vmatpush.msra.mxu0 0.0
    %529 = vmatpush.msra.mxu0 0.0
    %530 = vmatpush.msra.mxu0 %v296
    %531 = vmatpush.msra.mxu0 %v294
    %532 = vmatpush.msra.mxu0 %v292
    %533 = vmatpush.msra.mxu0 %v290
    %534 = vmatpush.msra.mxu0 %v288
    %535 = vmatpush.msra.mxu0 %v286
    %536 = vmatpush.msra.mxu0 %v284
    %537 = vmatpush.msra.mxu0 %v282
    %538 = vmatmul.f32.gmra.mxu0 %v500
    %v539 = vpop.f32.mrf.mxu0
    %v540 = vadd.f32 %v496, %v539
    %541 = vdwg.mxu0
    %v542 = vxor.u32 %v520, 2147483648
    %v543 = vmul.f32 %v542, 1.442695
    %v544 = vpow.pop %v543
    %v545 = vadd.f32 %v544, 1.0
    %v546 = vrcp.pop %v545
    %v547 = vmul.f32 %v545, %v546
    %v548 = vsub.f32 1.0, %v547
    %v549 = vmul.f32 %v546, %v548
    %v550 = vadd.f32 %v546, %v549
    %vm551 = vweird.f32 %v545
    %vm552 = vweird.f32 %v546
    %vm553 = vmor %vm551, %vm552
    %v554 = vsel %vm553, %v546, %v550
    %v555 = vand.u32 2147483647, %v545
    %vm556 = vcmp.eq.f32.partialorder %v555, 8.507059e+37
    %v557 = vand.u32 %v545, 2147483648
    %v558 = vor.u32 1.1754944e-38, %v557
    %v559 = vsel %vm556, %v558, %v554
    %v560 = vmul.f32 1.0, %v559
    %v561 = vtanh.pop %v540
    %v562 = vmul.f32 %v560, %v470
    %v563 = vmul.f32 %v560, %v561
    %565 = vrot.lane.b32.xlu0 %v563, 64
    %v566 = vpop.permute.xlu0 %565
    %v568 = vadd.f32 %v562, %v566
    %v569 = vxor.u32 %v540, 2147483648
    %v570 = vmul.f32 %v569, 1.442695
    %v571 = vpow.pop %v570
    %v572 = vadd.f32 %v571, 1.0
    %v573 = vrcp.pop %v572
    %v574 = vmul.f32 %v572, %v573
    %v575 = vsub.f32 1.0, %v574
    %v576 = vmul.f32 %v573, %v575
    %v577 = vadd.f32 %v573, %v576
    %vm578 = vweird.f32 %v572
    %vm579 = vweird.f32 %v573
    %vm580 = vmor %vm578, %vm579
    %v581 = vsel %vm580, %v573, %v577
    %v582 = vand.u32 2147483647, %v572
    %vm583 = vcmp.eq.f32.partialorder %v582, 8.507059e+37
    %v584 = vand.u32 %v572, 2147483648
    %v585 = vor.u32 1.1754944e-38, %v584
    %v586 = vsel %vm583, %v585, %v581
    %v587 = vmul.f32 1.0, %v586
    %v588 = vtanh.pop %v568
    %v589 = vmul.f32 %v587, %v588
    %s590 = smul.u32 3, 2
    %s591 = smul.addr %s590, 8
    %s592 = scalar_lea.vmem [#allocation2], %s591
    %v593 = vld [vmem:[%s592] sm:$0xff]
    %v594 = vld [vmem:[%s592 + $0x8] sm:$0xff]
    %596 = vrot.lane.b32.xlu0 %v589, 64
    %v597 = vpop.permute.xlu0 %596
    %v598 = vsel %vm302, %v597, 0
    %600 = vmatpush.msra.mxu0 0.0
    %601 = vmatpush.msra.mxu0 0.0
    %602 = vmatpush.msra.mxu0 0.0
    %603 = vmatpush.msra.mxu0 0.0
    %604 = vmatpush.msra.mxu0 0.0
    %605 = vmatpush.msra.mxu0 0.0
    %606 = vmatpush.msra.mxu0 0.0
    %607 = vmatpush.msra.mxu0 0.0
    %608 = vmatpush.msra.mxu0 %v295
    %609 = vmatpush.msra.mxu0 %v293
    %610 = vmatpush.msra.mxu0 %v291
    %611 = vmatpush.msra.mxu0 %v289
    %612 = vmatpush.msra.mxu0 %v287
    %613 = vmatpush.msra.mxu0 %v285
    %614 = vmatpush.msra.mxu0 %v283
    %615 = vmatpush.msra.mxu0 %v281
    %616 = vmatmul.f32.gmra.mxu0 %v598
    %v617 = vpop.f32.mrf.mxu0
    %v618 = vadd.f32 %v593, %v617
    %619 = vdwg.mxu0
    %620 = vmatpush.msra.mxu0 0.0
    %621 = vmatpush.msra.mxu0 0.0
    %622 = vmatpush.msra.mxu0 0.0
    %623 = vmatpush.msra.mxu0 0.0
    %624 = vmatpush.msra.mxu0 0.0
    %625 = vmatpush.msra.mxu0 0.0
    %626 = vmatpush.msra.mxu0 0.0
    %627 = vmatpush.msra.mxu0 0.0
    %628 = vmatpush.msra.mxu0 %v296
    %629 = vmatpush.msra.mxu0 %v294
    %630 = vmatpush.msra.mxu0 %v292
    %631 = vmatpush.msra.mxu0 %v290
    %632 = vmatpush.msra.mxu0 %v288
    %633 = vmatpush.msra.mxu0 %v286
    %634 = vmatpush.msra.mxu0 %v284
    %635 = vmatpush.msra.mxu0 %v282
    %636 = vmatmul.f32.gmra.mxu0 %v598
    %v637 = vpop.f32.mrf.mxu0
    %v638 = vadd.f32 %v594, %v637
    %639 = vdwg.mxu0
    %v640 = vxor.u32 %v618, 2147483648
    %v641 = vmul.f32 %v640, 1.442695
    %v642 = vpow.pop %v641
    %v643 = vadd.f32 %v642, 1.0
    %v644 = vrcp.pop %v643
    %v645 = vmul.f32 %v643, %v644
    %v646 = vsub.f32 1.0, %v645
    %v647 = vmul.f32 %v644, %v646
    %v648 = vadd.f32 %v644, %v647
    %vm649 = vweird.f32 %v643
    %vm650 = vweird.f32 %v644
    %vm651 = vmor %vm649, %vm650
    %v652 = vsel %vm651, %v644, %v648
    %v653 = vand.u32 2147483647, %v643
    %vm654 = vcmp.eq.f32.partialorder %v653, 8.507059e+37
    %v655 = vand.u32 %v643, 2147483648
    %v656 = vor.u32 1.1754944e-38, %v655
    %v657 = vsel %vm654, %v656, %v652
    %v658 = vmul.f32 1.0, %v657
    %v659 = vtanh.pop %v638
    %v660 = vmul.f32 %v658, %v568
    %v661 = vmul.f32 %v658, %v659
    %663 = vrot.lane.b32.xlu0 %v661, 64
    %v664 = vpop.permute.xlu0 %663
    %v666 = vadd.f32 %v660, %v664
    %v667 = vxor.u32 %v638, 2147483648
    %v668 = vmul.f32 %v667, 1.442695
    %v669 = vpow.pop %v668
    %v670 = vadd.f32 %v669, 1.0
    %v671 = vrcp.pop %v670
    %v672 = vmul.f32 %v670, %v671
    %v673 = vsub.f32 1.0, %v672
    %v674 = vmul.f32 %v671, %v673
    %v675 = vadd.f32 %v671, %v674
    %vm676 = vweird.f32 %v670
    %vm677 = vweird.f32 %v671
    %vm678 = vmor %vm676, %vm677
    %v679 = vsel %vm678, %v671, %v675
    %v680 = vand.u32 2147483647, %v670
    %vm681 = vcmp.eq.f32.partialorder %v680, 8.507059e+37
    %v682 = vand.u32 %v670, 2147483648
    %v683 = vor.u32 1.1754944e-38, %v682
    %v684 = vsel %vm681, %v683, %v679
    %v685 = vmul.f32 1.0, %v684
    %v686 = vtanh.pop %v666
    %v687 = vmul.f32 %v685, %v686
    %s688 = smul.u32 4, 2
    %s689 = smul.addr %s688, 8
    %s690 = scalar_lea.vmem [#allocation2], %s689
    %v691 = vld [vmem:[%s690] sm:$0xff]
    %v692 = vld [vmem:[%s690 + $0x8] sm:$0xff]
    %694 = vrot.lane.b32.xlu0 %v687, 64
    %v695 = vpop.permute.xlu0 %694
    %v696 = vsel %vm302, %v695, 0
    %698 = vmatpush.msra.mxu0 0.0
    %699 = vmatpush.msra.mxu0 0.0
    %700 = vmatpush.msra.mxu0 0.0
    %701 = vmatpush.msra.mxu0 0.0
    %702 = vmatpush.msra.mxu0 0.0
    %703 = vmatpush.msra.mxu0 0.0
    %704 = vmatpush.msra.mxu0 0.0
    %705 = vmatpush.msra.mxu0 0.0
    %706 = vmatpush.msra.mxu0 %v295
    %707 = vmatpush.msra.mxu0 %v293
    %708 = vmatpush.msra.mxu0 %v291
    %709 = vmatpush.msra.mxu0 %v289
    %710 = vmatpush.msra.mxu0 %v287
    %711 = vmatpush.msra.mxu0 %v285
    %712 = vmatpush.msra.mxu0 %v283
    %713 = vmatpush.msra.mxu0 %v281
    %714 = vmatmul.f32.gmra.mxu0 %v696
    %v715 = vpop.f32.mrf.mxu0
    %v716 = vadd.f32 %v691, %v715
    %717 = vdwg.mxu0
    %718 = vmatpush.msra.mxu0 0.0
    %719 = vmatpush.msra.mxu0 0.0
    %720 = vmatpush.msra.mxu0 0.0
    %721 = vmatpush.msra.mxu0 0.0
    %722 = vmatpush.msra.mxu0 0.0
    %723 = vmatpush.msra.mxu0 0.0
    %724 = vmatpush.msra.mxu0 0.0
    %725 = vmatpush.msra.mxu0 0.0
    %726 = vmatpush.msra.mxu0 %v296
    %727 = vmatpush.msra.mxu0 %v294
    %728 = vmatpush.msra.mxu0 %v292
    %729 = vmatpush.msra.mxu0 %v290
    %730 = vmatpush.msra.mxu0 %v288
    %731 = vmatpush.msra.mxu0 %v286
    %732 = vmatpush.msra.mxu0 %v284
    %733 = vmatpush.msra.mxu0 %v282
    %734 = vmatmul.f32.gmra.mxu0 %v696
    %v735 = vpop.f32.mrf.mxu0
    %v736 = vadd.f32 %v692, %v735
    %737 = vdwg.mxu0
    %v738 = vxor.u32 %v716, 2147483648
    %v739 = vmul.f32 %v738, 1.442695
    %v740 = vpow.pop %v739
    %v741 = vadd.f32 %v740, 1.0
    %v742 = vrcp.pop %v741
    %v743 = vmul.f32 %v741, %v742
    %v744 = vsub.f32 1.0, %v743
    %v745 = vmul.f32 %v742, %v744
    %v746 = vadd.f32 %v742, %v745
    %vm747 = vweird.f32 %v741
    %vm748 = vweird.f32 %v742
    %vm749 = vmor %vm747, %vm748
    %v750 = vsel %vm749, %v742, %v746
    %v751 = vand.u32 2147483647, %v741
    %vm752 = vcmp.eq.f32.partialorder %v751, 8.507059e+37
    %v753 = vand.u32 %v741, 2147483648
    %v754 = vor.u32 1.1754944e-38, %v753
    %v755 = vsel %vm752, %v754, %v750
    %v756 = vmul.f32 1.0, %v755
    %v757 = vtanh.pop %v736
    %v758 = vmul.f32 %v756, %v666
    %v759 = vmul.f32 %v756, %v757
    %761 = vrot.lane.b32.xlu0 %v759, 64
    %v762 = vpop.permute.xlu0 %761
    %v764 = vadd.f32 %v758, %v762
    %v765 = vxor.u32 %v736, 2147483648
    %v766 = vmul.f32 %v765, 1.442695
    %v767 = vpow.pop %v766
    %v768 = vadd.f32 %v767, 1.0
    %v769 = vrcp.pop %v768
    %v770 = vmul.f32 %v768, %v769
    %v771 = vsub.f32 1.0, %v770
    %v772 = vmul.f32 %v769, %v771
    %v773 = vadd.f32 %v769, %v772
    %vm774 = vweird.f32 %v768
    %vm775 = vweird.f32 %v769
    %vm776 = vmor %vm774, %vm775
    %v777 = vsel %vm776, %v769, %v773
    %v778 = vand.u32 2147483647, %v768
    %vm779 = vcmp.eq.f32.partialorder %v778, 8.507059e+37
    %v780 = vand.u32 %v768, 2147483648
    %v781 = vor.u32 1.1754944e-38, %v780
    %v782 = vsel %vm779, %v781, %v777
    %v783 = vmul.f32 1.0, %v782
    %v784 = vtanh.pop %v764
    %v785 = vmul.f32 %v783, %v784
    %s786 = smul.u32 5, 2
    %s787 = smul.addr %s786, 8
    %s788 = scalar_lea.vmem [#allocation2], %s787
    %v789 = vld [vmem:[%s788] sm:$0xff]
    %v790 = vld [vmem:[%s788 + $0x8] sm:$0xff]
    %792 = vrot.lane.b32.xlu0 %v785, 64
    %v793 = vpop.permute.xlu0 %792
    %v794 = vsel %vm302, %v793, 0
    %796 = vmatpush.msra.mxu0 0.0
    %797 = vmatpush.msra.mxu0 0.0
    %798 = vmatpush.msra.mxu0 0.0
    %799 = vmatpush.msra.mxu0 0.0
    %800 = vmatpush.msra.mxu0 0.0
    %801 = vmatpush.msra.mxu0 0.0
    %802 = vmatpush.msra.mxu0 0.0
    %803 = vmatpush.msra.mxu0 0.0
    %804 = vmatpush.msra.mxu0 %v295
    %805 = vmatpush.msra.mxu0 %v293
    %806 = vmatpush.msra.mxu0 %v291
    %807 = vmatpush.msra.mxu0 %v289
    %808 = vmatpush.msra.mxu0 %v287
    %809 = vmatpush.msra.mxu0 %v285
    %810 = vmatpush.msra.mxu0 %v283
    %811 = vmatpush.msra.mxu0 %v281
    %812 = vmatmul.f32.gmra.mxu0 %v794
    %v813 = vpop.f32.mrf.mxu0
    %v814 = vadd.f32 %v789, %v813
    %815 = vdwg.mxu0
    %816 = vmatpush.msra.mxu0 0.0
    %817 = vmatpush.msra.mxu0 0.0
    %818 = vmatpush.msra.mxu0 0.0
    %819 = vmatpush.msra.mxu0 0.0
    %820 = vmatpush.msra.mxu0 0.0
    %821 = vmatpush.msra.mxu0 0.0
    %822 = vmatpush.msra.mxu0 0.0
    %823 = vmatpush.msra.mxu0 0.0
    %824 = vmatpush.msra.mxu0 %v296
    %825 = vmatpush.msra.mxu0 %v294
    %826 = vmatpush.msra.mxu0 %v292
    %827 = vmatpush.msra.mxu0 %v290
    %828 = vmatpush.msra.mxu0 %v288
    %829 = vmatpush.msra.mxu0 %v286
    %830 = vmatpush.msra.mxu0 %v284
    %831 = vmatpush.msra.mxu0 %v282
    %832 = vmatmul.f32.gmra.mxu0 %v794
    %v833 = vpop.f32.mrf.mxu0
    %v834 = vadd.f32 %v790, %v833
    %835 = vdwg.mxu0
    %v836 = vxor.u32 %v814, 2147483648
    %v837 = vmul.f32 %v836, 1.442695
    %v838 = vpow.pop %v837
    %v839 = vadd.f32 %v838, 1.0
    %v840 = vrcp.pop %v839
    %v841 = vmul.f32 %v839, %v840
    %v842 = vsub.f32 1.0, %v841
    %v843 = vmul.f32 %v840, %v842
    %v844 = vadd.f32 %v840, %v843
    %vm845 = vweird.f32 %v839
    %vm846 = vweird.f32 %v840
    %vm847 = vmor %vm845, %vm846
    %v848 = vsel %vm847, %v840, %v844
    %v849 = vand.u32 2147483647, %v839
    %vm850 = vcmp.eq.f32.partialorder %v849, 8.507059e+37
    %v851 = vand.u32 %v839, 2147483648
    %v852 = vor.u32 1.1754944e-38, %v851
    %v853 = vsel %vm850, %v852, %v848
    %v854 = vmul.f32 1.0, %v853
    %v855 = vtanh.pop %v834
    %v856 = vmul.f32 %v854, %v764
    %v857 = vmul.f32 %v854, %v855
    %859 = vrot.lane.b32.xlu0 %v857, 64
    %v860 = vpop.permute.xlu0 %859
    %v862 = vadd.f32 %v856, %v860
    %v863 = vxor.u32 %v834, 2147483648
    %v864 = vmul.f32 %v863, 1.442695
    %v865 = vpow.pop %v864
    %v866 = vadd.f32 %v865, 1.0
    %v867 = vrcp.pop %v866
    %v868 = vmul.f32 %v866, %v867
    %v869 = vsub.f32 1.0, %v868
    %v870 = vmul.f32 %v867, %v869
    %v871 = vadd.f32 %v867, %v870
    %vm872 = vweird.f32 %v866
    %vm873 = vweird.f32 %v867
    %vm874 = vmor %vm872, %vm873
    %v875 = vsel %vm874, %v867, %v871
    %v876 = vand.u32 2147483647, %v866
    %vm877 = vcmp.eq.f32.partialorder %v876, 8.507059e+37
    %v878 = vand.u32 %v866, 2147483648
    %v879 = vor.u32 1.1754944e-38, %v878
    %v880 = vsel %vm877, %v879, %v875
    %v881 = vmul.f32 1.0, %v880
    %v882 = vtanh.pop %v862
    %v883 = vmul.f32 %v881, %v882
    %s884 = smul.u32 6, 2
    %s885 = smul.addr %s884, 8
    %s886 = scalar_lea.vmem [#allocation2], %s885
    %v887 = vld [vmem:[%s886] sm:$0xff]
    %v888 = vld [vmem:[%s886 + $0x8] sm:$0xff]
    %890 = vrot.lane.b32.xlu0 %v883, 64
    %v891 = vpop.permute.xlu0 %890
    %v892 = vsel %vm302, %v891, 0
    %894 = vmatpush.msra.mxu0 0.0
    %895 = vmatpush.msra.mxu0 0.0
    %896 = vmatpush.msra.mxu0 0.0
    %897 = vmatpush.msra.mxu0 0.0
    %898 = vmatpush.msra.mxu0 0.0
    %899 = vmatpush.msra.mxu0 0.0
    %900 = vmatpush.msra.mxu0 0.0
    %901 = vmatpush.msra.mxu0 0.0
    %902 = vmatpush.msra.mxu0 %v295
    %903 = vmatpush.msra.mxu0 %v293
    %904 = vmatpush.msra.mxu0 %v291
    %905 = vmatpush.msra.mxu0 %v289
    %906 = vmatpush.msra.mxu0 %v287
    %907 = vmatpush.msra.mxu0 %v285
    %908 = vmatpush.msra.mxu0 %v283
    %909 = vmatpush.msra.mxu0 %v281
    %910 = vmatmul.f32.gmra.mxu0 %v892
    %v911 = vpop.f32.mrf.mxu0
    %v912 = vadd.f32 %v887, %v911
    %913 = vdwg.mxu0
    %914 = vmatpush.msra.mxu0 0.0
    %915 = vmatpush.msra.mxu0 0.0
    %916 = vmatpush.msra.mxu0 0.0
    %917 = vmatpush.msra.mxu0 0.0
    %918 = vmatpush.msra.mxu0 0.0
    %919 = vmatpush.msra.mxu0 0.0
    %920 = vmatpush.msra.mxu0 0.0
    %921 = vmatpush.msra.mxu0 0.0
    %922 = vmatpush.msra.mxu0 %v296
    %923 = vmatpush.msra.mxu0 %v294
    %924 = vmatpush.msra.mxu0 %v292
    %925 = vmatpush.msra.mxu0 %v290
    %926 = vmatpush.msra.mxu0 %v288
    %927 = vmatpush.msra.mxu0 %v286
    %928 = vmatpush.msra.mxu0 %v284
    %929 = vmatpush.msra.mxu0 %v282
    %930 = vmatmul.f32.gmra.mxu0 %v892
    %v931 = vpop.f32.mrf.mxu0
    %v932 = vadd.f32 %v888, %v931
    %933 = vdwg.mxu0
    %v934 = vxor.u32 %v912, 2147483648
    %v935 = vmul.f32 %v934, 1.442695
    %v936 = vpow.pop %v935
    %v937 = vadd.f32 %v936, 1.0
    %v938 = vrcp.pop %v937
    %v939 = vmul.f32 %v937, %v938
    %v940 = vsub.f32 1.0, %v939
    %v941 = vmul.f32 %v938, %v940
    %v942 = vadd.f32 %v938, %v941
    %vm943 = vweird.f32 %v937
    %vm944 = vweird.f32 %v938
    %vm945 = vmor %vm943, %vm944
    %v946 = vsel %vm945, %v938, %v942
    %v947 = vand.u32 2147483647, %v937
    %vm948 = vcmp.eq.f32.partialorder %v947, 8.507059e+37
    %v949 = vand.u32 %v937, 2147483648
    %v950 = vor.u32 1.1754944e-38, %v949
    %v951 = vsel %vm948, %v950, %v946
    %v952 = vmul.f32 1.0, %v951
    %v953 = vtanh.pop %v932
    %v954 = vmul.f32 %v952, %v862
    %v955 = vmul.f32 %v952, %v953
    %957 = vrot.lane.b32.xlu0 %v955, 64
    %v958 = vpop.permute.xlu0 %957
    %v960 = vadd.f32 %v954, %v958
    %v961 = vxor.u32 %v932, 2147483648
    %v962 = vmul.f32 %v961, 1.442695
    %v963 = vpow.pop %v962
    %v964 = vadd.f32 %v963, 1.0
    %v965 = vrcp.pop %v964
    %v966 = vmul.f32 %v964, %v965
    %v967 = vsub.f32 1.0, %v966
    %v968 = vmul.f32 %v965, %v967
    %v969 = vadd.f32 %v965, %v968
    %vm970 = vweird.f32 %v964
    %vm971 = vweird.f32 %v965
    %vm972 = vmor %vm970, %vm971
    %v973 = vsel %vm972, %v965, %v969
    %v974 = vand.u32 2147483647, %v964
    %vm975 = vcmp.eq.f32.partialorder %v974, 8.507059e+37
    %v976 = vand.u32 %v964, 2147483648
    %v977 = vor.u32 1.1754944e-38, %v976
    %v978 = vsel %vm975, %v977, %v973
    %v979 = vmul.f32 1.0, %v978
    %v980 = vtanh.pop %v960
    %v981 = vmul.f32 %v979, %v980
    %s982 = smul.u32 7, 2
    %s983 = smul.addr %s982, 8
    %s984 = scalar_lea.vmem [#allocation2], %s983
    %v985 = vld [vmem:[%s984] sm:$0xff]
    %v986 = vld [vmem:[%s984 + $0x8] sm:$0xff]
    %988 = vrot.lane.b32.xlu0 %v981, 64
    %v989 = vpop.permute.xlu0 %988
    %v990 = vsel %vm302, %v989, 0
    %992 = vmatpush.msra.mxu0 0.0
    %993 = vmatpush.msra.mxu0 0.0
    %994 = vmatpush.msra.mxu0 0.0
    %995 = vmatpush.msra.mxu0 0.0
    %996 = vmatpush.msra.mxu0 0.0
    %997 = vmatpush.msra.mxu0 0.0
    %998 = vmatpush.msra.mxu0 0.0
    %999 = vmatpush.msra.mxu0 0.0
    %1000 = vmatpush.msra.mxu0 %v295
    %1001 = vmatpush.msra.mxu0 %v293
    %1002 = vmatpush.msra.mxu0 %v291
    %1003 = vmatpush.msra.mxu0 %v289
    %1004 = vmatpush.msra.mxu0 %v287
    %1005 = vmatpush.msra.mxu0 %v285
    %1006 = vmatpush.msra.mxu0 %v283
    %1007 = vmatpush.msra.mxu0 %v281
    %1008 = vmatmul.f32.gmra.mxu0 %v990
    %v1009 = vpop.f32.mrf.mxu0
    %v1010 = vadd.f32 %v985, %v1009
    %1011 = vdwg.mxu0
    %1012 = vmatpush.msra.mxu0 0.0
    %1013 = vmatpush.msra.mxu0 0.0
    %1014 = vmatpush.msra.mxu0 0.0
    %1015 = vmatpush.msra.mxu0 0.0
    %1016 = vmatpush.msra.mxu0 0.0
    %1017 = vmatpush.msra.mxu0 0.0
    %1018 = vmatpush.msra.mxu0 0.0
    %1019 = vmatpush.msra.mxu0 0.0
    %1020 = vmatpush.msra.mxu0 %v296
    %1021 = vmatpush.msra.mxu0 %v294
    %1022 = vmatpush.msra.mxu0 %v292
    %1023 = vmatpush.msra.mxu0 %v290
    %1024 = vmatpush.msra.mxu0 %v288
    %1025 = vmatpush.msra.mxu0 %v286
    %1026 = vmatpush.msra.mxu0 %v284
    %1027 = vmatpush.msra.mxu0 %v282
    %1028 = vmatmul.f32.gmra.mxu0 %v990
    %v1029 = vpop.f32.mrf.mxu0
    %v1030 = vadd.f32 %v986, %v1029
    %1031 = vdwg.mxu0
    %v1032 = vxor.u32 %v1010, 2147483648
    %v1033 = vmul.f32 %v1032, 1.442695
    %v1034 = vpow.pop %v1033
    %v1035 = vadd.f32 %v1034, 1.0
    %v1036 = vrcp.pop %v1035
    %v1037 = vmul.f32 %v1035, %v1036
    %v1038 = vsub.f32 1.0, %v1037
    %v1039 = vmul.f32 %v1036, %v1038
    %v1040 = vadd.f32 %v1036, %v1039
    %vm1041 = vweird.f32 %v1035
    %vm1042 = vweird.f32 %v1036
    %vm1043 = vmor %vm1041, %vm1042
    %v1044 = vsel %vm1043, %v1036, %v1040
    %v1045 = vand.u32 2147483647, %v1035
    %vm1046 = vcmp.eq.f32.partialorder %v1045, 8.507059e+37
    %v1047 = vand.u32 %v1035, 2147483648
    %v1048 = vor.u32 1.1754944e-38, %v1047
    %v1049 = vsel %vm1046, %v1048, %v1044
    %v1050 = vmul.f32 1.0, %v1049
    %v1051 = vtanh.pop %v1030
    %v1052 = vmul.f32 %v1050, %v960
    %v1053 = vmul.f32 %v1050, %v1051
    %1055 = vrot.lane.b32.xlu0 %v1053, 64
    %v1056 = vpop.permute.xlu0 %1055
    %v1058 = vadd.f32 %v1052, %v1056
    %v1059 = vxor.u32 %v1030, 2147483648
    %v1060 = vmul.f32 %v1059, 1.442695
    %v1061 = vpow.pop %v1060
    %v1062 = vadd.f32 %v1061, 1.0
    %v1063 = vrcp.pop %v1062
    %v1064 = vmul.f32 %v1062, %v1063
    %v1065 = vsub.f32 1.0, %v1064
    %v1066 = vmul.f32 %v1063, %v1065
    %v1067 = vadd.f32 %v1063, %v1066
    %vm1068 = vweird.f32 %v1062
    %vm1069 = vweird.f32 %v1063
    %vm1070 = vmor %vm1068, %vm1069
    %v1071 = vsel %vm1070, %v1063, %v1067
    %v1072 = vand.u32 2147483647, %v1062
    %vm1073 = vcmp.eq.f32.partialorder %v1072, 8.507059e+37
    %v1074 = vand.u32 %v1062, 2147483648
    %v1075 = vor.u32 1.1754944e-38, %v1074
    %v1076 = vsel %vm1073, %v1075, %v1071
    %v1077 = vmul.f32 1.0, %v1076
    %v1078 = vtanh.pop %v1058
    %v1079 = vmul.f32 %v1077, %v1078
    %v1080 = vld [vmem:[%s4] sm:$0xff]
    %v1081 = vld [vmem:[%s4 + $0x8] sm:$0xff]
    %v1082 = vld [vmem:[%s4 + $0x10] sm:$0xff]
    %v1083 = vld [vmem:[%s4 + $0x18] sm:$0xff]
    %v1084 = vld [vmem:[%s4 + $0x20] sm:$0xff]
    %v1085 = vld [vmem:[%s4 + $0x28] sm:$0xff]
    %v1086 = vld [vmem:[%s4 + $0x30] sm:$0xff]
    %v1087 = vld [vmem:[%s4 + $0x38] sm:$0xff]
    %v1088 = vld [vmem:[%s6] sm:$0x1]
    %v1090 = vperm.slane %v1088, 0
    %1093 = vrot.lane.b32.xlu0 %v1079, 64
    %v1094 = vpop.permute.xlu0 %1093
    %v1095 = vsel %vm302, %v1094, 0
    %1097 = vmatpush.msra.mxu0 0.0
    %1098 = vmatpush.msra.mxu0 0.0
    %1099 = vmatpush.msra.mxu0 0.0
    %1100 = vmatpush.msra.mxu0 0.0
    %1101 = vmatpush.msra.mxu0 0.0
    %1102 = vmatpush.msra.mxu0 0.0
    %1103 = vmatpush.msra.mxu0 0.0
    %1104 = vmatpush.msra.mxu0 0.0
    %1105 = vmatpush.msra.mxu0 %v1087
    %1106 = vmatpush.msra.mxu0 %v1086
    %1107 = vmatpush.msra.mxu0 %v1085
    %1108 = vmatpush.msra.mxu0 %v1084
    %1109 = vmatpush.msra.mxu0 %v1083
    %1110 = vmatpush.msra.mxu0 %v1082
    %1111 = vmatpush.msra.mxu0 %v1081
    %1112 = vmatpush.msra.mxu0 %v1080
    %1113 = vmatmul.f32.gmra.mxu0 %v1095
    %v1114 = vpop.f32.mrf.mxu0
    %v1115 = vadd.f32 %v1090, %v1114
    %1116 = vdwg.mxu0
    %v1117 = vld [vmem:[%s9] sm:$0x3]
    %v1119 = vperm.slane %v1117, 0
    %v1120 = vperm.slane %v1117, 1
    %v1123 = vld [vmem:[#allocation12] sm:$0xff]
    %v1124 = vld [vmem:[#allocation12 + $0x8] sm:$0xff]
    %v1125 = vld [vmem:[#allocation12 + $0x10] sm:$0xff]
    %v1126 = vld [vmem:[#allocation12 + $0x18] sm:$0xff]
    %v1127 = vld [vmem:[#allocation12 + $0x20] sm:$0xff]
    %v1128 = vld [vmem:[#allocation12 + $0x28] sm:$0xff]
    %v1129 = vld [vmem:[#allocation12 + $0x30] sm:$0xff]
    %v1130 = vld [vmem:[#allocation12 + $0x38] sm:$0xff]
    %v1131 = vld [vmem:[#allocation12 + $0x40] sm:$0xff]
    %v1132 = vld [vmem:[#allocation12 + $0x48] sm:$0xff]
    %v1133 = vld [vmem:[#allocation12 + $0x50] sm:$0xff]
    %v1134 = vld [vmem:[#allocation12 + $0x58] sm:$0xff]
    %v1135 = vld [vmem:[#allocation12 + $0x60] sm:$0xff]
    %v1136 = vld [vmem:[#allocation12 + $0x68] sm:$0xff]
    %v1137 = vld [vmem:[#allocation12 + $0x70] sm:$0xff]
    %v1138 = vld [vmem:[#allocation12 + $0x78] sm:$0xff]
    %v1139 = vld [vmem:[#allocation9] sm:$0xff]
    %v1140 = vld [vmem:[#allocation9 + $0x8] sm:$0xff]
    %v1141 = vld [vmem:[#allocation9 + $0x10] sm:$0xff]
    %v1142 = vld [vmem:[#allocation9 + $0x18] sm:$0xff]
    %vm1143 = vcmask 261120
    %v1144 = vsel %vm1143, 0.0, 0
    %1146 = vmatpush.msra.mxu0 0.0
    %1147 = vmatpush.msra.mxu0 0.0
    %1148 = vmatpush.msra.mxu0 0.0
    %1149 = vmatpush.msra.mxu0 0.0
    %1150 = vmatpush.msra.mxu0 0.0
    %1151 = vmatpush.msra.mxu0 0.0
    %1152 = vmatpush.msra.mxu0 0.0
    %1153 = vmatpush.msra.mxu0 0.0
    %1154 = vmatpush.msra.mxu0 0.0
    %1155 = vmatpush.msra.mxu0 0.0
    %1156 = vmatpush.msra.mxu0 0.0
    %1157 = vmatpush.msra.mxu0 0.0
    %1158 = vmatpush.msra.mxu0 %v1142
    %1159 = vmatpush.msra.mxu0 %v1141
    %1160 = vmatpush.msra.mxu0 %v1140
    %1161 = vmatpush.msra.mxu0 %v1139
    %1162 = vmatmul.f32.gmra.mxu0 %v1144
    %v1163 = vpop.f32.mrf.mxu0
    %v1164 = vadd.f32 %v1115, %v1163
    %1165 = vdwg.mxu0
    %v1166 = vxor.u32 %v1164, 2147483648
    %v1167 = vmul.f32 %v1166, 1.442695
    %v1168 = vpow.pop %v1167
    %v1169 = vadd.f32 %v1168, 1.0
    %v1170 = vrcp.pop %v1169
    %v1171 = vmul.f32 %v1169, %v1170
    %v1172 = vsub.f32 1.0, %v1171
    %v1173 = vmul.f32 %v1170, %v1172
    %v1174 = vadd.f32 %v1170, %v1173
    %vm1175 = vweird.f32 %v1169
    %vm1176 = vweird.f32 %v1170
    %vm1177 = vmor %vm1175, %vm1176
    %v1178 = vsel %vm1177, %v1170, %v1174
    %v1179 = vand.u32 2147483647, %v1169
    %vm1180 = vcmp.eq.f32.partialorder %v1179, 8.507059e+37
    %v1181 = vand.u32 %v1169, 2147483648
    %v1182 = vor.u32 1.1754944e-38, %v1181
    %v1183 = vsel %vm1180, %v1182, %v1178
    %v1184 = vmul.f32 1.0, %v1183
    %v1185 = vtanh.pop %v1164
    %v1186 = vmul.f32 %v1184, 0.0
    %1188 = vrot.lane.b32.xlu0 %v1185, 64
    %v1189 = vpop.permute.xlu0 %1188
    %v1191 = vmul.f32 %v1184, %v1189
    %1193 = vrot.lane.b32.xlu0 %v1191, 32
    %v1194 = vpop.permute.xlu0 %1193
    %v1196 = vadd.f32 %v1186, %v1194
    %v1197 = vtanh.pop %v1196
    %1199 = vrot.lane.b32.xlu0 %v1197, 64
    %v1200 = vpop.permute.xlu0 %1199
    %v1202 = vmul.f32 %v1184, %v1200
    %v1203 = vld [vmem:[#allocation10] sm:$0xff]
    %v1204 = vld [vmem:[#allocation10 + $0x8] sm:$0xff]
    %v1205 = vld [vmem:[#allocation10 + $0x10] sm:$0xff]
    %v1206 = vld [vmem:[#allocation10 + $0x18] sm:$0xff]
    %v1207 = vld [vmem:[#allocation10 + $0x20] sm:$0xff]
    %v1208 = vld [vmem:[#allocation10 + $0x28] sm:$0xff]
    %v1209 = vld [vmem:[#allocation10 + $0x30] sm:$0xff]
    %v1210 = vld [vmem:[#allocation10 + $0x38] sm:$0xff]
    %1212 = vrot.lane.b32.xlu0 %v1202, 32
    %v1213 = vpop.permute.xlu0 %1212
    %v1214 = vsel %vm1143, %v1213, 0
    %1216 = vmatpush.msra.mxu0 0.0
    %1217 = vmatpush.msra.mxu0 0.0
    %1218 = vmatpush.msra.mxu0 0.0
    %1219 = vmatpush.msra.mxu0 0.0
    %1220 = vmatpush.msra.mxu0 0.0
    %1221 = vmatpush.msra.mxu0 0.0
    %1222 = vmatpush.msra.mxu0 0.0
    %1223 = vmatpush.msra.mxu0 0.0
    %1224 = vmatpush.msra.mxu0 0.0
    %1225 = vmatpush.msra.mxu0 0.0
    %1226 = vmatpush.msra.mxu0 0.0
    %1227 = vmatpush.msra.mxu0 0.0
    %1228 = vmatpush.msra.mxu0 %v1209
    %1229 = vmatpush.msra.mxu0 %v1207
    %1230 = vmatpush.msra.mxu0 %v1205
    %1231 = vmatpush.msra.mxu0 %v1203
    %1232 = vmatmul.f32.gmra.mxu0 %v1214
    %v1233 = vpop.f32.mrf.mxu0
    %v1234 = vadd.f32 0.0, %v1233
    %1235 = vdwg.mxu0
    %1236 = vmatpush.msra.mxu0 0.0
    %1237 = vmatpush.msra.mxu0 0.0
    %1238 = vmatpush.msra.mxu0 0.0
    %1239 = vmatpush.msra.mxu0 0.0
    %1240 = vmatpush.msra.mxu0 0.0
    %1241 = vmatpush.msra.mxu0 0.0
    %1242 = vmatpush.msra.mxu0 0.0
    %1243 = vmatpush.msra.mxu0 0.0
    %1244 = vmatpush.msra.mxu0 0.0
    %1245 = vmatpush.msra.mxu0 0.0
    %1246 = vmatpush.msra.mxu0 0.0
    %1247 = vmatpush.msra.mxu0 0.0
    %1248 = vmatpush.msra.mxu0 %v1210
    %1249 = vmatpush.msra.mxu0 %v1208
    %1250 = vmatpush.msra.mxu0 %v1206
    %1251 = vmatpush.msra.mxu0 %v1204
    %1252 = vmatmul.f32.gmra.mxu0 %v1214
    %v1253 = vpop.f32.mrf.mxu0
    %v1254 = vadd.f32 0.0, %v1253
    %1255 = vdwg.mxu0
    %1256 = vmatpush.msra.mxu0 0.0
    %1257 = vmatpush.msra.mxu0 0.0
    %1258 = vmatpush.msra.mxu0 0.0
    %1259 = vmatpush.msra.mxu0 0.0
    %1260 = vmatpush.msra.mxu0 0.0
    %1261 = vmatpush.msra.mxu0 0.0
    %1262 = vmatpush.msra.mxu0 0.0
    %1263 = vmatpush.msra.mxu0 0.0
    %1264 = vmatpush.msra.mxu0 %v1137
    %1265 = vmatpush.msra.mxu0 %v1135
    %1266 = vmatpush.msra.mxu0 %v1133
    %1267 = vmatpush.msra.mxu0 %v1131
    %1268 = vmatpush.msra.mxu0 %v1129
    %1269 = vmatpush.msra.mxu0 %v1127
    %1270 = vmatpush.msra.mxu0 %v1125
    %1271 = vmatpush.msra.mxu0 %v1123
    %1272 = vmatmul.f32.gmra.mxu0 %v304
    %v1273 = vpop.f32.mrf.mxu0
    %v1274 = vadd.f32 %v1234, %v1273
    %1275 = vdwg.mxu0
    %1276 = vmatpush.msra.mxu0 0.0
    %1277 = vmatpush.msra.mxu0 0.0
    %1278 = vmatpush.msra.mxu0 0.0
    %1279 = vmatpush.msra.mxu0 0.0
    %1280 = vmatpush.msra.mxu0 0.0
    %1281 = vmatpush.msra.mxu0 0.0
    %1282 = vmatpush.msra.mxu0 0.0
    %1283 = vmatpush.msra.mxu0 0.0
    %1284 = vmatpush.msra.mxu0 %v1138
    %1285 = vmatpush.msra.mxu0 %v1136
    %1286 = vmatpush.msra.mxu0 %v1134
    %1287 = vmatpush.msra.mxu0 %v1132
    %1288 = vmatpush.msra.mxu0 %v1130
    %1289 = vmatpush.msra.mxu0 %v1128
    %1290 = vmatpush.msra.mxu0 %v1126
    %1291 = vmatpush.msra.mxu0 %v1124
    %1292 = vmatmul.f32.gmra.mxu0 %v304
    %v1293 = vpop.f32.mrf.mxu0
    %v1294 = vadd.f32 %v1254, %v1293
    %1295 = vdwg.mxu0
    %v1296 = vadd.f32 %v1274, %v1119
    %v1297 = vadd.f32 %v1294, %v1120
    %v1298 = vxor.u32 %v1296, 2147483648
    %v1299 = vmul.f32 %v1298, 1.442695
    %v1300 = vpow.pop %v1299
    %v1301 = vadd.f32 %v1300, 1.0
    %v1302 = vrcp.pop %v1301
    %v1303 = vmul.f32 %v1301, %v1302
    %v1304 = vsub.f32 1.0, %v1303
    %v1305 = vmul.f32 %v1302, %v1304
    %v1306 = vadd.f32 %v1302, %v1305
    %vm1307 = vweird.f32 %v1301
    %vm1308 = vweird.f32 %v1302
    %vm1309 = vmor %vm1307, %vm1308
    %v1310 = vsel %vm1309, %v1302, %v1306
    %v1311 = vand.u32 2147483647, %v1301
    %vm1312 = vcmp.eq.f32.partialorder %v1311, 8.507059e+37
    %v1313 = vand.u32 %v1301, 2147483648
    %v1314 = vor.u32 1.1754944e-38, %v1313
    %v1315 = vsel %vm1312, %v1314, %v1310
    %v1316 = vmul.f32 1.0, %v1315
    %v1317 = vtanh.pop %v1297
    %v1318 = vmul.f32 %v1316, 0.0
    %v1319 = vmul.f32 %v1316, %v1317
    %1321 = vrot.lane.b32.xlu0 %v1319, 64
    %v1322 = vpop.permute.xlu0 %1321
    %v1324 = vadd.f32 %v1318, %v1322
    %v1325 = vxor.u32 %v1297, 2147483648
    %v1326 = vmul.f32 %v1325, 1.442695
    %v1327 = vpow.pop %v1326
    %v1328 = vadd.f32 %v1327, 1.0
    %v1329 = vrcp.pop %v1328
    %v1330 = vmul.f32 %v1328, %v1329
    %v1331 = vsub.f32 1.0, %v1330
    %v1332 = vmul.f32 %v1329, %v1331
    %v1333 = vadd.f32 %v1329, %v1332
    %vm1334 = vweird.f32 %v1328
    %vm1335 = vweird.f32 %v1329
    %vm1336 = vmor %vm1334, %vm1335
    %v1337 = vsel %vm1336, %v1329, %v1333
    %v1338 = vand.u32 2147483647, %v1328
    %vm1339 = vcmp.eq.f32.partialorder %v1338, 8.507059e+37
    %v1340 = vand.u32 %v1328, 2147483648
    %v1341 = vor.u32 1.1754944e-38, %v1340
    %v1342 = vsel %vm1339, %v1341, %v1337
    %v1343 = vmul.f32 1.0, %v1342
    %v1344 = vtanh.pop %v1324
    %v1345 = vmul.f32 %v1343, %v1344
    %1347 = vrot.lane.b32.xlu0 %v1345, 64
    %v1348 = vpop.permute.xlu0 %1347
    %1350 = vst.msk [vmem:[#allocation3] sm:$0xff] %vm302, %v1348
    %v1351 = vld [vmem:[#allocation12] sm:$0xff]
    %v1352 = vld [vmem:[#allocation12 + $0x8] sm:$0xff]
    %v1353 = vld [vmem:[#allocation12 + $0x10] sm:$0xff]
    %v1354 = vld [vmem:[#allocation12 + $0x18] sm:$0xff]
    %v1355 = vld [vmem:[#allocation12 + $0x20] sm:$0xff]
    %v1356 = vld [vmem:[#allocation12 + $0x28] sm:$0xff]
    %v1357 = vld [vmem:[#allocation12 + $0x30] sm:$0xff]
    %v1358 = vld [vmem:[#allocation12 + $0x38] sm:$0xff]
    %v1359 = vld [vmem:[#allocation12 + $0x40] sm:$0xff]
    %v1360 = vld [vmem:[#allocation12 + $0x48] sm:$0xff]
    %v1361 = vld [vmem:[#allocation12 + $0x50] sm:$0xff]
    %v1362 = vld [vmem:[#allocation12 + $0x58] sm:$0xff]
    %v1363 = vld [vmem:[#allocation12 + $0x60] sm:$0xff]
    %v1364 = vld [vmem:[#allocation12 + $0x68] sm:$0xff]
    %v1365 = vld [vmem:[#allocation12 + $0x70] sm:$0xff]
    %v1366 = vld [vmem:[#allocation12 + $0x78] sm:$0xff]
    %v1367 = vld [vmem:[#allocation9] sm:$0xff]
    %v1368 = vld [vmem:[#allocation9 + $0x8] sm:$0xff]
    %v1369 = vld [vmem:[#allocation9 + $0x10] sm:$0xff]
    %v1370 = vld [vmem:[#allocation9 + $0x18] sm:$0xff]
    %1371 = vmatpush.msra.mxu0 0.0
    %1372 = vmatpush.msra.mxu0 0.0
    %1373 = vmatpush.msra.mxu0 0.0
    %1374 = vmatpush.msra.mxu0 0.0
    %1375 = vmatpush.msra.mxu0 0.0
    %1376 = vmatpush.msra.mxu0 0.0
    %1377 = vmatpush.msra.mxu0 0.0
    %1378 = vmatpush.msra.mxu0 0.0
    %1379 = vmatpush.msra.mxu0 0.0
    %1380 = vmatpush.msra.mxu0 0.0
    %1381 = vmatpush.msra.mxu0 0.0
    %1382 = vmatpush.msra.mxu0 0.0
    %1383 = vmatpush.msra.mxu0 %v1370
    %1384 = vmatpush.msra.mxu0 %v1369
    %1385 = vmatpush.msra.mxu0 %v1368
    %1386 = vmatpush.msra.mxu0 %v1367
    %1387 = vmatmul.f32.gmra.mxu0 %v1214
    %v1388 = vpop.f32.mrf.mxu0
    %v1389 = vadd.f32 %v1115, %v1388
    %1390 = vdwg.mxu0
    %v1391 = vxor.u32 %v1389, 2147483648
    %v1392 = vmul.f32 %v1391, 1.442695
    %v1393 = vpow.pop %v1392
    %v1394 = vadd.f32 %v1393, 1.0
    %v1395 = vrcp.pop %v1394
    %v1396 = vmul.f32 %v1394, %v1395
    %v1397 = vsub.f32 1.0, %v1396
    %v1398 = vmul.f32 %v1395, %v1397
    %v1399 = vadd.f32 %v1395, %v1398
    %vm1400 = vweird.f32 %v1394
    %vm1401 = vweird.f32 %v1395
    %vm1402 = vmor %vm1400, %vm1401
    %v1403 = vsel %vm1402, %v1395, %v1399
    %v1404 = vand.u32 2147483647, %v1394
    %vm1405 = vcmp.eq.f32.partialorder %v1404, 8.507059e+37
    %v1406 = vand.u32 %v1394, 2147483648
    %v1407 = vor.u32 1.1754944e-38, %v1406
    %v1408 = vsel %vm1405, %v1407, %v1403
    %v1409 = vmul.f32 1.0, %v1408
    %v1410 = vtanh.pop %v1389
    %v1411 = vmul.f32 %v1409, %v1196
    %1413 = vrot.lane.b32.xlu0 %v1410, 64
    %v1414 = vpop.permute.xlu0 %1413
    %v1416 = vmul.f32 %v1409, %v1414
    %1418 = vrot.lane.b32.xlu0 %v1416, 32
    %v1419 = vpop.permute.xlu0 %1418
    %v1421 = vadd.f32 %v1411, %v1419
    %v1422 = vtanh.pop %v1421
    %1424 = vrot.lane.b32.xlu0 %v1422, 64
    %v1425 = vpop.permute.xlu0 %1424
    %v1427 = vmul.f32 %v1409, %v1425
    %v1428 = vld [vmem:[#allocation10] sm:$0xff]
    %v1429 = vld [vmem:[#allocation10 + $0x8] sm:$0xff]
    %v1430 = vld [vmem:[#allocation10 + $0x10] sm:$0xff]
    %v1431 = vld [vmem:[#allocation10 + $0x18] sm:$0xff]
    %v1432 = vld [vmem:[#allocation10 + $0x20] sm:$0xff]
    %v1433 = vld [vmem:[#allocation10 + $0x28] sm:$0xff]
    %v1434 = vld [vmem:[#allocation10 + $0x30] sm:$0xff]
    %v1435 = vld [vmem:[#allocation10 + $0x38] sm:$0xff]
    %1437 = vrot.lane.b32.xlu0 %v1427, 32
    %v1438 = vpop.permute.xlu0 %1437
    %v1439 = vsel %vm1143, %v1438, 0
    %1441 = vmatpush.msra.mxu0 0.0
    %1442 = vmatpush.msra.mxu0 0.0
    %1443 = vmatpush.msra.mxu0 0.0
    %1444 = vmatpush.msra.mxu0 0.0
    %1445 = vmatpush.msra.mxu0 0.0
    %1446 = vmatpush.msra.mxu0 0.0
    %1447 = vmatpush.msra.mxu0 0.0
    %1448 = vmatpush.msra.mxu0 0.0
    %1449 = vmatpush.msra.mxu0 0.0
    %1450 = vmatpush.msra.mxu0 0.0
    %1451 = vmatpush.msra.mxu0 0.0
    %1452 = vmatpush.msra.mxu0 0.0
    %1453 = vmatpush.msra.mxu0 %v1434
    %1454 = vmatpush.msra.mxu0 %v1432
    %1455 = vmatpush.msra.mxu0 %v1430
    %1456 = vmatpush.msra.mxu0 %v1428
    %1457 = vmatmul.f32.gmra.mxu0 %v1439
    %v1458 = vpop.f32.mrf.mxu0
    %v1459 = vadd.f32 0.0, %v1458
    %1460 = vdwg.mxu0
    %1461 = vmatpush.msra.mxu0 0.0
    %1462 = vmatpush.msra.mxu0 0.0
    %1463 = vmatpush.msra.mxu0 0.0
    %1464 = vmatpush.msra.mxu0 0.0
    %1465 = vmatpush.msra.mxu0 0.0
    %1466 = vmatpush.msra.mxu0 0.0
    %1467 = vmatpush.msra.mxu0 0.0
    %1468 = vmatpush.msra.mxu0 0.0
    %1469 = vmatpush.msra.mxu0 0.0
    %1470 = vmatpush.msra.mxu0 0.0
    %1471 = vmatpush.msra.mxu0 0.0
    %1472 = vmatpush.msra.mxu0 0.0
    %1473 = vmatpush.msra.mxu0 %v1435
    %1474 = vmatpush.msra.mxu0 %v1433
    %1475 = vmatpush.msra.mxu0 %v1431
    %1476 = vmatpush.msra.mxu0 %v1429
    %1477 = vmatmul.f32.gmra.mxu0 %v1439
    %v1478 = vpop.f32.mrf.mxu0
    %v1479 = vadd.f32 0.0, %v1478
    %1480 = vdwg.mxu0
    %v1481 = vsel %vm302, %v1348, 0
    %1483 = vmatpush.msra.mxu0 0.0
    %1484 = vmatpush.msra.mxu0 0.0
    %1485 = vmatpush.msra.mxu0 0.0
    %1486 = vmatpush.msra.mxu0 0.0
    %1487 = vmatpush.msra.mxu0 0.0
    %1488 = vmatpush.msra.mxu0 0.0
    %1489 = vmatpush.msra.mxu0 0.0
    %1490 = vmatpush.msra.mxu0 0.0
    %1491 = vmatpush.msra.mxu0 %v1365
    %1492 = vmatpush.msra.mxu0 %v1363
    %1493 = vmatpush.msra.mxu0 %v1361
    %1494 = vmatpush.msra.mxu0 %v1359
    %1495 = vmatpush.msra.mxu0 %v1357
    %1496 = vmatpush.msra.mxu0 %v1355
    %1497 = vmatpush.msra.mxu0 %v1353
    %1498 = vmatpush.msra.mxu0 %v1351
    %1499 = vmatmul.f32.gmra.mxu0 %v1481
    %v1500 = vpop.f32.mrf.mxu0
    %v1501 = vadd.f32 %v1459, %v1500
    %1502 = vdwg.mxu0
    %1503 = vmatpush.msra.mxu0 0.0
    %1504 = vmatpush.msra.mxu0 0.0
    %1505 = vmatpush.msra.mxu0 0.0
    %1506 = vmatpush.msra.mxu0 0.0
    %1507 = vmatpush.msra.mxu0 0.0
    %1508 = vmatpush.msra.mxu0 0.0
    %1509 = vmatpush.msra.mxu0 0.0
    %1510 = vmatpush.msra.mxu0 0.0
    %1511 = vmatpush.msra.mxu0 %v1366
    %1512 = vmatpush.msra.mxu0 %v1364
    %1513 = vmatpush.msra.mxu0 %v1362
    %1514 = vmatpush.msra.mxu0 %v1360
    %1515 = vmatpush.msra.mxu0 %v1358
    %1516 = vmatpush.msra.mxu0 %v1356
    %1517 = vmatpush.msra.mxu0 %v1354
    %1518 = vmatpush.msra.mxu0 %v1352
    %1519 = vmatmul.f32.gmra.mxu0 %v1481
    %v1520 = vpop.f32.mrf.mxu0
    %v1521 = vadd.f32 %v1479, %v1520
    %1522 = vdwg.mxu0
    %v1523 = vadd.f32 %v1501, %v1119
    %v1524 = vadd.f32 %v1521, %v1120
    %v1525 = vxor.u32 %v1523, 2147483648
    %v1526 = vmul.f32 %v1525, 1.442695
    %v1527 = vpow.pop %v1526
    %v1528 = vadd.f32 %v1527, 1.0
    %v1529 = vrcp.pop %v1528
    %v1530 = vmul.f32 %v1528, %v1529
    %v1531 = vsub.f32 1.0, %v1530
    %v1532 = vmul.f32 %v1529, %v1531
    %v1533 = vadd.f32 %v1529, %v1532
    %vm1534 = vweird.f32 %v1528
    %vm1535 = vweird.f32 %v1529
    %vm1536 = vmor %vm1534, %vm1535
    %v1537 = vsel %vm1536, %v1529, %v1533
    %v1538 = vand.u32 2147483647, %v1528
    %vm1539 = vcmp.eq.f32.partialorder %v1538, 8.507059e+37
    %v1540 = vand.u32 %v1528, 2147483648
    %v1541 = vor.u32 1.1754944e-38, %v1540
    %v1542 = vsel %vm1539, %v1541, %v1537
    %v1543 = vmul.f32 1.0, %v1542
    %v1544 = vtanh.pop %v1524
    %v1545 = vmul.f32 %v1543, %v1324
    %v1546 = vmul.f32 %v1543, %v1544
    %1548 = vrot.lane.b32.xlu0 %v1546, 64
    %v1549 = vpop.permute.xlu0 %1548
    %v1551 = vadd.f32 %v1545, %v1549
    %v1552 = vxor.u32 %v1524, 2147483648
    %v1553 = vmul.f32 %v1552, 1.442695
    %v1554 = vpow.pop %v1553
    %v1555 = vadd.f32 %v1554, 1.0
    %v1556 = vrcp.pop %v1555
    %v1557 = vmul.f32 %v1555, %v1556
    %v1558 = vsub.f32 1.0, %v1557
    %v1559 = vmul.f32 %v1556, %v1558
    %v1560 = vadd.f32 %v1556, %v1559
    %vm1561 = vweird.f32 %v1555
    %vm1562 = vweird.f32 %v1556
    %vm1563 = vmor %vm1561, %vm1562
    %v1564 = vsel %vm1563, %v1556, %v1560
    %v1565 = vand.u32 2147483647, %v1555
    %vm1566 = vcmp.eq.f32.partialorder %v1565, 8.507059e+37
    %v1567 = vand.u32 %v1555, 2147483648
    %v1568 = vor.u32 1.1754944e-38, %v1567
    %v1569 = vsel %vm1566, %v1568, %v1564
    %v1570 = vmul.f32 1.0, %v1569
    %v1571 = vtanh.pop %v1551
    %v1572 = vmul.f32 %v1570, %v1571
    %1574 = vrot.lane.b32.xlu0 %v1572, 64
    %v1575 = vpop.permute.xlu0 %1574
    %s1577 = scalar_lea.vmem [#allocation3], 8
    %1578 = vst.msk [vmem:[%s1577] sm:$0xff] %vm302, %v1575
    %v1579 = vld [vmem:[#allocation12] sm:$0xff]
    %v1580 = vld [vmem:[#allocation12 + $0x8] sm:$0xff]
    %v1581 = vld [vmem:[#allocation12 + $0x10] sm:$0xff]
    %v1582 = vld [vmem:[#allocation12 + $0x18] sm:$0xff]
    %v1583 = vld [vmem:[#allocation12 + $0x20] sm:$0xff]
    %v1584 = vld [vmem:[#allocation12 + $0x28] sm:$0xff]
    %v1585 = vld [vmem:[#allocation12 + $0x30] sm:$0xff]
    %v1586 = vld [vmem:[#allocation12 + $0x38] sm:$0xff]
    %v1587 = vld [vmem:[#allocation12 + $0x40] sm:$0xff]
    %v1588 = vld [vmem:[#allocation12 + $0x48] sm:$0xff]
    %v1589 = vld [vmem:[#allocation12 + $0x50] sm:$0xff]
    %v1590 = vld [vmem:[#allocation12 + $0x58] sm:$0xff]
    %v1591 = vld [vmem:[#allocation12 + $0x60] sm:$0xff]
    %v1592 = vld [vmem:[#allocation12 + $0x68] sm:$0xff]
    %v1593 = vld [vmem:[#allocation12 + $0x70] sm:$0xff]
    %v1594 = vld [vmem:[#allocation12 + $0x78] sm:$0xff]
    %v1595 = vld [vmem:[#allocation9] sm:$0xff]
    %v1596 = vld [vmem:[#allocation9 + $0x8] sm:$0xff]
    %v1597 = vld [vmem:[#allocation9 + $0x10] sm:$0xff]
    %v1598 = vld [vmem:[#allocation9 + $0x18] sm:$0xff]
    %1599 = vmatpush.msra.mxu0 0.0
    %1600 = vmatpush.msra.mxu0 0.0
    %1601 = vmatpush.msra.mxu0 0.0
    %1602 = vmatpush.msra.mxu0 0.0
    %1603 = vmatpush.msra.mxu0 0.0
    %1604 = vmatpush.msra.mxu0 0.0
    %1605 = vmatpush.msra.mxu0 0.0
    %1606 = vmatpush.msra.mxu0 0.0
    %1607 = vmatpush.msra.mxu0 0.0
    %1608 = vmatpush.msra.mxu0 0.0
    %1609 = vmatpush.msra.mxu0 0.0
    %1610 = vmatpush.msra.mxu0 0.0
    %1611 = vmatpush.msra.mxu0 %v1598
    %1612 = vmatpush.msra.mxu0 %v1597
    %1613 = vmatpush.msra.mxu0 %v1596
    %1614 = vmatpush.msra.mxu0 %v1595
    %1615 = vmatmul.f32.gmra.mxu0 %v1439
    %v1616 = vpop.f32.mrf.mxu0
    %v1617 = vadd.f32 %v1115, %v1616
    %1618 = vdwg.mxu0
    %v1619 = vxor.u32 %v1617, 2147483648
    %v1620 = vmul.f32 %v1619, 1.442695
    %v1621 = vpow.pop %v1620
    %v1622 = vadd.f32 %v1621, 1.0
    %v1623 = vrcp.pop %v1622
    %v1624 = vmul.f32 %v1622, %v1623
    %v1625 = vsub.f32 1.0, %v1624
    %v1626 = vmul.f32 %v1623, %v1625
    %v1627 = vadd.f32 %v1623, %v1626
    %vm1628 = vweird.f32 %v1622
    %vm1629 = vweird.f32 %v1623
    %vm1630 = vmor %vm1628, %vm1629
    %v1631 = vsel %vm1630, %v1623, %v1627
    %v1632 = vand.u32 2147483647, %v1622
    %vm1633 = vcmp.eq.f32.partialorder %v1632, 8.507059e+37
    %v1634 = vand.u32 %v1622, 2147483648
    %v1635 = vor.u32 1.1754944e-38, %v1634
    %v1636 = vsel %vm1633, %v1635, %v1631
    %v1637 = vmul.f32 1.0, %v1636
    %v1638 = vtanh.pop %v1617
    %v1639 = vmul.f32 %v1637, %v1421
    %1641 = vrot.lane.b32.xlu0 %v1638, 64
    %v1642 = vpop.permute.xlu0 %1641
    %v1644 = vmul.f32 %v1637, %v1642
    %1646 = vrot.lane.b32.xlu0 %v1644, 32
    %v1647 = vpop.permute.xlu0 %1646
    %v1649 = vadd.f32 %v1639, %v1647
    %v1650 = vtanh.pop %v1649
    %1652 = vrot.lane.b32.xlu0 %v1650, 64
    %v1653 = vpop.permute.xlu0 %1652
    %v1655 = vmul.f32 %v1637, %v1653
    %v1656 = vld [vmem:[#allocation10] sm:$0xff]
    %v1657 = vld [vmem:[#allocation10 + $0x8] sm:$0xff]
    %v1658 = vld [vmem:[#allocation10 + $0x10] sm:$0xff]
    %v1659 = vld [vmem:[#allocation10 + $0x18] sm:$0xff]
    %v1660 = vld [vmem:[#allocation10 + $0x20] sm:$0xff]
    %v1661 = vld [vmem:[#allocation10 + $0x28] sm:$0xff]
    %v1662 = vld [vmem:[#allocation10 + $0x30] sm:$0xff]
    %v1663 = vld [vmem:[#allocation10 + $0x38] sm:$0xff]
    %1665 = vrot.lane.b32.xlu0 %v1655, 32
    %v1666 = vpop.permute.xlu0 %1665
    %v1667 = vsel %vm1143, %v1666, 0
    %1669 = vmatpush.msra.mxu0 0.0
    %1670 = vmatpush.msra.mxu0 0.0
    %1671 = vmatpush.msra.mxu0 0.0
    %1672 = vmatpush.msra.mxu0 0.0
    %1673 = vmatpush.msra.mxu0 0.0
    %1674 = vmatpush.msra.mxu0 0.0
    %1675 = vmatpush.msra.mxu0 0.0
    %1676 = vmatpush.msra.mxu0 0.0
    %1677 = vmatpush.msra.mxu0 0.0
    %1678 = vmatpush.msra.mxu0 0.0
    %1679 = vmatpush.msra.mxu0 0.0
    %1680 = vmatpush.msra.mxu0 0.0
    %1681 = vmatpush.msra.mxu0 %v1662
    %1682 = vmatpush.msra.mxu0 %v1660
    %1683 = vmatpush.msra.mxu0 %v1658
    %1684 = vmatpush.msra.mxu0 %v1656
    %1685 = vmatmul.f32.gmra.mxu0 %v1667
    %v1686 = vpop.f32.mrf.mxu0
    %v1687 = vadd.f32 0.0, %v1686
    %1688 = vdwg.mxu0
    %1689 = vmatpush.msra.mxu0 0.0
    %1690 = vmatpush.msra.mxu0 0.0
    %1691 = vmatpush.msra.mxu0 0.0
    %1692 = vmatpush.msra.mxu0 0.0
    %1693 = vmatpush.msra.mxu0 0.0
    %1694 = vmatpush.msra.mxu0 0.0
    %1695 = vmatpush.msra.mxu0 0.0
    %1696 = vmatpush.msra.mxu0 0.0
    %1697 = vmatpush.msra.mxu0 0.0
    %1698 = vmatpush.msra.mxu0 0.0
    %1699 = vmatpush.msra.mxu0 0.0
    %1700 = vmatpush.msra.mxu0 0.0
    %1701 = vmatpush.msra.mxu0 %v1663
    %1702 = vmatpush.msra.mxu0 %v1661
    %1703 = vmatpush.msra.mxu0 %v1659
    %1704 = vmatpush.msra.mxu0 %v1657
    %1705 = vmatmul.f32.gmra.mxu0 %v1667
    %v1706 = vpop.f32.mrf.mxu0
    %v1707 = vadd.f32 0.0, %v1706
    %1708 = vdwg.mxu0
    %v1709 = vsel %vm302, %v1575, 0
    %1711 = vmatpush.msra.mxu0 0.0
    %1712 = vmatpush.msra.mxu0 0.0
    %1713 = vmatpush.msra.mxu0 0.0
    %1714 = vmatpush.msra.mxu0 0.0
    %1715 = vmatpush.msra.mxu0 0.0
    %1716 = vmatpush.msra.mxu0 0.0
    %1717 = vmatpush.msra.mxu0 0.0
    %1718 = vmatpush.msra.mxu0 0.0
    %1719 = vmatpush.msra.mxu0 %v1593
    %1720 = vmatpush.msra.mxu0 %v1591
    %1721 = vmatpush.msra.mxu0 %v1589
    %1722 = vmatpush.msra.mxu0 %v1587
    %1723 = vmatpush.msra.mxu0 %v1585
    %1724 = vmatpush.msra.mxu0 %v1583
    %1725 = vmatpush.msra.mxu0 %v1581
    %1726 = vmatpush.msra.mxu0 %v1579
    %1727 = vmatmul.f32.gmra.mxu0 %v1709
    %v1728 = vpop.f32.mrf.mxu0
    %v1729 = vadd.f32 %v1687, %v1728
    %1730 = vdwg.mxu0
    %1731 = vmatpush.msra.mxu0 0.0
    %1732 = vmatpush.msra.mxu0 0.0
    %1733 = vmatpush.msra.mxu0 0.0
    %1734 = vmatpush.msra.mxu0 0.0
    %1735 = vmatpush.msra.mxu0 0.0
    %1736 = vmatpush.msra.mxu0 0.0
    %1737 = vmatpush.msra.mxu0 0.0
    %1738 = vmatpush.msra.mxu0 0.0
    %1739 = vmatpush.msra.mxu0 %v1594
    %1740 = vmatpush.msra.mxu0 %v1592
    %1741 = vmatpush.msra.mxu0 %v1590
    %1742 = vmatpush.msra.mxu0 %v1588
    %1743 = vmatpush.msra.mxu0 %v1586
    %1744 = vmatpush.msra.mxu0 %v1584
    %1745 = vmatpush.msra.mxu0 %v1582
    %1746 = vmatpush.msra.mxu0 %v1580
    %1747 = vmatmul.f32.gmra.mxu0 %v1709
    %v1748 = vpop.f32.mrf.mxu0
    %v1749 = vadd.f32 %v1707, %v1748
    %1750 = vdwg.mxu0
    %v1751 = vadd.f32 %v1729, %v1119
    %v1752 = vadd.f32 %v1749, %v1120
    %v1753 = vxor.u32 %v1751, 2147483648
    %v1754 = vmul.f32 %v1753, 1.442695
    %v1755 = vpow.pop %v1754
    %v1756 = vadd.f32 %v1755, 1.0
    %v1757 = vrcp.pop %v1756
    %v1758 = vmul.f32 %v1756, %v1757
    %v1759 = vsub.f32 1.0, %v1758
    %v1760 = vmul.f32 %v1757, %v1759
    %v1761 = vadd.f32 %v1757, %v1760
    %vm1762 = vweird.f32 %v1756
    %vm1763 = vweird.f32 %v1757
    %vm1764 = vmor %vm1762, %vm1763
    %v1765 = vsel %vm1764, %v1757, %v1761
    %v1766 = vand.u32 2147483647, %v1756
    %vm1767 = vcmp.eq.f32.partialorder %v1766, 8.507059e+37
    %v1768 = vand.u32 %v1756, 2147483648
    %v1769 = vor.u32 1.1754944e-38, %v1768
    %v1770 = vsel %vm1767, %v1769, %v1765
    %v1771 = vmul.f32 1.0, %v1770
    %v1772 = vtanh.pop %v1752
    %v1773 = vmul.f32 %v1771, %v1551
    %v1774 = vmul.f32 %v1771, %v1772
    %1776 = vrot.lane.b32.xlu0 %v1774, 64
    %v1777 = vpop.permute.xlu0 %1776
    %v1779 = vadd.f32 %v1773, %v1777
    %v1780 = vxor.u32 %v1752, 2147483648
    %v1781 = vmul.f32 %v1780, 1.442695
    %v1782 = vpow.pop %v1781
    %v1783 = vadd.f32 %v1782, 1.0
    %v1784 = vrcp.pop %v1783
    %v1785 = vmul.f32 %v1783, %v1784
    %v1786 = vsub.f32 1.0, %v1785
    %v1787 = vmul.f32 %v1784, %v1786
    %v1788 = vadd.f32 %v1784, %v1787
    %vm1789 = vweird.f32 %v1783
    %vm1790 = vweird.f32 %v1784
    %vm1791 = vmor %vm1789, %vm1790
    %v1792 = vsel %vm1791, %v1784, %v1788
    %v1793 = vand.u32 2147483647, %v1783
    %vm1794 = vcmp.eq.f32.partialorder %v1793, 8.507059e+37
    %v1795 = vand.u32 %v1783, 2147483648
    %v1796 = vor.u32 1.1754944e-38, %v1795
    %v1797 = vsel %vm1794, %v1796, %v1792
    %v1798 = vmul.f32 1.0, %v1797
    %v1799 = vtanh.pop %v1779
    %v1800 = vmul.f32 %v1798, %v1799
    %1802 = vrot.lane.b32.xlu0 %v1800, 64
    %v1803 = vpop.permute.xlu0 %1802
    %s1805 = scalar_lea.vmem [#allocation3], 16
    %1806 = vst.msk [vmem:[%s1805] sm:$0xff] %vm302, %v1803
    %v1807 = vld [vmem:[#allocation12] sm:$0xff]
    %v1808 = vld [vmem:[#allocation12 + $0x8] sm:$0xff]
    %v1809 = vld [vmem:[#allocation12 + $0x10] sm:$0xff]
    %v1810 = vld [vmem:[#allocation12 + $0x18] sm:$0xff]
    %v1811 = vld [vmem:[#allocation12 + $0x20] sm:$0xff]
    %v1812 = vld [vmem:[#allocation12 + $0x28] sm:$0xff]
    %v1813 = vld [vmem:[#allocation12 + $0x30] sm:$0xff]
    %v1814 = vld [vmem:[#allocation12 + $0x38] sm:$0xff]
    %v1815 = vld [vmem:[#allocation12 + $0x40] sm:$0xff]
    %v1816 = vld [vmem:[#allocation12 + $0x48] sm:$0xff]
    %v1817 = vld [vmem:[#allocation12 + $0x50] sm:$0xff]
    %v1818 = vld [vmem:[#allocation12 + $0x58] sm:$0xff]
    %v1819 = vld [vmem:[#allocation12 + $0x60] sm:$0xff]
    %v1820 = vld [vmem:[#allocation12 + $0x68] sm:$0xff]
    %v1821 = vld [vmem:[#allocation12 + $0x70] sm:$0xff]
    %v1822 = vld [vmem:[#allocation12 + $0x78] sm:$0xff]
    %v1823 = vld [vmem:[#allocation9] sm:$0xff]
    %v1824 = vld [vmem:[#allocation9 + $0x8] sm:$0xff]
    %v1825 = vld [vmem:[#allocation9 + $0x10] sm:$0xff]
    %v1826 = vld [vmem:[#allocation9 + $0x18] sm:$0xff]
    %1827 = vmatpush.msra.mxu0 0.0
    %1828 = vmatpush.msra.mxu0 0.0
    %1829 = vmatpush.msra.mxu0 0.0
    %1830 = vmatpush.msra.mxu0 0.0
    %1831 = vmatpush.msra.mxu0 0.0
    %1832 = vmatpush.msra.mxu0 0.0
    %1833 = vmatpush.msra.mxu0 0.0
    %1834 = vmatpush.msra.mxu0 0.0
    %1835 = vmatpush.msra.mxu0 0.0
    %1836 = vmatpush.msra.mxu0 0.0
    %1837 = vmatpush.msra.mxu0 0.0
    %1838 = vmatpush.msra.mxu0 0.0
    %1839 = vmatpush.msra.mxu0 %v1826
    %1840 = vmatpush.msra.mxu0 %v1825
    %1841 = vmatpush.msra.mxu0 %v1824
    %1842 = vmatpush.msra.mxu0 %v1823
    %1843 = vmatmul.f32.gmra.mxu0 %v1667
    %v1844 = vpop.f32.mrf.mxu0
    %v1845 = vadd.f32 %v1115, %v1844
    %1846 = vdwg.mxu0
    %v1847 = vxor.u32 %v1845, 2147483648
    %v1848 = vmul.f32 %v1847, 1.442695
    %v1849 = vpow.pop %v1848
    %v1850 = vadd.f32 %v1849, 1.0
    %v1851 = vrcp.pop %v1850
    %v1852 = vmul.f32 %v1850, %v1851
    %v1853 = vsub.f32 1.0, %v1852
    %v1854 = vmul.f32 %v1851, %v1853
    %v1855 = vadd.f32 %v1851, %v1854
    %vm1856 = vweird.f32 %v1850
    %vm1857 = vweird.f32 %v1851
    %vm1858 = vmor %vm1856, %vm1857
    %v1859 = vsel %vm1858, %v1851, %v1855
    %v1860 = vand.u32 2147483647, %v1850
    %vm1861 = vcmp.eq.f32.partialorder %v1860, 8.507059e+37
    %v1862 = vand.u32 %v1850, 2147483648
    %v1863 = vor.u32 1.1754944e-38, %v1862
    %v1864 = vsel %vm1861, %v1863, %v1859
    %v1865 = vmul.f32 1.0, %v1864
    %v1866 = vtanh.pop %v1845
    %v1867 = vmul.f32 %v1865, %v1649
    %1869 = vrot.lane.b32.xlu0 %v1866, 64
    %v1870 = vpop.permute.xlu0 %1869
    %v1872 = vmul.f32 %v1865, %v1870
    %1874 = vrot.lane.b32.xlu0 %v1872, 32
    %v1875 = vpop.permute.xlu0 %1874
    %v1877 = vadd.f32 %v1867, %v1875
    %v1878 = vtanh.pop %v1877
    %1880 = vrot.lane.b32.xlu0 %v1878, 64
    %v1881 = vpop.permute.xlu0 %1880
    %v1883 = vmul.f32 %v1865, %v1881
    %v1884 = vld [vmem:[#allocation10] sm:$0xff]
    %v1885 = vld [vmem:[#allocation10 + $0x8] sm:$0xff]
    %v1886 = vld [vmem:[#allocation10 + $0x10] sm:$0xff]
    %v1887 = vld [vmem:[#allocation10 + $0x18] sm:$0xff]
    %v1888 = vld [vmem:[#allocation10 + $0x20] sm:$0xff]
    %v1889 = vld [vmem:[#allocation10 + $0x28] sm:$0xff]
    %v1890 = vld [vmem:[#allocation10 + $0x30] sm:$0xff]
    %v1891 = vld [vmem:[#allocation10 + $0x38] sm:$0xff]
    %1893 = vrot.lane.b32.xlu0 %v1883, 32
    %v1894 = vpop.permute.xlu0 %1893
    %v1895 = vsel %vm1143, %v1894, 0
    %1897 = vmatpush.msra.mxu0 0.0
    %1898 = vmatpush.msra.mxu0 0.0
    %1899 = vmatpush.msra.mxu0 0.0
    %1900 = vmatpush.msra.mxu0 0.0
    %1901 = vmatpush.msra.mxu0 0.0
    %1902 = vmatpush.msra.mxu0 0.0
    %1903 = vmatpush.msra.mxu0 0.0
    %1904 = vmatpush.msra.mxu0 0.0
    %1905 = vmatpush.msra.mxu0 0.0
    %1906 = vmatpush.msra.mxu0 0.0
    %1907 = vmatpush.msra.mxu0 0.0
    %1908 = vmatpush.msra.mxu0 0.0
    %1909 = vmatpush.msra.mxu0 %v1890
    %1910 = vmatpush.msra.mxu0 %v1888
    %1911 = vmatpush.msra.mxu0 %v1886
    %1912 = vmatpush.msra.mxu0 %v1884
    %1913 = vmatmul.f32.gmra.mxu0 %v1895
    %v1914 = vpop.f32.mrf.mxu0
    %v1915 = vadd.f32 0.0, %v1914
    %1916 = vdwg.mxu0
    %1917 = vmatpush.msra.mxu0 0.0
    %1918 = vmatpush.msra.mxu0 0.0
    %1919 = vmatpush.msra.mxu0 0.0
    %1920 = vmatpush.msra.mxu0 0.0
    %1921 = vmatpush.msra.mxu0 0.0
    %1922 = vmatpush.msra.mxu0 0.0
    %1923 = vmatpush.msra.mxu0 0.0
    %1924 = vmatpush.msra.mxu0 0.0
    %1925 = vmatpush.msra.mxu0 0.0
    %1926 = vmatpush.msra.mxu0 0.0
    %1927 = vmatpush.msra.mxu0 0.0
    %1928 = vmatpush.msra.mxu0 0.0
    %1929 = vmatpush.msra.mxu0 %v1891
    %1930 = vmatpush.msra.mxu0 %v1889
    %1931 = vmatpush.msra.mxu0 %v1887
    %1932 = vmatpush.msra.mxu0 %v1885
    %1933 = vmatmul.f32.gmra.mxu0 %v1895
    %v1934 = vpop.f32.mrf.mxu0
    %v1935 = vadd.f32 0.0, %v1934
    %1936 = vdwg.mxu0
    %v1937 = vsel %vm302, %v1803, 0
    %1939 = vmatpush.msra.mxu0 0.0
    %1940 = vmatpush.msra.mxu0 0.0
    %1941 = vmatpush.msra.mxu0 0.0
    %1942 = vmatpush.msra.mxu0 0.0
    %1943 = vmatpush.msra.mxu0 0.0
    %1944 = vmatpush.msra.mxu0 0.0
    %1945 = vmatpush.msra.mxu0 0.0
    %1946 = vmatpush.msra.mxu0 0.0
    %1947 = vmatpush.msra.mxu0 %v1821
    %1948 = vmatpush.msra.mxu0 %v1819
    %1949 = vmatpush.msra.mxu0 %v1817
    %1950 = vmatpush.msra.mxu0 %v1815
    %1951 = vmatpush.msra.mxu0 %v1813
    %1952 = vmatpush.msra.mxu0 %v1811
    %1953 = vmatpush.msra.mxu0 %v1809
    %1954 = vmatpush.msra.mxu0 %v1807
    %1955 = vmatmul.f32.gmra.mxu0 %v1937
    %v1956 = vpop.f32.mrf.mxu0
    %v1957 = vadd.f32 %v1915, %v1956
    %1958 = vdwg.mxu0
    %1959 = vmatpush.msra.mxu0 0.0
    %1960 = vmatpush.msra.mxu0 0.0
    %1961 = vmatpush.msra.mxu0 0.0
    %1962 = vmatpush.msra.mxu0 0.0
    %1963 = vmatpush.msra.mxu0 0.0
    %1964 = vmatpush.msra.mxu0 0.0
    %1965 = vmatpush.msra.mxu0 0.0
    %1966 = vmatpush.msra.mxu0 0.0
    %1967 = vmatpush.msra.mxu0 %v1822
    %1968 = vmatpush.msra.mxu0 %v1820
    %1969 = vmatpush.msra.mxu0 %v1818
    %1970 = vmatpush.msra.mxu0 %v1816
    %1971 = vmatpush.msra.mxu0 %v1814
    %1972 = vmatpush.msra.mxu0 %v1812
    %1973 = vmatpush.msra.mxu0 %v1810
    %1974 = vmatpush.msra.mxu0 %v1808
    %1975 = vmatmul.f32.gmra.mxu0 %v1937
    %v1976 = vpop.f32.mrf.mxu0
    %v1977 = vadd.f32 %v1935, %v1976
    %1978 = vdwg.mxu0
    %v1979 = vadd.f32 %v1957, %v1119
    %v1980 = vadd.f32 %v1977, %v1120
    %v1981 = vxor.u32 %v1979, 2147483648
    %v1982 = vmul.f32 %v1981, 1.442695
    %v1983 = vpow.pop %v1982
    %v1984 = vadd.f32 %v1983, 1.0
    %v1985 = vrcp.pop %v1984
    %v1986 = vmul.f32 %v1984, %v1985
    %v1987 = vsub.f32 1.0, %v1986
    %v1988 = vmul.f32 %v1985, %v1987
    %v1989 = vadd.f32 %v1985, %v1988
    %vm1990 = vweird.f32 %v1984
    %vm1991 = vweird.f32 %v1985
    %vm1992 = vmor %vm1990, %vm1991
    %v1993 = vsel %vm1992, %v1985, %v1989
    %v1994 = vand.u32 2147483647, %v1984
    %vm1995 = vcmp.eq.f32.partialorder %v1994, 8.507059e+37
    %v1996 = vand.u32 %v1984, 2147483648
    %v1997 = vor.u32 1.1754944e-38, %v1996
    %v1998 = vsel %vm1995, %v1997, %v1993
    %v1999 = vmul.f32 1.0, %v1998
    %v2000 = vtanh.pop %v1980
    %v2001 = vmul.f32 %v1999, %v1779
    %v2002 = vmul.f32 %v1999, %v2000
    %2004 = vrot.lane.b32.xlu0 %v2002, 64
    %v2005 = vpop.permute.xlu0 %2004
    %v2007 = vadd.f32 %v2001, %v2005
    %v2008 = vxor.u32 %v1980, 2147483648
    %v2009 = vmul.f32 %v2008, 1.442695
    %v2010 = vpow.pop %v2009
    %v2011 = vadd.f32 %v2010, 1.0
    %v2012 = vrcp.pop %v2011
    %v2013 = vmul.f32 %v2011, %v2012
    %v2014 = vsub.f32 1.0, %v2013
    %v2015 = vmul.f32 %v2012, %v2014
    %v2016 = vadd.f32 %v2012, %v2015
    %vm2017 = vweird.f32 %v2011
    %vm2018 = vweird.f32 %v2012
    %vm2019 = vmor %vm2017, %vm2018
    %v2020 = vsel %vm2019, %v2012, %v2016
    %v2021 = vand.u32 2147483647, %v2011
    %vm2022 = vcmp.eq.f32.partialorder %v2021, 8.507059e+37
    %v2023 = vand.u32 %v2011, 2147483648
    %v2024 = vor.u32 1.1754944e-38, %v2023
    %v2025 = vsel %vm2022, %v2024, %v2020
    %v2026 = vmul.f32 1.0, %v2025
    %v2027 = vtanh.pop %v2007
    %v2028 = vmul.f32 %v2026, %v2027
    %2030 = vrot.lane.b32.xlu0 %v2028, 64
    %v2031 = vpop.permute.xlu0 %2030
    %s2033 = scalar_lea.vmem [#allocation3], 24
    %2034 = vst.msk [vmem:[%s2033] sm:$0xff] %vm302, %v2031
    %v2035 = vld [vmem:[#allocation12] sm:$0xff]
    %v2036 = vld [vmem:[#allocation12 + $0x8] sm:$0xff]
    %v2037 = vld [vmem:[#allocation12 + $0x10] sm:$0xff]
    %v2038 = vld [vmem:[#allocation12 + $0x18] sm:$0xff]
    %v2039 = vld [vmem:[#allocation12 + $0x20] sm:$0xff]
    %v2040 = vld [vmem:[#allocation12 + $0x28] sm:$0xff]
    %v2041 = vld [vmem:[#allocation12 + $0x30] sm:$0xff]
    %v2042 = vld [vmem:[#allocation12 + $0x38] sm:$0xff]
    %v2043 = vld [vmem:[#allocation12 + $0x40] sm:$0xff]
    %v2044 = vld [vmem:[#allocation12 + $0x48] sm:$0xff]
    %v2045 = vld [vmem:[#allocation12 + $0x50] sm:$0xff]
    %v2046 = vld [vmem:[#allocation12 + $0x58] sm:$0xff]
    %v2047 = vld [vmem:[#allocation12 + $0x60] sm:$0xff]
    %v2048 = vld [vmem:[#allocation12 + $0x68] sm:$0xff]
    %v2049 = vld [vmem:[#allocation12 + $0x70] sm:$0xff]
    %v2050 = vld [vmem:[#allocation12 + $0x78] sm:$0xff]
    %v2051 = vld [vmem:[#allocation9] sm:$0xff]
    %v2052 = vld [vmem:[#allocation9 + $0x8] sm:$0xff]
    %v2053 = vld [vmem:[#allocation9 + $0x10] sm:$0xff]
    %v2054 = vld [vmem:[#allocation9 + $0x18] sm:$0xff]
    %2055 = vmatpush.msra.mxu0 0.0
    %2056 = vmatpush.msra.mxu0 0.0
    %2057 = vmatpush.msra.mxu0 0.0
    %2058 = vmatpush.msra.mxu0 0.0
    %2059 = vmatpush.msra.mxu0 0.0
    %2060 = vmatpush.msra.mxu0 0.0
    %2061 = vmatpush.msra.mxu0 0.0
    %2062 = vmatpush.msra.mxu0 0.0
    %2063 = vmatpush.msra.mxu0 0.0
    %2064 = vmatpush.msra.mxu0 0.0
    %2065 = vmatpush.msra.mxu0 0.0
    %2066 = vmatpush.msra.mxu0 0.0
    %2067 = vmatpush.msra.mxu0 %v2054
    %2068 = vmatpush.msra.mxu0 %v2053
    %2069 = vmatpush.msra.mxu0 %v2052
    %2070 = vmatpush.msra.mxu0 %v2051
    %2071 = vmatmul.f32.gmra.mxu0 %v1895
    %v2072 = vpop.f32.mrf.mxu0
    %v2073 = vadd.f32 %v1115, %v2072
    %2074 = vdwg.mxu0
    %v2075 = vxor.u32 %v2073, 2147483648
    %v2076 = vmul.f32 %v2075, 1.442695
    %v2077 = vpow.pop %v2076
    %v2078 = vadd.f32 %v2077, 1.0
    %v2079 = vrcp.pop %v2078
    %v2080 = vmul.f32 %v2078, %v2079
    %v2081 = vsub.f32 1.0, %v2080
    %v2082 = vmul.f32 %v2079, %v2081
    %v2083 = vadd.f32 %v2079, %v2082
    %vm2084 = vweird.f32 %v2078
    %vm2085 = vweird.f32 %v2079
    %vm2086 = vmor %vm2084, %vm2085
    %v2087 = vsel %vm2086, %v2079, %v2083
    %v2088 = vand.u32 2147483647, %v2078
    %vm2089 = vcmp.eq.f32.partialorder %v2088, 8.507059e+37
    %v2090 = vand.u32 %v2078, 2147483648
    %v2091 = vor.u32 1.1754944e-38, %v2090
    %v2092 = vsel %vm2089, %v2091, %v2087
    %v2093 = vmul.f32 1.0, %v2092
    %v2094 = vtanh.pop %v2073
    %v2095 = vmul.f32 %v2093, %v1877
    %2097 = vrot.lane.b32.xlu0 %v2094, 64
    %v2098 = vpop.permute.xlu0 %2097
    %v2100 = vmul.f32 %v2093, %v2098
    %2102 = vrot.lane.b32.xlu0 %v2100, 32
    %v2103 = vpop.permute.xlu0 %2102
    %v2105 = vadd.f32 %v2095, %v2103
    %v2106 = vtanh.pop %v2105
    %2108 = vrot.lane.b32.xlu0 %v2106, 64
    %v2109 = vpop.permute.xlu0 %2108
    %v2111 = vmul.f32 %v2093, %v2109
    %v2112 = vld [vmem:[#allocation10] sm:$0xff]
    %v2113 = vld [vmem:[#allocation10 + $0x8] sm:$0xff]
    %v2114 = vld [vmem:[#allocation10 + $0x10] sm:$0xff]
    %v2115 = vld [vmem:[#allocation10 + $0x18] sm:$0xff]
    %v2116 = vld [vmem:[#allocation10 + $0x20] sm:$0xff]
    %v2117 = vld [vmem:[#allocation10 + $0x28] sm:$0xff]
    %v2118 = vld [vmem:[#allocation10 + $0x30] sm:$0xff]
    %v2119 = vld [vmem:[#allocation10 + $0x38] sm:$0xff]
    %2121 = vrot.lane.b32.xlu0 %v2111, 32
    %v2122 = vpop.permute.xlu0 %2121
    %v2123 = vsel %vm1143, %v2122, 0
    %2125 = vmatpush.msra.mxu0 0.0
    %2126 = vmatpush.msra.mxu0 0.0
    %2127 = vmatpush.msra.mxu0 0.0
    %2128 = vmatpush.msra.mxu0 0.0
    %2129 = vmatpush.msra.mxu0 0.0
    %2130 = vmatpush.msra.mxu0 0.0
    %2131 = vmatpush.msra.mxu0 0.0
    %2132 = vmatpush.msra.mxu0 0.0
    %2133 = vmatpush.msra.mxu0 0.0
    %2134 = vmatpush.msra.mxu0 0.0
    %2135 = vmatpush.msra.mxu0 0.0
    %2136 = vmatpush.msra.mxu0 0.0
    %2137 = vmatpush.msra.mxu0 %v2118
    %2138 = vmatpush.msra.mxu0 %v2116
    %2139 = vmatpush.msra.mxu0 %v2114
    %2140 = vmatpush.msra.mxu0 %v2112
    %2141 = vmatmul.f32.gmra.mxu0 %v2123
    %v2142 = vpop.f32.mrf.mxu0
    %v2143 = vadd.f32 0.0, %v2142
    %2144 = vdwg.mxu0
    %2145 = vmatpush.msra.mxu0 0.0
    %2146 = vmatpush.msra.mxu0 0.0
    %2147 = vmatpush.msra.mxu0 0.0
    %2148 = vmatpush.msra.mxu0 0.0
    %2149 = vmatpush.msra.mxu0 0.0
    %2150 = vmatpush.msra.mxu0 0.0
    %2151 = vmatpush.msra.mxu0 0.0
    %2152 = vmatpush.msra.mxu0 0.0
    %2153 = vmatpush.msra.mxu0 0.0
    %2154 = vmatpush.msra.mxu0 0.0
    %2155 = vmatpush.msra.mxu0 0.0
    %2156 = vmatpush.msra.mxu0 0.0
    %2157 = vmatpush.msra.mxu0 %v2119
    %2158 = vmatpush.msra.mxu0 %v2117
    %2159 = vmatpush.msra.mxu0 %v2115
    %2160 = vmatpush.msra.mxu0 %v2113
    %2161 = vmatmul.f32.gmra.mxu0 %v2123
    %v2162 = vpop.f32.mrf.mxu0
    %v2163 = vadd.f32 0.0, %v2162
    %2164 = vdwg.mxu0
    %v2165 = vsel %vm302, %v2031, 0
    %2167 = vmatpush.msra.mxu0 0.0
    %2168 = vmatpush.msra.mxu0 0.0
    %2169 = vmatpush.msra.mxu0 0.0
    %2170 = vmatpush.msra.mxu0 0.0
    %2171 = vmatpush.msra.mxu0 0.0
    %2172 = vmatpush.msra.mxu0 0.0
    %2173 = vmatpush.msra.mxu0 0.0
    %2174 = vmatpush.msra.mxu0 0.0
    %2175 = vmatpush.msra.mxu0 %v2049
    %2176 = vmatpush.msra.mxu0 %v2047
    %2177 = vmatpush.msra.mxu0 %v2045
    %2178 = vmatpush.msra.mxu0 %v2043
    %2179 = vmatpush.msra.mxu0 %v2041
    %2180 = vmatpush.msra.mxu0 %v2039
    %2181 = vmatpush.msra.mxu0 %v2037
    %2182 = vmatpush.msra.mxu0 %v2035
    %2183 = vmatmul.f32.gmra.mxu0 %v2165
    %v2184 = vpop.f32.mrf.mxu0
    %v2185 = vadd.f32 %v2143, %v2184
    %2186 = vdwg.mxu0
    %2187 = vmatpush.msra.mxu0 0.0
    %2188 = vmatpush.msra.mxu0 0.0
    %2189 = vmatpush.msra.mxu0 0.0
    %2190 = vmatpush.msra.mxu0 0.0
    %2191 = vmatpush.msra.mxu0 0.0
    %2192 = vmatpush.msra.mxu0 0.0
    %2193 = vmatpush.msra.mxu0 0.0
    %2194 = vmatpush.msra.mxu0 0.0
    %2195 = vmatpush.msra.mxu0 %v2050
    %2196 = vmatpush.msra.mxu0 %v2048
    %2197 = vmatpush.msra.mxu0 %v2046
    %2198 = vmatpush.msra.mxu0 %v2044
    %2199 = vmatpush.msra.mxu0 %v2042
    %2200 = vmatpush.msra.mxu0 %v2040
    %2201 = vmatpush.msra.mxu0 %v2038
    %2202 = vmatpush.msra.mxu0 %v2036
    %2203 = vmatmul.f32.gmra.mxu0 %v2165
    %v2204 = vpop.f32.mrf.mxu0
    %v2205 = vadd.f32 %v2163, %v2204
    %2206 = vdwg.mxu0
    %v2207 = vadd.f32 %v2185, %v1119
    %v2208 = vadd.f32 %v2205, %v1120
    %v2209 = vxor.u32 %v2207, 2147483648
    %v2210 = vmul.f32 %v2209, 1.442695
    %v2211 = vpow.pop %v2210
    %v2212 = vadd.f32 %v2211, 1.0
    %v2213 = vrcp.pop %v2212
    %v2214 = vmul.f32 %v2212, %v2213
    %v2215 = vsub.f32 1.0, %v2214
    %v2216 = vmul.f32 %v2213, %v2215
    %v2217 = vadd.f32 %v2213, %v2216
    %vm2218 = vweird.f32 %v2212
    %vm2219 = vweird.f32 %v2213
    %vm2220 = vmor %vm2218, %vm2219
    %v2221 = vsel %vm2220, %v2213, %v2217
    %v2222 = vand.u32 2147483647, %v2212
    %vm2223 = vcmp.eq.f32.partialorder %v2222, 8.507059e+37
    %v2224 = vand.u32 %v2212, 2147483648
    %v2225 = vor.u32 1.1754944e-38, %v2224
    %v2226 = vsel %vm2223, %v2225, %v2221
    %v2227 = vmul.f32 1.0, %v2226
    %v2228 = vtanh.pop %v2208
    %v2229 = vmul.f32 %v2227, %v2007
    %v2230 = vmul.f32 %v2227, %v2228
    %2232 = vrot.lane.b32.xlu0 %v2230, 64
    %v2233 = vpop.permute.xlu0 %2232
    %v2235 = vadd.f32 %v2229, %v2233
    %v2236 = vxor.u32 %v2208, 2147483648
    %v2237 = vmul.f32 %v2236, 1.442695
    %v2238 = vpow.pop %v2237
    %v2239 = vadd.f32 %v2238, 1.0
    %v2240 = vrcp.pop %v2239
    %v2241 = vmul.f32 %v2239, %v2240
    %v2242 = vsub.f32 1.0, %v2241
    %v2243 = vmul.f32 %v2240, %v2242
    %v2244 = vadd.f32 %v2240, %v2243
    %vm2245 = vweird.f32 %v2239
    %vm2246 = vweird.f32 %v2240
    %vm2247 = vmor %vm2245, %vm2246
    %v2248 = vsel %vm2247, %v2240, %v2244
    %v2249 = vand.u32 2147483647, %v2239
    %vm2250 = vcmp.eq.f32.partialorder %v2249, 8.507059e+37
    %v2251 = vand.u32 %v2239, 2147483648
    %v2252 = vor.u32 1.1754944e-38, %v2251
    %v2253 = vsel %vm2250, %v2252, %v2248
    %v2254 = vmul.f32 1.0, %v2253
    %v2255 = vtanh.pop %v2235
    %v2256 = vmul.f32 %v2254, %v2255
    %2258 = vrot.lane.b32.xlu0 %v2256, 64
    %v2259 = vpop.permute.xlu0 %2258
    %s2261 = scalar_lea.vmem [#allocation3], 32
    %2262 = vst.msk [vmem:[%s2261] sm:$0xff] %vm302, %v2259
    %v2263 = vld [vmem:[#allocation12] sm:$0xff]
    %v2264 = vld [vmem:[#allocation12 + $0x8] sm:$0xff]
    %v2265 = vld [vmem:[#allocation12 + $0x10] sm:$0xff]
    %v2266 = vld [vmem:[#allocation12 + $0x18] sm:$0xff]
    %v2267 = vld [vmem:[#allocation12 + $0x20] sm:$0xff]
    %v2268 = vld [vmem:[#allocation12 + $0x28] sm:$0xff]
    %v2269 = vld [vmem:[#allocation12 + $0x30] sm:$0xff]
    %v2270 = vld [vmem:[#allocation12 + $0x38] sm:$0xff]
    %v2271 = vld [vmem:[#allocation12 + $0x40] sm:$0xff]
    %v2272 = vld [vmem:[#allocation12 + $0x48] sm:$0xff]
    %v2273 = vld [vmem:[#allocation12 + $0x50] sm:$0xff]
    %v2274 = vld [vmem:[#allocation12 + $0x58] sm:$0xff]
    %v2275 = vld [vmem:[#allocation12 + $0x60] sm:$0xff]
    %v2276 = vld [vmem:[#allocation12 + $0x68] sm:$0xff]
    %v2277 = vld [vmem:[#allocation12 + $0x70] sm:$0xff]
    %v2278 = vld [vmem:[#allocation12 + $0x78] sm:$0xff]
    %v2279 = vld [vmem:[#allocation9] sm:$0xff]
    %v2280 = vld [vmem:[#allocation9 + $0x8] sm:$0xff]
    %v2281 = vld [vmem:[#allocation9 + $0x10] sm:$0xff]
    %v2282 = vld [vmem:[#allocation9 + $0x18] sm:$0xff]
    %2283 = vmatpush.msra.mxu0 0.0
    %2284 = vmatpush.msra.mxu0 0.0
    %2285 = vmatpush.msra.mxu0 0.0
    %2286 = vmatpush.msra.mxu0 0.0
    %2287 = vmatpush.msra.mxu0 0.0
    %2288 = vmatpush.msra.mxu0 0.0
    %2289 = vmatpush.msra.mxu0 0.0
    %2290 = vmatpush.msra.mxu0 0.0
    %2291 = vmatpush.msra.mxu0 0.0
    %2292 = vmatpush.msra.mxu0 0.0
    %2293 = vmatpush.msra.mxu0 0.0
    %2294 = vmatpush.msra.mxu0 0.0
    %2295 = vmatpush.msra.mxu0 %v2282
    %2296 = vmatpush.msra.mxu0 %v2281
    %2297 = vmatpush.msra.mxu0 %v2280
    %2298 = vmatpush.msra.mxu0 %v2279
    %2299 = vmatmul.f32.gmra.mxu0 %v2123
    %v2300 = vpop.f32.mrf.mxu0
    %v2301 = vadd.f32 %v1115, %v2300
    %2302 = vdwg.mxu0
    %v2303 = vxor.u32 %v2301, 2147483648
    %v2304 = vmul.f32 %v2303, 1.442695
    %v2305 = vpow.pop %v2304
    %v2306 = vadd.f32 %v2305, 1.0
    %v2307 = vrcp.pop %v2306
    %v2308 = vmul.f32 %v2306, %v2307
    %v2309 = vsub.f32 1.0, %v2308
    %v2310 = vmul.f32 %v2307, %v2309
    %v2311 = vadd.f32 %v2307, %v2310
    %vm2312 = vweird.f32 %v2306
    %vm2313 = vweird.f32 %v2307
    %vm2314 = vmor %vm2312, %vm2313
    %v2315 = vsel %vm2314, %v2307, %v2311
    %v2316 = vand.u32 2147483647, %v2306
    %vm2317 = vcmp.eq.f32.partialorder %v2316, 8.507059e+37
    %v2318 = vand.u32 %v2306, 2147483648
    %v2319 = vor.u32 1.1754944e-38, %v2318
    %v2320 = vsel %vm2317, %v2319, %v2315
    %v2321 = vmul.f32 1.0, %v2320
    %v2322 = vtanh.pop %v2301
    %v2323 = vmul.f32 %v2321, %v2105
    %2325 = vrot.lane.b32.xlu0 %v2322, 64
    %v2326 = vpop.permute.xlu0 %2325
    %v2328 = vmul.f32 %v2321, %v2326
    %2330 = vrot.lane.b32.xlu0 %v2328, 32
    %v2331 = vpop.permute.xlu0 %2330
    %v2333 = vadd.f32 %v2323, %v2331
    %v2334 = vtanh.pop %v2333
    %2336 = vrot.lane.b32.xlu0 %v2334, 64
    %v2337 = vpop.permute.xlu0 %2336
    %v2339 = vmul.f32 %v2321, %v2337
    %v2340 = vld [vmem:[#allocation10] sm:$0xff]
    %v2341 = vld [vmem:[#allocation10 + $0x8] sm:$0xff]
    %v2342 = vld [vmem:[#allocation10 + $0x10] sm:$0xff]
    %v2343 = vld [vmem:[#allocation10 + $0x18] sm:$0xff]
    %v2344 = vld [vmem:[#allocation10 + $0x20] sm:$0xff]
    %v2345 = vld [vmem:[#allocation10 + $0x28] sm:$0xff]
    %v2346 = vld [vmem:[#allocation10 + $0x30] sm:$0xff]
    %v2347 = vld [vmem:[#allocation10 + $0x38] sm:$0xff]
    %2349 = vrot.lane.b32.xlu0 %v2339, 32
    %v2350 = vpop.permute.xlu0 %2349
    %v2351 = vsel %vm1143, %v2350, 0
    %2353 = vmatpush.msra.mxu0 0.0
    %2354 = vmatpush.msra.mxu0 0.0
    %2355 = vmatpush.msra.mxu0 0.0
    %2356 = vmatpush.msra.mxu0 0.0
    %2357 = vmatpush.msra.mxu0 0.0
    %2358 = vmatpush.msra.mxu0 0.0
    %2359 = vmatpush.msra.mxu0 0.0
    %2360 = vmatpush.msra.mxu0 0.0
    %2361 = vmatpush.msra.mxu0 0.0
    %2362 = vmatpush.msra.mxu0 0.0
    %2363 = vmatpush.msra.mxu0 0.0
    %2364 = vmatpush.msra.mxu0 0.0
    %2365 = vmatpush.msra.mxu0 %v2346
    %2366 = vmatpush.msra.mxu0 %v2344
    %2367 = vmatpush.msra.mxu0 %v2342
    %2368 = vmatpush.msra.mxu0 %v2340
    %2369 = vmatmul.f32.gmra.mxu0 %v2351
    %v2370 = vpop.f32.mrf.mxu0
    %v2371 = vadd.f32 0.0, %v2370
    %2372 = vdwg.mxu0
    %2373 = vmatpush.msra.mxu0 0.0
    %2374 = vmatpush.msra.mxu0 0.0
    %2375 = vmatpush.msra.mxu0 0.0
    %2376 = vmatpush.msra.mxu0 0.0
    %2377 = vmatpush.msra.mxu0 0.0
    %2378 = vmatpush.msra.mxu0 0.0
    %2379 = vmatpush.msra.mxu0 0.0
    %2380 = vmatpush.msra.mxu0 0.0
    %2381 = vmatpush.msra.mxu0 0.0
    %2382 = vmatpush.msra.mxu0 0.0
    %2383 = vmatpush.msra.mxu0 0.0
    %2384 = vmatpush.msra.mxu0 0.0
    %2385 = vmatpush.msra.mxu0 %v2347
    %2386 = vmatpush.msra.mxu0 %v2345
    %2387 = vmatpush.msra.mxu0 %v2343
    %2388 = vmatpush.msra.mxu0 %v2341
    %2389 = vmatmul.f32.gmra.mxu0 %v2351
    %v2390 = vpop.f32.mrf.mxu0
    %v2391 = vadd.f32 0.0, %v2390
    %2392 = vdwg.mxu0
    %v2393 = vsel %vm302, %v2259, 0
    %2395 = vmatpush.msra.mxu0 0.0
    %2396 = vmatpush.msra.mxu0 0.0
    %2397 = vmatpush.msra.mxu0 0.0
    %2398 = vmatpush.msra.mxu0 0.0
    %2399 = vmatpush.msra.mxu0 0.0
    %2400 = vmatpush.msra.mxu0 0.0
    %2401 = vmatpush.msra.mxu0 0.0
    %2402 = vmatpush.msra.mxu0 0.0
    %2403 = vmatpush.msra.mxu0 %v2277
    %2404 = vmatpush.msra.mxu0 %v2275
    %2405 = vmatpush.msra.mxu0 %v2273
    %2406 = vmatpush.msra.mxu0 %v2271
    %2407 = vmatpush.msra.mxu0 %v2269
    %2408 = vmatpush.msra.mxu0 %v2267
    %2409 = vmatpush.msra.mxu0 %v2265
    %2410 = vmatpush.msra.mxu0 %v2263
    %2411 = vmatmul.f32.gmra.mxu0 %v2393
    %v2412 = vpop.f32.mrf.mxu0
    %v2413 = vadd.f32 %v2371, %v2412
    %2414 = vdwg.mxu0
    %2415 = vmatpush.msra.mxu0 0.0
    %2416 = vmatpush.msra.mxu0 0.0
    %2417 = vmatpush.msra.mxu0 0.0
    %2418 = vmatpush.msra.mxu0 0.0
    %2419 = vmatpush.msra.mxu0 0.0
    %2420 = vmatpush.msra.mxu0 0.0
    %2421 = vmatpush.msra.mxu0 0.0
    %2422 = vmatpush.msra.mxu0 0.0
    %2423 = vmatpush.msra.mxu0 %v2278
    %2424 = vmatpush.msra.mxu0 %v2276
    %2425 = vmatpush.msra.mxu0 %v2274
    %2426 = vmatpush.msra.mxu0 %v2272
    %2427 = vmatpush.msra.mxu0 %v2270
    %2428 = vmatpush.msra.mxu0 %v2268
    %2429 = vmatpush.msra.mxu0 %v2266
    %2430 = vmatpush.msra.mxu0 %v2264
    %2431 = vmatmul.f32.gmra.mxu0 %v2393
    %v2432 = vpop.f32.mrf.mxu0
    %v2433 = vadd.f32 %v2391, %v2432
    %2434 = vdwg.mxu0
    %v2435 = vadd.f32 %v2413, %v1119
    %v2436 = vadd.f32 %v2433, %v1120
    %v2437 = vxor.u32 %v2435, 2147483648
    %v2438 = vmul.f32 %v2437, 1.442695
    %v2439 = vpow.pop %v2438
    %v2440 = vadd.f32 %v2439, 1.0
    %v2441 = vrcp.pop %v2440
    %v2442 = vmul.f32 %v2440, %v2441
    %v2443 = vsub.f32 1.0, %v2442
    %v2444 = vmul.f32 %v2441, %v2443
    %v2445 = vadd.f32 %v2441, %v2444
    %vm2446 = vweird.f32 %v2440
    %vm2447 = vweird.f32 %v2441
    %vm2448 = vmor %vm2446, %vm2447
    %v2449 = vsel %vm2448, %v2441, %v2445
    %v2450 = vand.u32 2147483647, %v2440
    %vm2451 = vcmp.eq.f32.partialorder %v2450, 8.507059e+37
    %v2452 = vand.u32 %v2440, 2147483648
    %v2453 = vor.u32 1.1754944e-38, %v2452
    %v2454 = vsel %vm2451, %v2453, %v2449
    %v2455 = vmul.f32 1.0, %v2454
    %v2456 = vtanh.pop %v2436
    %v2457 = vmul.f32 %v2455, %v2235
    %v2458 = vmul.f32 %v2455, %v2456
    %2460 = vrot.lane.b32.xlu0 %v2458, 64
    %v2461 = vpop.permute.xlu0 %2460
    %v2463 = vadd.f32 %v2457, %v2461
    %v2464 = vxor.u32 %v2436, 2147483648
    %v2465 = vmul.f32 %v2464, 1.442695
    %v2466 = vpow.pop %v2465
    %v2467 = vadd.f32 %v2466, 1.0
    %v2468 = vrcp.pop %v2467
    %v2469 = vmul.f32 %v2467, %v2468
    %v2470 = vsub.f32 1.0, %v2469
    %v2471 = vmul.f32 %v2468, %v2470
    %v2472 = vadd.f32 %v2468, %v2471
    %vm2473 = vweird.f32 %v2467
    %vm2474 = vweird.f32 %v2468
    %vm2475 = vmor %vm2473, %vm2474
    %v2476 = vsel %vm2475, %v2468, %v2472
    %v2477 = vand.u32 2147483647, %v2467
    %vm2478 = vcmp.eq.f32.partialorder %v2477, 8.507059e+37
    %v2479 = vand.u32 %v2467, 2147483648
    %v2480 = vor.u32 1.1754944e-38, %v2479
    %v2481 = vsel %vm2478, %v2480, %v2476
    %v2482 = vmul.f32 1.0, %v2481
    %v2483 = vtanh.pop %v2463
    %v2484 = vmul.f32 %v2482, %v2483
    %2486 = vrot.lane.b32.xlu0 %v2484, 64
    %v2487 = vpop.permute.xlu0 %2486
    %s2489 = scalar_lea.vmem [#allocation3], 40
    %2490 = vst.msk [vmem:[%s2489] sm:$0xff] %vm302, %v2487
    %v2491 = vld [vmem:[#allocation12] sm:$0xff]
    %v2492 = vld [vmem:[#allocation12 + $0x8] sm:$0xff]
    %v2493 = vld [vmem:[#allocation12 + $0x10] sm:$0xff]
    %v2494 = vld [vmem:[#allocation12 + $0x18] sm:$0xff]
    %v2495 = vld [vmem:[#allocation12 + $0x20] sm:$0xff]
    %v2496 = vld [vmem:[#allocation12 + $0x28] sm:$0xff]
    %v2497 = vld [vmem:[#allocation12 + $0x30] sm:$0xff]
    %v2498 = vld [vmem:[#allocation12 + $0x38] sm:$0xff]
    %v2499 = vld [vmem:[#allocation12 + $0x40] sm:$0xff]
    %v2500 = vld [vmem:[#allocation12 + $0x48] sm:$0xff]
    %v2501 = vld [vmem:[#allocation12 + $0x50] sm:$0xff]
    %v2502 = vld [vmem:[#allocation12 + $0x58] sm:$0xff]
    %v2503 = vld [vmem:[#allocation12 + $0x60] sm:$0xff]
    %v2504 = vld [vmem:[#allocation12 + $0x68] sm:$0xff]
    %v2505 = vld [vmem:[#allocation12 + $0x70] sm:$0xff]
    %v2506 = vld [vmem:[#allocation12 + $0x78] sm:$0xff]
    %v2507 = vld [vmem:[#allocation9] sm:$0xff]
    %v2508 = vld [vmem:[#allocation9 + $0x8] sm:$0xff]
    %v2509 = vld [vmem:[#allocation9 + $0x10] sm:$0xff]
    %v2510 = vld [vmem:[#allocation9 + $0x18] sm:$0xff]
    %2511 = vmatpush.msra.mxu0 0.0
    %2512 = vmatpush.msra.mxu0 0.0
    %2513 = vmatpush.msra.mxu0 0.0
    %2514 = vmatpush.msra.mxu0 0.0
    %2515 = vmatpush.msra.mxu0 0.0
    %2516 = vmatpush.msra.mxu0 0.0
    %2517 = vmatpush.msra.mxu0 0.0
    %2518 = vmatpush.msra.mxu0 0.0
    %2519 = vmatpush.msra.mxu0 0.0
    %2520 = vmatpush.msra.mxu0 0.0
    %2521 = vmatpush.msra.mxu0 0.0
    %2522 = vmatpush.msra.mxu0 0.0
    %2523 = vmatpush.msra.mxu0 %v2510
    %2524 = vmatpush.msra.mxu0 %v2509
    %2525 = vmatpush.msra.mxu0 %v2508
    %2526 = vmatpush.msra.mxu0 %v2507
    %2527 = vmatmul.f32.gmra.mxu0 %v2351
    %v2528 = vpop.f32.mrf.mxu0
    %v2529 = vadd.f32 %v1115, %v2528
    %2530 = vdwg.mxu0
    %v2531 = vxor.u32 %v2529, 2147483648
    %v2532 = vmul.f32 %v2531, 1.442695
    %v2533 = vpow.pop %v2532
    %v2534 = vadd.f32 %v2533, 1.0
    %v2535 = vrcp.pop %v2534
    %v2536 = vmul.f32 %v2534, %v2535
    %v2537 = vsub.f32 1.0, %v2536
    %v2538 = vmul.f32 %v2535, %v2537
    %v2539 = vadd.f32 %v2535, %v2538
    %vm2540 = vweird.f32 %v2534
    %vm2541 = vweird.f32 %v2535
    %vm2542 = vmor %vm2540, %vm2541
    %v2543 = vsel %vm2542, %v2535, %v2539
    %v2544 = vand.u32 2147483647, %v2534
    %vm2545 = vcmp.eq.f32.partialorder %v2544, 8.507059e+37
    %v2546 = vand.u32 %v2534, 2147483648
    %v2547 = vor.u32 1.1754944e-38, %v2546
    %v2548 = vsel %vm2545, %v2547, %v2543
    %v2549 = vmul.f32 1.0, %v2548
    %v2550 = vtanh.pop %v2529
    %v2551 = vmul.f32 %v2549, %v2333
    %2553 = vrot.lane.b32.xlu0 %v2550, 64
    %v2554 = vpop.permute.xlu0 %2553
    %v2556 = vmul.f32 %v2549, %v2554
    %2558 = vrot.lane.b32.xlu0 %v2556, 32
    %v2559 = vpop.permute.xlu0 %2558
    %v2561 = vadd.f32 %v2551, %v2559
    %v2562 = vtanh.pop %v2561
    %2564 = vrot.lane.b32.xlu0 %v2562, 64
    %v2565 = vpop.permute.xlu0 %2564
    %v2567 = vmul.f32 %v2549, %v2565
    %v2568 = vld [vmem:[#allocation10] sm:$0xff]
    %v2569 = vld [vmem:[#allocation10 + $0x8] sm:$0xff]
    %v2570 = vld [vmem:[#allocation10 + $0x10] sm:$0xff]
    %v2571 = vld [vmem:[#allocation10 + $0x18] sm:$0xff]
    %v2572 = vld [vmem:[#allocation10 + $0x20] sm:$0xff]
    %v2573 = vld [vmem:[#allocation10 + $0x28] sm:$0xff]
    %v2574 = vld [vmem:[#allocation10 + $0x30] sm:$0xff]
    %v2575 = vld [vmem:[#allocation10 + $0x38] sm:$0xff]
    %2577 = vrot.lane.b32.xlu0 %v2567, 32
    %v2578 = vpop.permute.xlu0 %2577
    %v2579 = vsel %vm1143, %v2578, 0
    %2581 = vmatpush.msra.mxu0 0.0
    %2582 = vmatpush.msra.mxu0 0.0
    %2583 = vmatpush.msra.mxu0 0.0
    %2584 = vmatpush.msra.mxu0 0.0
    %2585 = vmatpush.msra.mxu0 0.0
    %2586 = vmatpush.msra.mxu0 0.0
    %2587 = vmatpush.msra.mxu0 0.0
    %2588 = vmatpush.msra.mxu0 0.0
    %2589 = vmatpush.msra.mxu0 0.0
    %2590 = vmatpush.msra.mxu0 0.0
    %2591 = vmatpush.msra.mxu0 0.0
    %2592 = vmatpush.msra.mxu0 0.0
    %2593 = vmatpush.msra.mxu0 %v2574
    %2594 = vmatpush.msra.mxu0 %v2572
    %2595 = vmatpush.msra.mxu0 %v2570
    %2596 = vmatpush.msra.mxu0 %v2568
    %2597 = vmatmul.f32.gmra.mxu0 %v2579
    %v2598 = vpop.f32.mrf.mxu0
    %v2599 = vadd.f32 0.0, %v2598
    %2600 = vdwg.mxu0
    %2601 = vmatpush.msra.mxu0 0.0
    %2602 = vmatpush.msra.mxu0 0.0
    %2603 = vmatpush.msra.mxu0 0.0
    %2604 = vmatpush.msra.mxu0 0.0
    %2605 = vmatpush.msra.mxu0 0.0
    %2606 = vmatpush.msra.mxu0 0.0
    %2607 = vmatpush.msra.mxu0 0.0
    %2608 = vmatpush.msra.mxu0 0.0
    %2609 = vmatpush.msra.mxu0 0.0
    %2610 = vmatpush.msra.mxu0 0.0
    %2611 = vmatpush.msra.mxu0 0.0
    %2612 = vmatpush.msra.mxu0 0.0
    %2613 = vmatpush.msra.mxu0 %v2575
    %2614 = vmatpush.msra.mxu0 %v2573
    %2615 = vmatpush.msra.mxu0 %v2571
    %2616 = vmatpush.msra.mxu0 %v2569
    %2617 = vmatmul.f32.gmra.mxu0 %v2579
    %v2618 = vpop.f32.mrf.mxu0
    %v2619 = vadd.f32 0.0, %v2618
    %2620 = vdwg.mxu0
    %v2621 = vsel %vm302, %v2487, 0
    %2623 = vmatpush.msra.mxu0 0.0
    %2624 = vmatpush.msra.mxu0 0.0
    %2625 = vmatpush.msra.mxu0 0.0
    %2626 = vmatpush.msra.mxu0 0.0
    %2627 = vmatpush.msra.mxu0 0.0
    %2628 = vmatpush.msra.mxu0 0.0
    %2629 = vmatpush.msra.mxu0 0.0
    %2630 = vmatpush.msra.mxu0 0.0
    %2631 = vmatpush.msra.mxu0 %v2505
    %2632 = vmatpush.msra.mxu0 %v2503
    %2633 = vmatpush.msra.mxu0 %v2501
    %2634 = vmatpush.msra.mxu0 %v2499
    %2635 = vmatpush.msra.mxu0 %v2497
    %2636 = vmatpush.msra.mxu0 %v2495
    %2637 = vmatpush.msra.mxu0 %v2493
    %2638 = vmatpush.msra.mxu0 %v2491
    %2639 = vmatmul.f32.gmra.mxu0 %v2621
    %v2640 = vpop.f32.mrf.mxu0
    %v2641 = vadd.f32 %v2599, %v2640
    %2642 = vdwg.mxu0
    %2643 = vmatpush.msra.mxu0 0.0
    %2644 = vmatpush.msra.mxu0 0.0
    %2645 = vmatpush.msra.mxu0 0.0
    %2646 = vmatpush.msra.mxu0 0.0
    %2647 = vmatpush.msra.mxu0 0.0
    %2648 = vmatpush.msra.mxu0 0.0
    %2649 = vmatpush.msra.mxu0 0.0
    %2650 = vmatpush.msra.mxu0 0.0
    %2651 = vmatpush.msra.mxu0 %v2506
    %2652 = vmatpush.msra.mxu0 %v2504
    %2653 = vmatpush.msra.mxu0 %v2502
    %2654 = vmatpush.msra.mxu0 %v2500
    %2655 = vmatpush.msra.mxu0 %v2498
    %2656 = vmatpush.msra.mxu0 %v2496
    %2657 = vmatpush.msra.mxu0 %v2494
    %2658 = vmatpush.msra.mxu0 %v2492
    %2659 = vmatmul.f32.gmra.mxu0 %v2621
    %v2660 = vpop.f32.mrf.mxu0
    %v2661 = vadd.f32 %v2619, %v2660
    %2662 = vdwg.mxu0
    %v2663 = vadd.f32 %v2641, %v1119
    %v2664 = vadd.f32 %v2661, %v1120
    %v2665 = vxor.u32 %v2663, 2147483648
    %v2666 = vmul.f32 %v2665, 1.442695
    %v2667 = vpow.pop %v2666
    %v2668 = vadd.f32 %v2667, 1.0
    %v2669 = vrcp.pop %v2668
    %v2670 = vmul.f32 %v2668, %v2669
    %v2671 = vsub.f32 1.0, %v2670
    %v2672 = vmul.f32 %v2669, %v2671
    %v2673 = vadd.f32 %v2669, %v2672
    %vm2674 = vweird.f32 %v2668
    %vm2675 = vweird.f32 %v2669
    %vm2676 = vmor %vm2674, %vm2675
    %v2677 = vsel %vm2676, %v2669, %v2673
    %v2678 = vand.u32 2147483647, %v2668
    %vm2679 = vcmp.eq.f32.partialorder %v2678, 8.507059e+37
    %v2680 = vand.u32 %v2668, 2147483648
    %v2681 = vor.u32 1.1754944e-38, %v2680
    %v2682 = vsel %vm2679, %v2681, %v2677
    %v2683 = vmul.f32 1.0, %v2682
    %v2684 = vtanh.pop %v2664
    %v2685 = vmul.f32 %v2683, %v2463
    %v2686 = vmul.f32 %v2683, %v2684
    %2688 = vrot.lane.b32.xlu0 %v2686, 64
    %v2689 = vpop.permute.xlu0 %2688
    %v2691 = vadd.f32 %v2685, %v2689
    %v2692 = vxor.u32 %v2664, 2147483648
    %v2693 = vmul.f32 %v2692, 1.442695
    %v2694 = vpow.pop %v2693
    %v2695 = vadd.f32 %v2694, 1.0
    %v2696 = vrcp.pop %v2695
    %v2697 = vmul.f32 %v2695, %v2696
    %v2698 = vsub.f32 1.0, %v2697
    %v2699 = vmul.f32 %v2696, %v2698
    %v2700 = vadd.f32 %v2696, %v2699
    %vm2701 = vweird.f32 %v2695
    %vm2702 = vweird.f32 %v2696
    %vm2703 = vmor %vm2701, %vm2702
    %v2704 = vsel %vm2703, %v2696, %v2700
    %v2705 = vand.u32 2147483647, %v2695
    %vm2706 = vcmp.eq.f32.partialorder %v2705, 8.507059e+37
    %v2707 = vand.u32 %v2695, 2147483648
    %v2708 = vor.u32 1.1754944e-38, %v2707
    %v2709 = vsel %vm2706, %v2708, %v2704
    %v2710 = vmul.f32 1.0, %v2709
    %v2711 = vtanh.pop %v2691
    %v2712 = vmul.f32 %v2710, %v2711
    %2714 = vrot.lane.b32.xlu0 %v2712, 64
    %v2715 = vpop.permute.xlu0 %2714
    %s2717 = scalar_lea.vmem [#allocation3], 48
    %2718 = vst.msk [vmem:[%s2717] sm:$0xff] %vm302, %v2715
    %v2719 = vld [vmem:[#allocation12] sm:$0xff]
    %v2720 = vld [vmem:[#allocation12 + $0x8] sm:$0xff]
    %v2721 = vld [vmem:[#allocation12 + $0x10] sm:$0xff]
    %v2722 = vld [vmem:[#allocation12 + $0x18] sm:$0xff]
    %v2723 = vld [vmem:[#allocation12 + $0x20] sm:$0xff]
    %v2724 = vld [vmem:[#allocation12 + $0x28] sm:$0xff]
    %v2725 = vld [vmem:[#allocation12 + $0x30] sm:$0xff]
    %v2726 = vld [vmem:[#allocation12 + $0x38] sm:$0xff]
    %v2727 = vld [vmem:[#allocation12 + $0x40] sm:$0xff]
    %v2728 = vld [vmem:[#allocation12 + $0x48] sm:$0xff]
    %v2729 = vld [vmem:[#allocation12 + $0x50] sm:$0xff]
    %v2730 = vld [vmem:[#allocation12 + $0x58] sm:$0xff]
    %v2731 = vld [vmem:[#allocation12 + $0x60] sm:$0xff]
    %v2732 = vld [vmem:[#allocation12 + $0x68] sm:$0xff]
    %v2733 = vld [vmem:[#allocation12 + $0x70] sm:$0xff]
    %v2734 = vld [vmem:[#allocation12 + $0x78] sm:$0xff]
    %v2735 = vld [vmem:[#allocation9] sm:$0xff]
    %v2736 = vld [vmem:[#allocation9 + $0x8] sm:$0xff]
    %v2737 = vld [vmem:[#allocation9 + $0x10] sm:$0xff]
    %v2738 = vld [vmem:[#allocation9 + $0x18] sm:$0xff]
    %2739 = vmatpush.msra.mxu0 0.0
    %2740 = vmatpush.msra.mxu0 0.0
    %2741 = vmatpush.msra.mxu0 0.0
    %2742 = vmatpush.msra.mxu0 0.0
    %2743 = vmatpush.msra.mxu0 0.0
    %2744 = vmatpush.msra.mxu0 0.0
    %2745 = vmatpush.msra.mxu0 0.0
    %2746 = vmatpush.msra.mxu0 0.0
    %2747 = vmatpush.msra.mxu0 0.0
    %2748 = vmatpush.msra.mxu0 0.0
    %2749 = vmatpush.msra.mxu0 0.0
    %2750 = vmatpush.msra.mxu0 0.0
    %2751 = vmatpush.msra.mxu0 %v2738
    %2752 = vmatpush.msra.mxu0 %v2737
    %2753 = vmatpush.msra.mxu0 %v2736
    %2754 = vmatpush.msra.mxu0 %v2735
    %2755 = vmatmul.f32.gmra.mxu0 %v2579
    %v2756 = vpop.f32.mrf.mxu0
    %v2757 = vadd.f32 %v1115, %v2756
    %2758 = vdwg.mxu0
    %v2759 = vxor.u32 %v2757, 2147483648
    %v2760 = vmul.f32 %v2759, 1.442695
    %v2761 = vpow.pop %v2760
    %v2762 = vadd.f32 %v2761, 1.0
    %v2763 = vrcp.pop %v2762
    %v2764 = vmul.f32 %v2762, %v2763
    %v2765 = vsub.f32 1.0, %v2764
    %v2766 = vmul.f32 %v2763, %v2765
    %v2767 = vadd.f32 %v2763, %v2766
    %vm2768 = vweird.f32 %v2762
    %vm2769 = vweird.f32 %v2763
    %vm2770 = vmor %vm2768, %vm2769
    %v2771 = vsel %vm2770, %v2763, %v2767
    %v2772 = vand.u32 2147483647, %v2762
    %vm2773 = vcmp.eq.f32.partialorder %v2772, 8.507059e+37
    %v2774 = vand.u32 %v2762, 2147483648
    %v2775 = vor.u32 1.1754944e-38, %v2774
    %v2776 = vsel %vm2773, %v2775, %v2771
    %v2777 = vmul.f32 1.0, %v2776
    %v2778 = vtanh.pop %v2757
    %v2779 = vmul.f32 %v2777, %v2561
    %2781 = vrot.lane.b32.xlu0 %v2778, 64
    %v2782 = vpop.permute.xlu0 %2781
    %v2784 = vmul.f32 %v2777, %v2782
    %2786 = vrot.lane.b32.xlu0 %v2784, 32
    %v2787 = vpop.permute.xlu0 %2786
    %v2789 = vadd.f32 %v2779, %v2787
    %v2790 = vtanh.pop %v2789
    %2792 = vrot.lane.b32.xlu0 %v2790, 64
    %v2793 = vpop.permute.xlu0 %2792
    %v2795 = vmul.f32 %v2777, %v2793
    %v2796 = vld [vmem:[#allocation10] sm:$0xff]
    %v2797 = vld [vmem:[#allocation10 + $0x8] sm:$0xff]
    %v2798 = vld [vmem:[#allocation10 + $0x10] sm:$0xff]
    %v2799 = vld [vmem:[#allocation10 + $0x18] sm:$0xff]
    %v2800 = vld [vmem:[#allocation10 + $0x20] sm:$0xff]
    %v2801 = vld [vmem:[#allocation10 + $0x28] sm:$0xff]
    %v2802 = vld [vmem:[#allocation10 + $0x30] sm:$0xff]
    %v2803 = vld [vmem:[#allocation10 + $0x38] sm:$0xff]
    %2805 = vrot.lane.b32.xlu0 %v2795, 32
    %v2806 = vpop.permute.xlu0 %2805
    %v2807 = vsel %vm1143, %v2806, 0
    %2809 = vmatpush.msra.mxu0 0.0
    %2810 = vmatpush.msra.mxu0 0.0
    %2811 = vmatpush.msra.mxu0 0.0
    %2812 = vmatpush.msra.mxu0 0.0
    %2813 = vmatpush.msra.mxu0 0.0
    %2814 = vmatpush.msra.mxu0 0.0
    %2815 = vmatpush.msra.mxu0 0.0
    %2816 = vmatpush.msra.mxu0 0.0
    %2817 = vmatpush.msra.mxu0 0.0
    %2818 = vmatpush.msra.mxu0 0.0
    %2819 = vmatpush.msra.mxu0 0.0
    %2820 = vmatpush.msra.mxu0 0.0
    %2821 = vmatpush.msra.mxu0 %v2802
    %2822 = vmatpush.msra.mxu0 %v2800
    %2823 = vmatpush.msra.mxu0 %v2798
    %2824 = vmatpush.msra.mxu0 %v2796
    %2825 = vmatmul.f32.gmra.mxu0 %v2807
    %v2826 = vpop.f32.mrf.mxu0
    %v2827 = vadd.f32 0.0, %v2826
    %2828 = vdwg.mxu0
    %2829 = vmatpush.msra.mxu0 0.0
    %2830 = vmatpush.msra.mxu0 0.0
    %2831 = vmatpush.msra.mxu0 0.0
    %2832 = vmatpush.msra.mxu0 0.0
    %2833 = vmatpush.msra.mxu0 0.0
    %2834 = vmatpush.msra.mxu0 0.0
    %2835 = vmatpush.msra.mxu0 0.0
    %2836 = vmatpush.msra.mxu0 0.0
    %2837 = vmatpush.msra.mxu0 0.0
    %2838 = vmatpush.msra.mxu0 0.0
    %2839 = vmatpush.msra.mxu0 0.0
    %2840 = vmatpush.msra.mxu0 0.0
    %2841 = vmatpush.msra.mxu0 %v2803
    %2842 = vmatpush.msra.mxu0 %v2801
    %2843 = vmatpush.msra.mxu0 %v2799
    %2844 = vmatpush.msra.mxu0 %v2797
    %2845 = vmatmul.f32.gmra.mxu0 %v2807
    %v2846 = vpop.f32.mrf.mxu0
    %v2847 = vadd.f32 0.0, %v2846
    %2848 = vdwg.mxu0
    %v2849 = vsel %vm302, %v2715, 0
    %2851 = vmatpush.msra.mxu0 0.0
    %2852 = vmatpush.msra.mxu0 0.0
    %2853 = vmatpush.msra.mxu0 0.0
    %2854 = vmatpush.msra.mxu0 0.0
    %2855 = vmatpush.msra.mxu0 0.0
    %2856 = vmatpush.msra.mxu0 0.0
    %2857 = vmatpush.msra.mxu0 0.0
    %2858 = vmatpush.msra.mxu0 0.0
    %2859 = vmatpush.msra.mxu0 %v2733
    %2860 = vmatpush.msra.mxu0 %v2731
    %2861 = vmatpush.msra.mxu0 %v2729
    %2862 = vmatpush.msra.mxu0 %v2727
    %2863 = vmatpush.msra.mxu0 %v2725
    %2864 = vmatpush.msra.mxu0 %v2723
    %2865 = vmatpush.msra.mxu0 %v2721
    %2866 = vmatpush.msra.mxu0 %v2719
    %2867 = vmatmul.f32.gmra.mxu0 %v2849
    %v2868 = vpop.f32.mrf.mxu0
    %v2869 = vadd.f32 %v2827, %v2868
    %2870 = vdwg.mxu0
    %2871 = vmatpush.msra.mxu0 0.0
    %2872 = vmatpush.msra.mxu0 0.0
    %2873 = vmatpush.msra.mxu0 0.0
    %2874 = vmatpush.msra.mxu0 0.0
    %2875 = vmatpush.msra.mxu0 0.0
    %2876 = vmatpush.msra.mxu0 0.0
    %2877 = vmatpush.msra.mxu0 0.0
    %2878 = vmatpush.msra.mxu0 0.0
    %2879 = vmatpush.msra.mxu0 %v2734
    %2880 = vmatpush.msra.mxu0 %v2732
    %2881 = vmatpush.msra.mxu0 %v2730
    %2882 = vmatpush.msra.mxu0 %v2728
    %2883 = vmatpush.msra.mxu0 %v2726
    %2884 = vmatpush.msra.mxu0 %v2724
    %2885 = vmatpush.msra.mxu0 %v2722
    %2886 = vmatpush.msra.mxu0 %v2720
    %2887 = vmatmul.f32.gmra.mxu0 %v2849
    %v2888 = vpop.f32.mrf.mxu0
    %v2889 = vadd.f32 %v2847, %v2888
    %2890 = vdwg.mxu0
    %v2891 = vadd.f32 %v2869, %v1119
    %v2892 = vadd.f32 %v2889, %v1120
    %v2893 = vxor.u32 %v2891, 2147483648
    %v2894 = vmul.f32 %v2893, 1.442695
    %v2895 = vpow.pop %v2894
    %v2896 = vadd.f32 %v2895, 1.0
    %v2897 = vrcp.pop %v2896
    %v2898 = vmul.f32 %v2896, %v2897
    %v2899 = vsub.f32 1.0, %v2898
    %v2900 = vmul.f32 %v2897, %v2899
    %v2901 = vadd.f32 %v2897, %v2900
    %vm2902 = vweird.f32 %v2896
    %vm2903 = vweird.f32 %v2897
    %vm2904 = vmor %vm2902, %vm2903
    %v2905 = vsel %vm2904, %v2897, %v2901
    %v2906 = vand.u32 2147483647, %v2896
    %vm2907 = vcmp.eq.f32.partialorder %v2906, 8.507059e+37
    %v2908 = vand.u32 %v2896, 2147483648
    %v2909 = vor.u32 1.1754944e-38, %v2908
    %v2910 = vsel %vm2907, %v2909, %v2905
    %v2911 = vmul.f32 1.0, %v2910
    %v2912 = vtanh.pop %v2892
    %v2913 = vmul.f32 %v2911, %v2691
    %v2914 = vmul.f32 %v2911, %v2912
    %2916 = vrot.lane.b32.xlu0 %v2914, 64
    %v2917 = vpop.permute.xlu0 %2916
    %v2919 = vadd.f32 %v2913, %v2917
    %v2920 = vxor.u32 %v2892, 2147483648
    %v2921 = vmul.f32 %v2920, 1.442695
    %v2922 = vpow.pop %v2921
    %v2923 = vadd.f32 %v2922, 1.0
    %v2924 = vrcp.pop %v2923
    %v2925 = vmul.f32 %v2923, %v2924
    %v2926 = vsub.f32 1.0, %v2925
    %v2927 = vmul.f32 %v2924, %v2926
    %v2928 = vadd.f32 %v2924, %v2927
    %vm2929 = vweird.f32 %v2923
    %vm2930 = vweird.f32 %v2924
    %vm2931 = vmor %vm2929, %vm2930
    %v2932 = vsel %vm2931, %v2924, %v2928
    %v2933 = vand.u32 2147483647, %v2923
    %vm2934 = vcmp.eq.f32.partialorder %v2933, 8.507059e+37
    %v2935 = vand.u32 %v2923, 2147483648
    %v2936 = vor.u32 1.1754944e-38, %v2935
    %v2937 = vsel %vm2934, %v2936, %v2932
    %v2938 = vmul.f32 1.0, %v2937
    %v2939 = vtanh.pop %v2919
    %v2940 = vmul.f32 %v2938, %v2939
    %2942 = vrot.lane.b32.xlu0 %v2940, 64
    %v2943 = vpop.permute.xlu0 %2942
    %s2945 = scalar_lea.vmem [#allocation3], 56
    %2946 = vst.msk [vmem:[%s2945] sm:$0xff] %vm302, %v2943
    %v2947 = vld [vmem:[#allocation3] sm:$0xff]
    %v2948 = vld [vmem:[#allocation3 + $0x8] sm:$0xff]
    %v2949 = vld [vmem:[#allocation3 + $0x10] sm:$0xff]
    %v2950 = vld [vmem:[#allocation3 + $0x18] sm:$0xff]
    %v2951 = vld [vmem:[#allocation3 + $0x20] sm:$0xff]
    %v2952 = vld [vmem:[#allocation3 + $0x28] sm:$0xff]
    %v2953 = vld [vmem:[#allocation3 + $0x30] sm:$0xff]
    %v2954 = vld [vmem:[#allocation3 + $0x38] sm:$0xff]
    %v2955 = vld [vmem:[#allocation13] sm:$0xff]
    %v2956 = vld [vmem:[#allocation13 + $0x8] sm:$0xff]
    %v2957 = vld [vmem:[#allocation13 + $0x10] sm:$0xff]
    %v2958 = vld [vmem:[#allocation13 + $0x18] sm:$0xff]
    %v2959 = vld [vmem:[#allocation13 + $0x20] sm:$0xff]
    %v2960 = vld [vmem:[#allocation13 + $0x28] sm:$0xff]
    %v2961 = vld [vmem:[#allocation13 + $0x30] sm:$0xff]
    %v2962 = vld [vmem:[#allocation13 + $0x38] sm:$0xff]
    %v2963 = vld [vmem:[%s11] sm:$0x1]
    %v2965 = vperm.slane %v2963, 0
    %v2968 = vsel %vm302, %v2947, 0
    %v2971 = vsel %vm302, %v2948, 0
    %v2974 = vsel %vm302, %v2949, 0
    %v2977 = vsel %vm302, %v2950, 0
    %v2980 = vsel %vm302, %v2951, 0
    %v2983 = vsel %vm302, %v2952, 0
    %v2986 = vsel %vm302, %v2953, 0
    %v2989 = vsel %vm302, %v2954, 0
    %2991 = vmatpush.msra.mxu0 0.0
    %2992 = vmatpush.msra.mxu0 0.0
    %2993 = vmatpush.msra.mxu0 0.0
    %2994 = vmatpush.msra.mxu0 0.0
    %2995 = vmatpush.msra.mxu0 0.0
    %2996 = vmatpush.msra.mxu0 0.0
    %2997 = vmatpush.msra.mxu0 0.0
    %2998 = vmatpush.msra.mxu0 0.0
    %2999 = vmatpush.msra.mxu0 %v2962
    %3000 = vmatpush.msra.mxu0 %v2961
    %3001 = vmatpush.msra.mxu0 %v2960
    %3002 = vmatpush.msra.mxu0 %v2959
    %3003 = vmatpush.msra.mxu0 %v2958
    %3004 = vmatpush.msra.mxu0 %v2957
    %3005 = vmatpush.msra.mxu0 %v2956
    %3006 = vmatpush.msra.mxu0 %v2955
    %3007 = vmatmul.f32.gmra.mxu0 %v2968
    %v3008 = vpop.f32.mrf.mxu0
    %v3009 = vadd.f32 %v2965, %v3008
    %3010 = vmatmul.f32.gmra.mxu0 %v2971
    %v3011 = vpop.f32.mrf.mxu0
    %v3012 = vadd.f32 %v2965, %v3011
    %3013 = vmatmul.f32.gmra.mxu0 %v2974
    %v3014 = vpop.f32.mrf.mxu0
    %v3015 = vadd.f32 %v2965, %v3014
    %3016 = vmatmul.f32.gmra.mxu0 %v2977
    %v3017 = vpop.f32.mrf.mxu0
    %v3018 = vadd.f32 %v2965, %v3017
    %3019 = vmatmul.f32.gmra.mxu0 %v2980
    %v3020 = vpop.f32.mrf.mxu0
    %v3021 = vadd.f32 %v2965, %v3020
    %3022 = vmatmul.f32.gmra.mxu0 %v2983
    %v3023 = vpop.f32.mrf.mxu0
    %v3024 = vadd.f32 %v2965, %v3023
    %3025 = vmatmul.f32.gmra.mxu0 %v2986
    %v3026 = vpop.f32.mrf.mxu0
    %v3027 = vadd.f32 %v2965, %v3026
    %3028 = vmatmul.f32.gmra.mxu0 %v2989
    %v3029 = vpop.f32.mrf.mxu0
    %v3030 = vadd.f32 %v2965, %v3029
    %3031 = vdwg.mxu0
    %3032 = vst [vmem:[#allocation15] sm:$0xff] %v3009
    %3033 = vst [vmem:[#allocation15 + $0x8] sm:$0xff] %v3012
    %3034 = vst [vmem:[#allocation15 + $0x10] sm:$0xff] %v3015
    %3035 = vst [vmem:[#allocation15 + $0x18] sm:$0xff] %v3018
    %3036 = vst [vmem:[#allocation15 + $0x20] sm:$0xff] %v3021
    %3037 = vst [vmem:[#allocation15 + $0x28] sm:$0xff] %v3024
    %3038 = vst [vmem:[#allocation15 + $0x30] sm:$0xff] %v3027
    %3039 = vst [vmem:[#allocation15 + $0x38] sm:$0xff] %v3030
    // Predicated region
    $region74: #{tpu_custom_call.1} parent=1 // pred_check
      _
    $region75: #{tpu_custom_call.1} parent=1 // pred_check_branch
      %3041 = sbr.rel (0) target = $region77
    $region76: #{tpu_custom_call.1} parent=1 // pred_region
      %3043 = vsyncadd [#allocation6], 0
      %s3044 = sshll.u32 [#allocation15], 4
      %s3045 = int_to_ptr.vmem [resolvable:$true] %s3044
      %s3046 = sshll.u32 %s12, 4
      %s3047 = int_to_ptr.hbm [resolvable:$true] %s3046
      %3052 = dma.vmem_to_hbm [thread:$0]  %s3045, 1024, %s3047, [#allocation6], 128, 128, 8
    $region77: #{tpu_custom_call.1} parent=1 // pred_fallthru
      _
    // Predicated region
    $region78: #{tpu_custom_call.1} parent=1 // pred_check
      _
    $region79: #{tpu_custom_call.1} parent=1 // pred_check_branch
      %3054 = sbr.rel (0) target = $region81
    $region80: #{tpu_custom_call.1} parent=1 // pred_region
      %3056 = dma.done [#allocation6], 1024
    $region81: #{tpu_custom_call.1} parent=1 // pred_fallthru
      _
    %3057 = vsyncpa [#allocation5], 1
    %3058 = vsyncpa [#allocation8], 1
    %3059 = vsyncpa [#allocation11], 1
    %3060 = vsyncpa [#allocation14], 1
    %3061 = vsyncpa [#allocation6], 1

</llo_original>
